<compile_context>
chip_gen: v7x
topology: tpu7x:2x2x1
jax: 0.10.0
libtpu: 0.0.40
codegen_flags: <defaults>
</compile_context>

<pallas_src>
import functools

import jax
import jax.numpy as jnp
from jax import lax
from jax.experimental import pallas as pl
from jax.experimental.pallas import tpu as pltpu

EPS = 1e-5
SLOPE = 0.2
LANE = 128
TARGET_ROWS = 1024   # aim for ~1K-row tiles per grid step (mem-bound roofline)


def _rup(x, m):
    return ((x + m - 1) // m) * m


def _leaky(x):
    return jnp.where(x >= 0, x, SLOPE * x)


def _vmem_limit_bytes():
    """Per-generation VMEM cap: ~3/4 of physical (v5e/v6e: 128 MiB, v7x: 64 MiB)."""
    try:
        cap = int(pltpu.get_tpu_info().vmem_capacity_bytes)
    except Exception:
        cap = 64 * 1024 * 1024
    return int(max(16 * 1024 * 1024, min(cap * 3 // 4, 96 * 1024 * 1024)))


def _choose_imgs_per_step(n, ho, wo, cp, vmem_limit):
    """Batch images per grid step so row tiles reach ~TARGET_ROWS under the VMEM budget."""
    rows_per_img = ho * wo
    n_sub = min(n, max(1, TARGET_ROWS // rows_per_img))
    budget = vmem_limit // 2                      # headroom for weights / stats / sems

    def kernel_b_bytes(k):                        # kernel B has the largest footprint
        r = k * rows_per_img
        return 4 * (2 * r * cp                    # y1 in   (double buffered)
                    + 2 * r * cp                  # y2 out  (double buffered)
                    + k * (ho + 2) * (wo + 2) * cp  # zero-halo scratch
                    + 2 * 9 * cp * cp)            # conv2 weight slab

    while n_sub > 1 and kernel_b_bytes(n_sub) > budget:
        n_sub -= 1
    while n % n_sub:                              # keep the grid exact (no remainder step)
        n_sub -= 1
    return n_sub


# ------------------------------ Pallas kernels ------------------------------ #

def _conv1_stats_kernel(xph_ref, w1_ref, y1_ref, s_ref, ss_ref,
                        *, n_sub, ho, wo, cp, kph):
    """conv1 (3x3 stride-2, bias-free) as 4 phase-window matmuls + BN1 partial stats."""
    rows = n_sub * ho * wo
    xph = xph_ref[...]                                   # (n_sub, ho+1, wo+1, 4*cin)
    acc = jnp.zeros((rows, cp), jnp.float32)
    for dw in range(2):
        plane = xph[:, :, dw:dw + wo, :]                 # one sublane shift per dw
        for dh in range(2):                              # leading-dim offsets: free
            win = plane[:, dh:dh + ho, :, :].reshape(rows, kph)
            acc = acc + jnp.dot(win, w1_ref[dh * 2 + dw],
                                preferred_element_type=jnp.float32)
    y1_ref[...] = acc.reshape(n_sub, ho, wo, cp)
    # partial per-step stats (reduced to 8 sublanes here, finished in XLA)
    s_ref[...] = acc.reshape(rows // 8, 8, cp).sum(axis=0)
    ss_ref[...] = (acc * acc).reshape(rows // 8, 8, cp).sum(axis=0)


def _bn1_conv2_stats_kernel(y1_ref, w2_ref, sc1_ref, sh1_ref,
                            y2_ref, s_ref, ss_ref, hbuf,
                            *, n_sub, ho, wo, cp):
    """BN1 + LeakyReLU, conv2 (3x3 s1) via a zero-halo VMEM scratch, BN2 partial stats."""
    rows = n_sub * ho * wo
    scale = sc1_ref[...].reshape(1, 1, 1, cp)
    shift = sh1_ref[...].reshape(1, 1, 1, cp)
    h = _leaky(y1_ref[...] * scale + shift)              # (n_sub, ho, wo, cp)
    hbuf[...] = jnp.zeros_like(hbuf)                     # cheap memset -> zero halo
    hbuf[:, 1:1 + ho, 1:1 + wo, :] = h                   # interior = normalised activation
    acc = jnp.zeros((rows, cp), jnp.float32)
    for kw in range(3):                                  # 3 sublane-shifted planes (not 9)
        plane = hbuf[:, :, kw:kw + wo, :]                # (n_sub, ho+2, wo, cp)
        for kh in range(3):                              # leading-dim offsets: free
            win = plane[:, kh:kh + ho, :, :].reshape(rows, cp)
            acc = acc + jnp.dot(win, w2_ref[kh * 3 + kw],
                                preferred_element_type=jnp.float32)
    y2_ref[...] = acc
    s_ref[...] = acc.reshape(rows // 8, 8, cp).sum(axis=0)
    ss_ref[...] = (acc * acc).reshape(rows // 8, 8, cp).sum(axis=0)


def _bn2_res_lrelu_kernel(y2_ref, pooled_ref, wres_ref, sc2_ref, sh2_ref, out_ref):
    """BN2 + residual (avg-pooled x, 1x1 conv as small-K matmul) + add + LeakyReLU."""
    h = y2_ref[...] * sc2_ref[...] + sh2_ref[...]
    res = jnp.dot(pooled_ref[...], wres_ref[...], preferred_element_type=jnp.float32)
    out_ref[...] = _leaky(h + res)


# ------------------------------- glue (JAX) -------------------------------- #

def _bn_scale_shift(s_part, ss_part, gamma, beta, count):
    """Finish the global-batch BN stats from per-step partial sums (tiny XLA ops)."""
    s = s_part.sum(axis=0)
    ss = ss_part.sum(axis=0)
    mean = s / count
    var = jnp.maximum(ss / count - mean * mean, 0.0)   # guard E[x^2]-E[x]^2 cancellation
    scale = gamma * lax.rsqrt(var + EPS)
    shift = beta - mean * scale
    return scale.reshape(1, -1), shift.reshape(1, -1)


def res_down_block(x_nchw, params):
    """Forward pass of ResDownBlock. x_nchw: (N, Cin, H, W) float32, returns NCHW."""
    w1, g1, b1, w2, g2, b2, wres = (params[k] for k in
                                    ("w1", "g1", "b1", "w2", "g2", "b2", "wres"))
    f32 = jnp.float32
    x = jnp.transpose(x_nchw, (0, 2, 3, 1)).astype(f32)               # NHWC
    n, h, w, cin = x.shape
    cout = w1.shape[-1]
    assert h % 2 == 0 and w % 2 == 0
    ho, wo = h // 2, w // 2
    assert wo % 8 == 0, "Wo must be a multiple of 8 (see TODO at top of file)"
    rows_per_img = ho * wo
    m = n * rows_per_img                   # BN batch count per channel

    cp = _rup(cout, LANE)                  # lane-dense channel dim
    kph = 4 * cin                          # contraction per phase window

    vmem_limit = _vmem_limit_bytes()
    n_sub = _choose_imgs_per_step(n, ho, wo, cp, vmem_limit)
    n_steps = n // n_sub
    rows = n_sub * rows_per_img            # rows per grid step

    # ---- conv1 weights regrouped into the 4 stride-2 phase windows (dh, dw) ----
    # xph / W1ph channel ordering is (ph*2 + pw)*cin + c.
    w1ph = jnp.zeros((2, 2, 2, 2, cin, cp), f32)
    for dh in range(2):
        for dw in range(2):
            for ph in range(2):
                for pw in range(2):
                    kh, kw = 2 * dh + ph, 2 * dw + pw
                    if kh < 3 and kw < 3:
                        w1ph = w1ph.at[dh, dw, ph, pw, :, :cout].set(w1[kh, kw])
    w1ph = w1ph.reshape(4, kph, cp)

    w2p = jnp.zeros((3, 3, cp, cp), f32).at[:, :, :cout, :cout].set(w2).reshape(9, cp, cp)
    wresp = jnp.zeros((cin, cp), f32).at[:, :cout].set(wres)

    def _vec(v):
        return jnp.zeros((cp,), f32).at[:cout].set(v)

    g1p, b1p, g2p, b2p = _vec(g1), _vec(b1), _vec(g2), _vec(b2)

    # ---- stride-2 phase decomposition of the padded input (same bytes as x) ----
    xp = jnp.pad(x, ((0, 0), (1, 1), (1, 1), (0, 0)))
    xph = jnp.concatenate(
        [xp[:, ph:ph + 2 * ho + 1:2, pw:pw + 2 * wo + 1:2, :]
         for ph in (0, 1) for pw in (0, 1)], axis=-1)                 # (n, ho+1, wo+1, 4*cin)

    # ---- residual path: 2x2 avg-pool in XLA, 1x1 conv stays inside kernel C ----
    pooled = x.reshape(n, ho, 2, wo, 2, cin).mean(axis=(2, 4)).reshape(m, cin)

    stat_spec = pl.BlockSpec((8, cp), lambda i: (i, 0))
    vec_spec = pl.BlockSpec((1, cp), lambda i: (0, 0))
    stat_shape = jax.ShapeDtypeStruct((n_steps * 8, cp), f32)

    def _cparams():
        return pltpu.CompilerParams(dimension_semantics=("parallel",),
                                    vmem_limit_bytes=vmem_limit)

    # ------------------- kernel A: conv1 + BN1 partial stats ------------------- #
    y1, s1p, ss1p = pl.pallas_call(
        functools.partial(_conv1_stats_kernel,
                          n_sub=n_sub, ho=ho, wo=wo, cp=cp, kph=kph),
        grid=(n_steps,),
        in_specs=[pl.BlockSpec((n_sub, ho + 1, wo + 1, kph), lambda i: (i, 0, 0, 0)),
                  pl.BlockSpec((4, kph, cp), lambda i: (0, 0, 0))],
        out_specs=[pl.BlockSpec((n_sub, ho, wo, cp), lambda i: (i, 0, 0, 0)),
                   stat_spec, stat_spec],
        out_shape=[jax.ShapeDtypeStruct((n, ho, wo, cp), f32), stat_shape, stat_shape],
        compiler_params=_cparams(),
        cost_estimate=pl.CostEstimate(
            flops=2 * m * 4 * kph * cp, transcendentals=0,
            bytes_accessed=4 * (n * (ho + 1) * (wo + 1) * kph + 4 * kph * cp
                                + m * cp + 2 * n_steps * 8 * cp)),
    )(xph, w1ph)

    scale1, shift1 = _bn_scale_shift(s1p, ss1p, g1p, b1p, m)

    # --------- kernel B: BN1 + LeakyReLU + conv2 + BN2 partial stats ---------- #
    y2, s2p, ss2p = pl.pallas_call(
        functools.partial(_bn1_conv2_stats_kernel, n_sub=n_sub, ho=ho, wo=wo, cp=cp),
        grid=(n_steps,),
        in_specs=[pl.BlockSpec((n_sub, ho, wo, cp), lambda i: (i, 0, 0, 0)),
                  pl.BlockSpec((9, cp, cp), lambda i: (0, 0, 0)),
                  vec_spec, vec_spec],
        out_specs=[pl.BlockSpec((rows, cp), lambda i: (i, 0)),
                   stat_spec, stat_spec],
        out_shape=[jax.ShapeDtypeStruct((m, cp), f32), stat_shape, stat_shape],
        scratch_shapes=[pltpu.VMEM((n_sub, ho + 2, wo + 2, cp), f32)],
        compiler_params=_cparams(),
        cost_estimate=pl.CostEstimate(
            flops=2 * m * 9 * cp * cp, transcendentals=0,
            bytes_accessed=4 * (2 * m * cp + 9 * cp * cp
                                + 2 * n_steps * 8 * cp + 4 * cp)),
    )(y1, w2p, scale1, shift1)

    scale2, shift2 = _bn_scale_shift(s2p, ss2p, g2p, b2p, m)

    # --------- kernel C: BN2 + residual (pooled x @ Wres) + add + LeakyReLU ---- #
    out = pl.pallas_call(
        _bn2_res_lrelu_kernel,
        grid=(n_steps,),
        in_specs=[pl.BlockSpec((rows, cp), lambda i: (i, 0)),
                  pl.BlockSpec((rows, cin), lambda i: (i, 0)),
                  pl.BlockSpec((cin, cp), lambda i: (0, 0)),
                  vec_spec, vec_spec],
        out_specs=pl.BlockSpec((rows, cp), lambda i: (i, 0)),
        out_shape=jax.ShapeDtypeStruct((m, cp), f32),
        compiler_params=_cparams(),
        cost_estimate=pl.CostEstimate(
            flops=2 * m * cin * cp + 6 * m * cp, transcendentals=0,
            bytes_accessed=4 * (2 * m * cp + m * cin + cin * cp + 2 * cp)),
    )(y2, pooled, wresp, scale2, shift2)

    out = out[:, :cout].reshape(n, ho, wo, cout)
    return jnp.transpose(out, (0, 3, 1, 2))                           # back to NCHW


# ------------------------- pure-JAX reference check ------------------------ #

def _bn_train(y, g, b):
    mu = y.mean(axis=(0, 1, 2), keepdims=True)
    var = ((y - mu) ** 2).mean(axis=(0, 1, 2), keepdims=True)
    return (y - mu) * lax.rsqrt(var + EPS) * g + b


def res_down_block_ref(x_nchw, params):
    w1, g1, b1, w2, g2, b2, wres = (params[k] for k in
                                    ("w1", "g1", "b1", "w2", "g2", "b2", "wres"))
    x = jnp.transpose(x_nchw, (0, 2, 3, 1)).astype(jnp.float32)
    dn = ("NHWC", "HWIO", "NHWC")
    y = lax.conv_general_dilated(x, w1, (2, 2), ((1, 1), (1, 1)), dimension_numbers=dn)
    y = _leaky(_bn_train(y, g1, b1))
    y = lax.conv_general_dilated(y, w2, (1, 1), ((1, 1), (1, 1)), dimension_numbers=dn)
    y = _bn_train(y, g2, b2)
    n, h, w, c = x.shape
    pooled = x.reshape(n, h // 2, 2, w // 2, 2, c).mean(axis=(2, 4))
    res = jnp.einsum("nhwi,io->nhwo", pooled, wres)
    out = _leaky(y + res)
    return jnp.transpose(out, (0, 3, 1, 2))


# ----------------------------------- main ----------------------------------- #

if __name__ == "__main__":
    in_c, out_c = 4, 8
    n, h, w = 2, 16, 16

    key = jax.random.PRNGKey(0)
    ks = jax.random.split(key, 8)
    params = {
        "w1": 0.1 * jax.random.normal(ks[0], (3, 3, in_c, out_c), jnp.float32),
        "w2": 0.1 * jax.random.normal(ks[1], (3, 3, out_c, out_c), jnp.float32),
        "wres": 0.1 * jax.random.normal(ks[2], (in_c, out_c), jnp.float32),
        "g1": 1.0 + 0.1 * jax.random.normal(ks[3], (out_c,), jnp.float32),
        "b1": 0.1 * jax.random.normal(ks[4], (out_c,), jnp.float32),
        "g2": 1.0 + 0.1 * jax.random.normal(ks[5], (out_c,), jnp.float32),
        "b2": 0.1 * jax.random.normal(ks[6], (out_c,), jnp.float32),
    }
    x = jax.random.normal(ks[7], (n, in_c, h, w), jnp.float32)

    out = jax.block_until_ready(jax.jit(res_down_block)(x, params))
    ref = jax.block_until_ready(res_down_block_ref(x, params))

    assert out.shape == (n, out_c, h // 2, w // 2), out.shape
    max_err = float(jnp.max(jnp.abs(out - ref)))
    assert jnp.allclose(out, ref, rtol=1e-4, atol=1e-4), max_err
    print("KERNEL_OK")
</pallas_src>

<mosaic_0001>
module attributes {stable_mosaic.version = 11 : i64} {
  func.func @_conv1_stats_kernel(%arg0: i32, %arg1: memref<2x9x9x16xf32, #tpu.memory_space<vmem>>, %arg2: memref<4x16x128xf32, #tpu.memory_space<vmem>>, %arg3: memref<2x8x8x128xf32, #tpu.memory_space<vmem>>, %arg4: memref<8x128xf32, #tpu.memory_space<vmem>>, %arg5: memref<8x128xf32, #tpu.memory_space<vmem>>) attributes {dimension_semantics = [#tpu.dimension_semantics<parallel>], iteration_bounds = array<i64: 1>, scalar_prefetch = 0 : i64, scratch_operands = 0 : i64, tpu.core_type = #tpu.core_type<tc>, window_params = [{transform_indices = @transform_0, window_bounds = array<i64: 2, 9, 9, 16>}, {pipeline_mode = #tpu.pipeline_mode<synchronous>, transform_indices = @transform_1, window_bounds = array<i64: 4, 16, 128>}, {transform_indices = @transform_2, window_bounds = array<i64: 2, 8, 8, 128>}, {transform_indices = @transform_3, window_bounds = array<i64: 8, 128>}, {transform_indices = @transform_4, window_bounds = array<i64: 8, 128>}]} {
    %c0 = arith.constant 0 : index
    %c0_0 = arith.constant 0 : index
    %c0_1 = arith.constant 0 : index
    %c0_2 = arith.constant 0 : index
    %0 = vector.load %arg1[%c0, %c0_0, %c0_1, %c0_2] : memref<2x9x9x16xf32, #tpu.memory_space<vmem>>, vector<2x9x9x16xf32>
    %cst = arith.constant 0.000000e+00 : f32
    %1 = vector.broadcast %cst : f32 to vector<128x128xf32>
    %2 = vector.extract_strided_slice %0 {offsets = [0, 0, 0, 0], sizes = [2, 9, 8, 16], strides = [1, 1, 1, 1]} : vector<2x9x9x16xf32> to vector<2x9x8x16xf32>
    %3 = vector.extract_strided_slice %2 {offsets = [0, 0, 0, 0], sizes = [2, 8, 8, 16], strides = [1, 1, 1, 1]} : vector<2x9x8x16xf32> to vector<2x8x8x16xf32>
    %4 = vector.shape_cast %3 : vector<2x8x8x16xf32> to vector<128x16xf32>
    %c0_3 = arith.constant 0 : index
    %c0_4 = arith.constant 0 : index
    %c0_5 = arith.constant 0 : index
    %5 = vector.load %arg2[%c0_3, %c0_4, %c0_5] : memref<4x16x128xf32, #tpu.memory_space<vmem>>, vector<1x16x128xf32>
    %6 = vector.shape_cast %5 : vector<1x16x128xf32> to vector<16x128xf32>
    %cst_6 = arith.constant dense<0.000000e+00> : vector<128x128xf32>
    %7 = tpu.matmul %4, %6, %cst_6 {dimension_numbers = #tpu.dot_dimension_numbers<[1], [0], [0], [1], [0, 0, 1, 1], [], []>} : vector<128x16xf32>, vector<16x128xf32>, vector<128x128xf32> -> vector<128x128xf32>
    %8 = arith.addf %1, %7 : vector<128x128xf32>
    %9 = vector.extract_strided_slice %2 {offsets = [0, 1, 0, 0], sizes = [2, 8, 8, 16], strides = [1, 1, 1, 1]} : vector<2x9x8x16xf32> to vector<2x8x8x16xf32>
    %10 = vector.shape_cast %9 : vector<2x8x8x16xf32> to vector<128x16xf32>
    %c2 = arith.constant 2 : index
    %c0_7 = arith.constant 0 : index
    %c0_8 = arith.constant 0 : index
    %11 = vector.load %arg2[%c2, %c0_7, %c0_8] : memref<4x16x128xf32, #tpu.memory_space<vmem>>, vector<1x16x128xf32>
    %12 = vector.shape_cast %11 : vector<1x16x128xf32> to vector<16x128xf32>
    %cst_9 = arith.constant dense<0.000000e+00> : vector<128x128xf32>
    %13 = tpu.matmul %10, %12, %cst_9 {dimension_numbers = #tpu.dot_dimension_numbers<[1], [0], [0], [1], [0, 0, 1, 1], [], []>} : vector<128x16xf32>, vector<16x128xf32>, vector<128x128xf32> -> vector<128x128xf32>
    %14 = arith.addf %8, %13 : vector<128x128xf32>
    %15 = vector.extract_strided_slice %0 {offsets = [0, 0, 1, 0], sizes = [2, 9, 8, 16], strides = [1, 1, 1, 1]} : vector<2x9x9x16xf32> to vector<2x9x8x16xf32>
    %16 = vector.extract_strided_slice %15 {offsets = [0, 0, 0, 0], sizes = [2, 8, 8, 16], strides = [1, 1, 1, 1]} : vector<2x9x8x16xf32> to vector<2x8x8x16xf32>
    %17 = vector.shape_cast %16 : vector<2x8x8x16xf32> to vector<128x16xf32>
    %c1 = arith.constant 1 : index
    %c0_10 = arith.constant 0 : index
    %c0_11 = arith.constant 0 : index
    %18 = vector.load %arg2[%c1, %c0_10, %c0_11] : memref<4x16x128xf32, #tpu.memory_space<vmem>>, vector<1x16x128xf32>
    %19 = vector.shape_cast %18 : vector<1x16x128xf32> to vector<16x128xf32>
    %cst_12 = arith.constant dense<0.000000e+00> : vector<128x128xf32>
    %20 = tpu.matmul %17, %19, %cst_12 {dimension_numbers = #tpu.dot_dimension_numbers<[1], [0], [0], [1], [0, 0, 1, 1], [], []>} : vector<128x16xf32>, vector<16x128xf32>, vector<128x128xf32> -> vector<128x128xf32>
    %21 = arith.addf %14, %20 : vector<128x128xf32>
    %22 = vector.extract_strided_slice %15 {offsets = [0, 1, 0, 0], sizes = [2, 8, 8, 16], strides = [1, 1, 1, 1]} : vector<2x9x8x16xf32> to vector<2x8x8x16xf32>
    %23 = vector.shape_cast %22 : vector<2x8x8x16xf32> to vector<128x16xf32>
    %c3 = arith.constant 3 : index
    %c0_13 = arith.constant 0 : index
    %c0_14 = arith.constant 0 : index
    %24 = vector.load %arg2[%c3, %c0_13, %c0_14] : memref<4x16x128xf32, #tpu.memory_space<vmem>>, vector<1x16x128xf32>
    %25 = vector.shape_cast %24 : vector<1x16x128xf32> to vector<16x128xf32>
    %cst_15 = arith.constant dense<0.000000e+00> : vector<128x128xf32>
    %26 = tpu.matmul %23, %25, %cst_15 {dimension_numbers = #tpu.dot_dimension_numbers<[1], [0], [0], [1], [0, 0, 1, 1], [], []>} : vector<128x16xf32>, vector<16x128xf32>, vector<128x128xf32> -> vector<128x128xf32>
    %27 = arith.addf %21, %26 : vector<128x128xf32>
    %28 = vector.shape_cast %27 : vector<128x128xf32> to vector<2x8x8x128xf32>
    %c0_16 = arith.constant 0 : index
    %c0_17 = arith.constant 0 : index
    %c0_18 = arith.constant 0 : index
    %c0_19 = arith.constant 0 : index
    %29 = vector.load %arg3[%c0_16, %c0_17, %c0_18, %c0_19] : memref<2x8x8x128xf32, #tpu.memory_space<vmem>>, vector<2x8x8x128xf32>
    tpu.vector_store %arg3[%c0_16, %c0_17, %c0_18, %c0_19], %28 {strides = array<i32>} : memref<2x8x8x128xf32, #tpu.memory_space<vmem>>, vector<2x8x8x128xf32>,
    %30 = vector.shape_cast %27 : vector<128x128xf32> to vector<16x8x128xf32>
    %cst_20 = arith.constant dense<0.000000e+00> : vector<8x128xf32>
    %31 = vector.multi_reduction <add>, %30, %cst_20 [0] : vector<16x8x128xf32> to vector<8x128xf32>
    %c0_21 = arith.constant 0 : index
    %c0_22 = arith.constant 0 : index
    %32 = vector.load %arg4[%c0_21, %c0_22] : memref<8x128xf32, #tpu.memory_space<vmem>>, vector<8x128xf32>
    tpu.vector_store %arg4[%c0_21, %c0_22], %31 {strides = array<i32>} : memref<8x128xf32, #tpu.memory_space<vmem>>, vector<8x128xf32>,
    %33 = arith.mulf %27, %27 : vector<128x128xf32>
    %34 = vector.shape_cast %33 : vector<128x128xf32> to vector<16x8x128xf32>
    %cst_23 = arith.constant dense<0.000000e+00> : vector<8x128xf32>
    %35 = vector.multi_reduction <add>, %34, %cst_23 [0] : vector<16x8x128xf32> to vector<8x128xf32>
    %c0_24 = arith.constant 0 : index
    %c0_25 = arith.constant 0 : index
    %36 = vector.load %arg5[%c0_24, %c0_25] : memref<8x128xf32, #tpu.memory_space<vmem>>, vector<8x128xf32>
    tpu.vector_store %arg5[%c0_24, %c0_25], %35 {strides = array<i32>} : memref<8x128xf32, #tpu.memory_space<vmem>>, vector<8x128xf32>,
    return
  }
  func.func @transform_0(%arg0: i32) -> (i32, i32, i32, i32) {
    %c0_i32 = arith.constant 0 : i32
    %c0_i32_0 = arith.constant 0 : i32
    %c0_i32_1 = arith.constant 0 : i32
    %c0_i32_2 = arith.constant 0 : i32
    return %arg0, %c0_i32, %c0_i32_0, %c0_i32_1 : i32, i32, i32, i32
  }
  func.func @transform_1(%arg0: i32) -> (i32, i32, i32) {
    %c0_i32 = arith.constant 0 : i32
    %c0_i32_0 = arith.constant 0 : i32
    %c0_i32_1 = arith.constant 0 : i32
    %c0_i32_2 = arith.constant 0 : i32
    return %c0_i32, %c0_i32_0, %c0_i32_1 : i32, i32, i32
  }
  func.func @transform_2(%arg0: i32) -> (i32, i32, i32, i32) {
    %c0_i32 = arith.constant 0 : i32
    %c0_i32_0 = arith.constant 0 : i32
    %c0_i32_1 = arith.constant 0 : i32
    %c0_i32_2 = arith.constant 0 : i32
    return %arg0, %c0_i32, %c0_i32_0, %c0_i32_1 : i32, i32, i32, i32
  }
  func.func @transform_3(%arg0: i32) -> (i32, i32) {
    %c0_i32 = arith.constant 0 : i32
    %c0_i32_0 = arith.constant 0 : i32
    return %arg0, %c0_i32 : i32, i32
  }
  func.func @transform_4(%arg0: i32) -> (i32, i32) {
    %c0_i32 = arith.constant 0 : i32
    %c0_i32_0 = arith.constant 0 : i32
    return %arg0, %c0_i32 : i32, i32
  }
}

module attributes {stable_mosaic.version = 11 : i64} {
  func.func @_bn1_conv2_stats_kernel(%arg0: i32, %arg1: memref<2x8x8x128xf32, #tpu.memory_space<vmem>>, %arg2: memref<9x128x128xf32, #tpu.memory_space<vmem>>, %arg3: memref<1x128xf32, #tpu.memory_space<vmem>>, %arg4: memref<1x128xf32, #tpu.memory_space<vmem>>, %arg5: memref<128x128xf32, #tpu.memory_space<vmem>>, %arg6: memref<8x128xf32, #tpu.memory_space<vmem>>, %arg7: memref<8x128xf32, #tpu.memory_space<vmem>>, %arg8: memref<2x10x10x128xf32, #tpu.memory_space<vmem>>) attributes {dimension_semantics = [#tpu.dimension_semantics<parallel>], iteration_bounds = array<i64: 1>, scalar_prefetch = 0 : i64, scratch_operands = 1 : i64, tpu.core_type = #tpu.core_type<tc>, window_params = [{transform_indices = @transform_0, window_bounds = array<i64: 2, 8, 8, 128>}, {pipeline_mode = #tpu.pipeline_mode<synchronous>, transform_indices = @transform_1, window_bounds = array<i64: 9, 128, 128>}, {pipeline_mode = #tpu.pipeline_mode<synchronous>, transform_indices = @transform_2, window_bounds = array<i64: 1, 128>}, {pipeline_mode = #tpu.pipeline_mode<synchronous>, transform_indices = @transform_3, window_bounds = array<i64: 1, 128>}, {transform_indices = @transform_4, window_bounds = array<i64: 128, 128>}, {transform_indices = @transform_5, window_bounds = array<i64: 8, 128>}, {transform_indices = @transform_6, window_bounds = array<i64: 8, 128>}]} {
    %c0 = arith.constant 0 : index
    %c0_0 = arith.constant 0 : index
    %0 = vector.load %arg3[%c0, %c0_0] : memref<1x128xf32, #tpu.memory_space<vmem>>, vector<1x128xf32>
    %1 = vector.shape_cast %0 : vector<1x128xf32> to vector<1x1x1x128xf32>
    %c0_1 = arith.constant 0 : index
    %c0_2 = arith.constant 0 : index
    %2 = vector.load %arg4[%c0_1, %c0_2] : memref<1x128xf32, #tpu.memory_space<vmem>>, vector<1x128xf32>
    %3 = vector.shape_cast %2 : vector<1x128xf32> to vector<1x1x1x128xf32>
    %c0_3 = arith.constant 0 : index
    %c0_4 = arith.constant 0 : index
    %c0_5 = arith.constant 0 : index
    %c0_6 = arith.constant 0 : index
    %4 = vector.load %arg1[%c0_3, %c0_4, %c0_5, %c0_6] : memref<2x8x8x128xf32, #tpu.memory_space<vmem>>, vector<2x8x8x128xf32>
    %5 = vector.broadcast %1 : vector<1x1x1x128xf32> to vector<2x8x8x128xf32>
    %6 = arith.mulf %4, %5 : vector<2x8x8x128xf32>
    %7 = vector.broadcast %3 : vector<1x1x1x128xf32> to vector<2x8x8x128xf32>
    %8 = arith.addf %6, %7 : vector<2x8x8x128xf32>
    %cst = arith.constant 0.000000e+00 : f32
    %9 = vector.broadcast %cst : f32 to vector<2x8x8x128xf32>
    %10 = arith.cmpf oge, %8, %9 : vector<2x8x8x128xf32>
    %cst_7 = arith.constant 2.000000e-01 : f32
    %11 = vector.broadcast %cst_7 : f32 to vector<2x8x8x128xf32>
    %12 = arith.mulf %11, %8 : vector<2x8x8x128xf32>
    %13 = arith.select %10, %8, %12 : vector<2x8x8x128xi1>, vector<2x8x8x128xf32>
    %cst_8 = arith.constant 0.000000e+00 : f32
    %14 = vector.broadcast %cst_8 : f32 to vector<2x10x10x128xf32>
    %c0_9 = arith.constant 0 : index
    %c0_10 = arith.constant 0 : index
    %c0_11 = arith.constant 0 : index
    %c0_12 = arith.constant 0 : index
    %15 = vector.load %arg8[%c0_9, %c0_10, %c0_11, %c0_12] : memref<2x10x10x128xf32, #tpu.memory_space<vmem>>, vector<2x10x10x128xf32>
    tpu.vector_store %arg8[%c0_9, %c0_10, %c0_11, %c0_12], %14 {strides = array<i32>} : memref<2x10x10x128xf32, #tpu.memory_space<vmem>>, vector<2x10x10x128xf32>,
    %c0_13 = arith.constant 0 : index
    %c1 = arith.constant 1 : index
    %c1_14 = arith.constant 1 : index
    %c0_15 = arith.constant 0 : index
    %16 = vector.load %arg8[%c0_13, %c1, %c1_14, %c0_15] : memref<2x10x10x128xf32, #tpu.memory_space<vmem>>, vector<2x8x8x128xf32>
    tpu.vector_store %arg8[%c0_13, %c1, %c1_14, %c0_15], %13 {strides = array<i32>} : memref<2x10x10x128xf32, #tpu.memory_space<vmem>>, vector<2x8x8x128xf32>,
    %cst_16 = arith.constant 0.000000e+00 : f32
    %17 = vector.broadcast %cst_16 : f32 to vector<128x128xf32>
    %c0_17 = arith.constant 0 : index
    %c0_18 = arith.constant 0 : index
    %c0_19 = arith.constant 0 : index
    %c0_20 = arith.constant 0 : index
    %18 = vector.load %arg8[%c0_17, %c0_18, %c0_19, %c0_20] : memref<2x10x10x128xf32, #tpu.memory_space<vmem>>, vector<2x10x8x128xf32>
    %19 = vector.extract_strided_slice %18 {offsets = [0, 0, 0, 0], sizes = [2, 8, 8, 128], strides = [1, 1, 1, 1]} : vector<2x10x8x128xf32> to vector<2x8x8x128xf32>
    %20 = vector.shape_cast %19 : vector<2x8x8x128xf32> to vector<128x128xf32>
    %c0_21 = arith.constant 0 : index
    %c0_22 = arith.constant 0 : index
    %c0_23 = arith.constant 0 : index
    %21 = vector.load %arg2[%c0_21, %c0_22, %c0_23] : memref<9x128x128xf32, #tpu.memory_space<vmem>>, vector<1x128x128xf32>
    %22 = vector.shape_cast %21 : vector<1x128x128xf32> to vector<128x128xf32>
    %cst_24 = arith.constant dense<0.000000e+00> : vector<128x128xf32>
    %23 = tpu.matmul %20, %22, %cst_24 {dimension_numbers = #tpu.dot_dimension_numbers<[1], [0], [0], [1], [0, 0, 1, 1], [], []>} : vector<128x128xf32>, vector<128x128xf32>, vector<128x128xf32> -> vector<128x128xf32>
    %24 = arith.addf %17, %23 : vector<128x128xf32>
    %25 = vector.extract_strided_slice %18 {offsets = [0, 1, 0, 0], sizes = [2, 8, 8, 128], strides = [1, 1, 1, 1]} : vector<2x10x8x128xf32> to vector<2x8x8x128xf32>
    %26 = vector.shape_cast %25 : vector<2x8x8x128xf32> to vector<128x128xf32>
    %c3 = arith.constant 3 : index
    %c0_25 = arith.constant 0 : index
    %c0_26 = arith.constant 0 : index
    %27 = vector.load %arg2[%c3, %c0_25, %c0_26] : memref<9x128x128xf32, #tpu.memory_space<vmem>>, vector<1x128x128xf32>
    %28 = vector.shape_cast %27 : vector<1x128x128xf32> to vector<128x128xf32>
    %cst_27 = arith.constant dense<0.000000e+00> : vector<128x128xf32>
    %29 = tpu.matmul %26, %28, %cst_27 {dimension_numbers = #tpu.dot_dimension_numbers<[1], [0], [0], [1], [0, 0, 1, 1], [], []>} : vector<128x128xf32>, vector<128x128xf32>, vector<128x128xf32> -> vector<128x128xf32>
    %30 = arith.addf %24, %29 : vector<128x128xf32>
    %31 = vector.extract_strided_slice %18 {offsets = [0, 2, 0, 0], sizes = [2, 8, 8, 128], strides = [1, 1, 1, 1]} : vector<2x10x8x128xf32> to vector<2x8x8x128xf32>
    %32 = vector.shape_cast %31 : vector<2x8x8x128xf32> to vector<128x128xf32>
    %c6 = arith.constant 6 : index
    %c0_28 = arith.constant 0 : index
    %c0_29 = arith.constant 0 : index
    %33 = vector.load %arg2[%c6, %c0_28, %c0_29] : memref<9x128x128xf32, #tpu.memory_space<vmem>>, vector<1x128x128xf32>
    %34 = vector.shape_cast %33 : vector<1x128x128xf32> to vector<128x128xf32>
    %cst_30 = arith.constant dense<0.000000e+00> : vector<128x128xf32>
    %35 = tpu.matmul %32, %34, %cst_30 {dimension_numbers = #tpu.dot_dimension_numbers<[1], [0], [0], [1], [0, 0, 1, 1], [], []>} : vector<128x128xf32>, vector<128x128xf32>, vector<128x128xf32> -> vector<128x128xf32>
    %36 = arith.addf %30, %35 : vector<128x128xf32>
    %c0_31 = arith.constant 0 : index
    %c0_32 = arith.constant 0 : index
    %c1_33 = arith.constant 1 : index
    %c0_34 = arith.constant 0 : index
    %37 = vector.load %arg8[%c0_31, %c0_32, %c1_33, %c0_34] : memref<2x10x10x128xf32, #tpu.memory_space<vmem>>, vector<2x10x8x128xf32>
    %38 = vector.extract_strided_slice %37 {offsets = [0, 0, 0, 0], sizes = [2, 8, 8, 128], strides = [1, 1, 1, 1]} : vector<2x10x8x128xf32> to vector<2x8x8x128xf32>
    %39 = vector.shape_cast %38 : vector<2x8x8x128xf32> to vector<128x128xf32>
    %c1_35 = arith.constant 1 : index
    %c0_36 = arith.constant 0 : index
    %c0_37 = arith.constant 0 : index
    %40 = vector.load %arg2[%c1_35, %c0_36, %c0_37] : memref<9x128x128xf32, #tpu.memory_space<vmem>>, vector<1x128x128xf32>
    %41 = vector.shape_cast %40 : vector<1x128x128xf32> to vector<128x128xf32>
    %cst_38 = arith.constant dense<0.000000e+00> : vector<128x128xf32>
    %42 = tpu.matmul %39, %41, %cst_38 {dimension_numbers = #tpu.dot_dimension_numbers<[1], [0], [0], [1], [0, 0, 1, 1], [], []>} : vector<128x128xf32>, vector<128x128xf32>, vector<128x128xf32> -> vector<128x128xf32>
    %43 = arith.addf %36, %42 : vector<128x128xf32>
    %44 = vector.extract_strided_slice %37 {offsets = [0, 1, 0, 0], sizes = [2, 8, 8, 128], strides = [1, 1, 1, 1]} : vector<2x10x8x128xf32> to vector<2x8x8x128xf32>
    %45 = vector.shape_cast %44 : vector<2x8x8x128xf32> to vector<128x128xf32>
    %c4 = arith.constant 4 : index
    %c0_39 = arith.constant 0 : index
    %c0_40 = arith.constant 0 : index
    %46 = vector.load %arg2[%c4, %c0_39, %c0_40] : memref<9x128x128xf32, #tpu.memory_space<vmem>>, vector<1x128x128xf32>
    %47 = vector.shape_cast %46 : vector<1x128x128xf32> to vector<128x128xf32>
    %cst_41 = arith.constant dense<0.000000e+00> : vector<128x128xf32>
    %48 = tpu.matmul %45, %47, %cst_41 {dimension_numbers = #tpu.dot_dimension_numbers<[1], [0], [0], [1], [0, 0, 1, 1], [], []>} : vector<128x128xf32>, vector<128x128xf32>, vector<128x128xf32> -> vector<128x128xf32>
    %49 = arith.addf %43, %48 : vector<128x128xf32>
    %50 = vector.extract_strided_slice %37 {offsets = [0, 2, 0, 0], sizes = [2, 8, 8, 128], strides = [1, 1, 1, 1]} : vector<2x10x8x128xf32> to vector<2x8x8x128xf32>
    %51 = vector.shape_cast %50 : vector<2x8x8x128xf32> to vector<128x128xf32>
    %c7 = arith.constant 7 : index
    %c0_42 = arith.constant 0 : index
    %c0_43 = arith.constant 0 : index
    %52 = vector.load %arg2[%c7, %c0_42, %c0_43] : memref<9x128x128xf32, #tpu.memory_space<vmem>>, vector<1x128x128xf32>
    %53 = vector.shape_cast %52 : vector<1x128x128xf32> to vector<128x128xf32>
    %cst_44 = arith.constant dense<0.000000e+00> : vector<128x128xf32>
    %54 = tpu.matmul %51, %53, %cst_44 {dimension_numbers = #tpu.dot_dimension_numbers<[1], [0], [0], [1], [0, 0, 1, 1], [], []>} : vector<128x128xf32>, vector<128x128xf32>, vector<128x128xf32> -> vector<128x128xf32>
    %55 = arith.addf %49, %54 : vector<128x128xf32>
    %c0_45 = arith.constant 0 : index
    %c0_46 = arith.constant 0 : index
    %c2 = arith.constant 2 : index
    %c0_47 = arith.constant 0 : index
    %56 = vector.load %arg8[%c0_45, %c0_46, %c2, %c0_47] : memref<2x10x10x128xf32, #tpu.memory_space<vmem>>, vector<2x10x8x128xf32>
    %57 = vector.extract_strided_slice %56 {offsets = [0, 0, 0, 0], sizes = [2, 8, 8, 128], strides = [1, 1, 1, 1]} : vector<2x10x8x128xf32> to vector<2x8x8x128xf32>
    %58 = vector.shape_cast %57 : vector<2x8x8x128xf32> to vector<128x128xf32>
    %c2_48 = arith.constant 2 : index
    %c0_49 = arith.constant 0 : index
    %c0_50 = arith.constant 0 : index
    %59 = vector.load %arg2[%c2_48, %c0_49, %c0_50] : memref<9x128x128xf32, #tpu.memory_space<vmem>>, vector<1x128x128xf32>
    %60 = vector.shape_cast %59 : vector<1x128x128xf32> to vector<128x128xf32>
    %cst_51 = arith.constant dense<0.000000e+00> : vector<128x128xf32>
    %61 = tpu.matmul %58, %60, %cst_51 {dimension_numbers = #tpu.dot_dimension_numbers<[1], [0], [0], [1], [0, 0, 1, 1], [], []>} : vector<128x128xf32>, vector<128x128xf32>, vector<128x128xf32> -> vector<128x128xf32>
    %62 = arith.addf %55, %61 : vector<128x128xf32>
    %63 = vector.extract_strided_slice %56 {offsets = [0, 1, 0, 0], sizes = [2, 8, 8, 128], strides = [1, 1, 1, 1]} : vector<2x10x8x128xf32> to vector<2x8x8x128xf32>
    %64 = vector.shape_cast %63 : vector<2x8x8x128xf32> to vector<128x128xf32>
    %c5 = arith.constant 5 : index
    %c0_52 = arith.constant 0 : index
    %c0_53 = arith.constant 0 : index
    %65 = vector.load %arg2[%c5, %c0_52, %c0_53] : memref<9x128x128xf32, #tpu.memory_space<vmem>>, vector<1x128x128xf32>
    %66 = vector.shape_cast %65 : vector<1x128x128xf32> to vector<128x128xf32>
    %cst_54 = arith.constant dense<0.000000e+00> : vector<128x128xf32>
    %67 = tpu.matmul %64, %66, %cst_54 {dimension_numbers = #tpu.dot_dimension_numbers<[1], [0], [0], [1], [0, 0, 1, 1], [], []>} : vector<128x128xf32>, vector<128x128xf32>, vector<128x128xf32> -> vector<128x128xf32>
    %68 = arith.addf %62, %67 : vector<128x128xf32>
    %69 = vector.extract_strided_slice %56 {offsets = [0, 2, 0, 0], sizes = [2, 8, 8, 128], strides = [1, 1, 1, 1]} : vector<2x10x8x128xf32> to vector<2x8x8x128xf32>
    %70 = vector.shape_cast %69 : vector<2x8x8x128xf32> to vector<128x128xf32>
    %c8 = arith.constant 8 : index
    %c0_55 = arith.constant 0 : index
    %c0_56 = arith.constant 0 : index
    %71 = vector.load %arg2[%c8, %c0_55, %c0_56] : memref<9x128x128xf32, #tpu.memory_space<vmem>>, vector<1x128x128xf32>
    %72 = vector.shape_cast %71 : vector<1x128x128xf32> to vector<128x128xf32>
    %cst_57 = arith.constant dense<0.000000e+00> : vector<128x128xf32>
    %73 = tpu.matmul %70, %72, %cst_57 {dimension_numbers = #tpu.dot_dimension_numbers<[1], [0], [0], [1], [0, 0, 1, 1], [], []>} : vector<128x128xf32>, vector<128x128xf32>, vector<128x128xf32> -> vector<128x128xf32>
    %74 = arith.addf %68, %73 : vector<128x128xf32>
    %c0_58 = arith.constant 0 : index
    %c0_59 = arith.constant 0 : index
    %75 = vector.load %arg5[%c0_58, %c0_59] : memref<128x128xf32, #tpu.memory_space<vmem>>, vector<128x128xf32>
    tpu.vector_store %arg5[%c0_58, %c0_59], %74 {strides = array<i32>} : memref<128x128xf32, #tpu.memory_space<vmem>>, vector<128x128xf32>,
    %76 = vector.shape_cast %74 : vector<128x128xf32> to vector<16x8x128xf32>
    %cst_60 = arith.constant dense<0.000000e+00> : vector<8x128xf32>
    %77 = vector.multi_reduction <add>, %76, %cst_60 [0] : vector<16x8x128xf32> to vector<8x128xf32>
    %c0_61 = arith.constant 0 : index
    %c0_62 = arith.constant 0 : index
    %78 = vector.load %arg6[%c0_61, %c0_62] : memref<8x128xf32, #tpu.memory_space<vmem>>, vector<8x128xf32>
    tpu.vector_store %arg6[%c0_61, %c0_62], %77 {strides = array<i32>} : memref<8x128xf32, #tpu.memory_space<vmem>>, vector<8x128xf32>,
    %79 = arith.mulf %74, %74 : vector<128x128xf32>
    %80 = vector.shape_cast %79 : vector<128x128xf32> to vector<16x8x128xf32>
    %cst_63 = arith.constant dense<0.000000e+00> : vector<8x128xf32>
    %81 = vector.multi_reduction <add>, %80, %cst_63 [0] : vector<16x8x128xf32> to vector<8x128xf32>
    %c0_64 = arith.constant 0 : index
    %c0_65 = arith.constant 0 : index
    %82 = vector.load %arg7[%c0_64, %c0_65] : memref<8x128xf32, #tpu.memory_space<vmem>>, vector<8x128xf32>
    tpu.vector_store %arg7[%c0_64, %c0_65], %81 {strides = array<i32>} : memref<8x128xf32, #tpu.memory_space<vmem>>, vector<8x128xf32>,
    return
  }
  func.func @transform_0(%arg0: i32) -> (i32, i32, i32, i32) {
    %c0_i32 = arith.constant 0 : i32
    %c0_i32_0 = arith.constant 0 : i32
    %c0_i32_1 = arith.constant 0 : i32
    %c0_i32_2 = arith.constant 0 : i32
    return %arg0, %c0_i32, %c0_i32_0, %c0_i32_1 : i32, i32, i32, i32
  }
  func.func @transform_1(%arg0: i32) -> (i32, i32, i32) {
    %c0_i32 = arith.constant 0 : i32
    %c0_i32_0 = arith.constant 0 : i32
    %c0_i32_1 = arith.constant 0 : i32
    %c0_i32_2 = arith.constant 0 : i32
    return %c0_i32, %c0_i32_0, %c0_i32_1 : i32, i32, i32
  }
  func.func @transform_2(%arg0: i32) -> (i32, i32) {
    %c0_i32 = arith.constant 0 : i32
    %c0_i32_0 = arith.constant 0 : i32
    %c0_i32_1 = arith.constant 0 : i32
    return %c0_i32, %c0_i32_0 : i32, i32
  }
  func.func @transform_3(%arg0: i32) -> (i32, i32) {
    %c0_i32 = arith.constant 0 : i32
    %c0_i32_0 = arith.constant 0 : i32
    %c0_i32_1 = arith.constant 0 : i32
    return %c0_i32, %c0_i32_0 : i32, i32
  }
  func.func @transform_4(%arg0: i32) -> (i32, i32) {
    %c0_i32 = arith.constant 0 : i32
    %c0_i32_0 = arith.constant 0 : i32
    return %arg0, %c0_i32 : i32, i32
  }
  func.func @transform_5(%arg0: i32) -> (i32, i32) {
    %c0_i32 = arith.constant 0 : i32
    %c0_i32_0 = arith.constant 0 : i32
    return %arg0, %c0_i32 : i32, i32
  }
  func.func @transform_6(%arg0: i32) -> (i32, i32) {
    %c0_i32 = arith.constant 0 : i32
    %c0_i32_0 = arith.constant 0 : i32
    return %arg0, %c0_i32 : i32, i32
  }
}

module attributes {stable_mosaic.version = 11 : i64} {
  func.func @_bn2_res_lrelu_kernel(%arg0: i32, %arg1: memref<128x128xf32, #tpu.memory_space<vmem>>, %arg2: memref<128x4xf32, #tpu.memory_space<vmem>>, %arg3: memref<4x128xf32, #tpu.memory_space<vmem>>, %arg4: memref<1x128xf32, #tpu.memory_space<vmem>>, %arg5: memref<1x128xf32, #tpu.memory_space<vmem>>, %arg6: memref<128x128xf32, #tpu.memory_space<vmem>>) attributes {dimension_semantics = [#tpu.dimension_semantics<parallel>], iteration_bounds = array<i64: 1>, scalar_prefetch = 0 : i64, scratch_operands = 0 : i64, tpu.core_type = #tpu.core_type<tc>, window_params = [{transform_indices = @transform_0, window_bounds = array<i64: 128, 128>}, {transform_indices = @transform_1, window_bounds = array<i64: 128, 4>}, {pipeline_mode = #tpu.pipeline_mode<synchronous>, transform_indices = @transform_2, window_bounds = array<i64: 4, 128>}, {pipeline_mode = #tpu.pipeline_mode<synchronous>, transform_indices = @transform_3, window_bounds = array<i64: 1, 128>}, {pipeline_mode = #tpu.pipeline_mode<synchronous>, transform_indices = @transform_4, window_bounds = array<i64: 1, 128>}, {transform_indices = @transform_5, window_bounds = array<i64: 128, 128>}]} {
    %c0 = arith.constant 0 : index
    %c0_0 = arith.constant 0 : index
    %0 = vector.load %arg1[%c0, %c0_0] : memref<128x128xf32, #tpu.memory_space<vmem>>, vector<128x128xf32>
    %c0_1 = arith.constant 0 : index
    %c0_2 = arith.constant 0 : index
    %1 = vector.load %arg4[%c0_1, %c0_2] : memref<1x128xf32, #tpu.memory_space<vmem>>, vector<1x128xf32>
    %2 = vector.broadcast %1 : vector<1x128xf32> to vector<128x128xf32>
    %3 = arith.mulf %0, %2 : vector<128x128xf32>
    %c0_3 = arith.constant 0 : index
    %c0_4 = arith.constant 0 : index
    %4 = vector.load %arg5[%c0_3, %c0_4] : memref<1x128xf32, #tpu.memory_space<vmem>>, vector<1x128xf32>
    %5 = vector.broadcast %4 : vector<1x128xf32> to vector<128x128xf32>
    %6 = arith.addf %3, %5 : vector<128x128xf32>
    %c0_5 = arith.constant 0 : index
    %c0_6 = arith.constant 0 : index
    %7 = vector.load %arg2[%c0_5, %c0_6] : memref<128x4xf32, #tpu.memory_space<vmem>>, vector<128x4xf32>
    %c0_7 = arith.constant 0 : index
    %c0_8 = arith.constant 0 : index
    %8 = vector.load %arg3[%c0_7, %c0_8] : memref<4x128xf32, #tpu.memory_space<vmem>>, vector<4x128xf32>
    %cst = arith.constant dense<0.000000e+00> : vector<128x128xf32>
    %9 = tpu.matmul %7, %8, %cst {dimension_numbers = #tpu.dot_dimension_numbers<[1], [0], [0], [1], [0, 0, 1, 1], [], []>} : vector<128x4xf32>, vector<4x128xf32>, vector<128x128xf32> -> vector<128x128xf32>
    %10 = arith.addf %6, %9 : vector<128x128xf32>
    %cst_9 = arith.constant 0.000000e+00 : f32
    %11 = vector.broadcast %cst_9 : f32 to vector<128x128xf32>
    %12 = arith.cmpf oge, %10, %11 : vector<128x128xf32>
    %cst_10 = arith.constant 2.000000e-01 : f32
    %13 = vector.broadcast %cst_10 : f32 to vector<128x128xf32>
    %14 = arith.mulf %13, %10 : vector<128x128xf32>
    %15 = arith.select %12, %10, %14 : vector<128x128xi1>, vector<128x128xf32>
    %c0_11 = arith.constant 0 : index
    %c0_12 = arith.constant 0 : index
    %16 = vector.load %arg6[%c0_11, %c0_12] : memref<128x128xf32, #tpu.memory_space<vmem>>, vector<128x128xf32>
    tpu.vector_store %arg6[%c0_11, %c0_12], %15 {strides = array<i32>} : memref<128x128xf32, #tpu.memory_space<vmem>>, vector<128x128xf32>,
    return
  }
  func.func @transform_0(%arg0: i32) -> (i32, i32) {
    %c0_i32 = arith.constant 0 : i32
    %c0_i32_0 = arith.constant 0 : i32
    return %arg0, %c0_i32 : i32, i32
  }
  func.func @transform_1(%arg0: i32) -> (i32, i32) {
    %c0_i32 = arith.constant 0 : i32
    %c0_i32_0 = arith.constant 0 : i32
    return %arg0, %c0_i32 : i32, i32
  }
  func.func @transform_2(%arg0: i32) -> (i32, i32) {
    %c0_i32 = arith.constant 0 : i32
    %c0_i32_0 = arith.constant 0 : i32
    %c0_i32_1 = arith.constant 0 : i32
    return %c0_i32, %c0_i32_0 : i32, i32
  }
  func.func @transform_3(%arg0: i32) -> (i32, i32) {
    %c0_i32 = arith.constant 0 : i32
    %c0_i32_0 = arith.constant 0 : i32
    %c0_i32_1 = arith.constant 0 : i32
    return %c0_i32, %c0_i32_0 : i32, i32
  }
  func.func @transform_4(%arg0: i32) -> (i32, i32) {
    %c0_i32 = arith.constant 0 : i32
    %c0_i32_0 = arith.constant 0 : i32
    %c0_i32_1 = arith.constant 0 : i32
    return %c0_i32, %c0_i32_0 : i32, i32
  }
  func.func @transform_5(%arg0: i32) -> (i32, i32) {
    %c0_i32 = arith.constant 0 : i32
    %c0_i32_0 = arith.constant 0 : i32
    return %arg0, %c0_i32 : i32, i32
  }
}

</mosaic_0001>

<llo_original>
// kernel: res_down_block.5
$region0: #{res_down_block.5}
  #allocation0 [shape = 'u32[]', space=smem, size = 0x4, offset = 0x4, fixed_abs, tag = 'smem constant byte address 0x4 - core index']
  #allocation1 [shape = 'u32[144,128]{1,0:T(1,128)}', space=vmem, size = 0x12000, scoped, tag = 'internal scratch']
  %s0 = inlined_call_operand.vmem [shape: f32[128,128], index: 0, kind: input, shape index: {}]
  %s1 = inlined_call_operand.vmem [shape: f32[128,4], index: 1, kind: input, shape index: {}]
  %s2 = inlined_call_operand.vmem [shape: f32[4,128], index: 2, kind: input, shape index: {}]
  %s3 = inlined_call_operand.vmem [shape: f32[1,128], index: 3, kind: input, shape index: {}]
  %s4 = inlined_call_operand.vmem [shape: f32[1,128], index: 4, kind: input, shape index: {}]
  %s5 = inlined_call_operand.vmem [shape: f32[128,128], index: 5, kind: output, shape index: {}]
  %s6 = sld [smem:[#allocation0]]
  $region30: #{res_down_block.5} parent=0
    _
  %s8 = ssub.s32 1, %s6
  %s9 = scalar_select 0, %s8, %s6
  // Predicated region
  $region2: #{res_down_block.5} parent=0 // pred_check
    _
  $region3: #{res_down_block.5} parent=0 // pred_check_branch
    %11 = sbr.rel (0) target = $region5
  $region4: #{res_down_block.5} parent=0 // pred_region
    _
  $region5: #{res_down_block.5} parent=0 // pred_fallthru
    _
  // Predicated region
  $region6: #{res_down_block.5} parent=0 // pred_check
    _
  $region7: #{res_down_block.5} parent=0 // pred_check_branch
    %13 = sbr.rel (0) target = $region9
  $region8: #{res_down_block.5} parent=0 // pred_region
    _
  $region9: #{res_down_block.5} parent=0 // pred_fallthru
    _
  // Predicated region
  $region10: #{res_down_block.5} parent=0 // pred_check
    _
  $region11: #{res_down_block.5} parent=0 // pred_check_branch
    %15 = sbr.rel (0) target = $region13
  $region12: #{res_down_block.5} parent=0 // pred_region
    _
  $region13: #{res_down_block.5} parent=0 // pred_fallthru
    _
  // Predicated region
  $region14: #{res_down_block.5} parent=0 // pred_check
    _
  $region15: #{res_down_block.5} parent=0 // pred_check_branch
    %17 = sbr.rel (0) target = $region17
  $region16: #{res_down_block.5} parent=0 // pred_region
    _
  $region17: #{res_down_block.5} parent=0 // pred_fallthru
    _
  // Predicated region
  $region18: #{res_down_block.5} parent=0 // pred_check
    _
  $region19: #{res_down_block.5} parent=0 // pred_check_branch
    %19 = sbr.rel (0) target = $region21
  $region20: #{res_down_block.5} parent=0 // pred_region
    _
  $region21: #{res_down_block.5} parent=0 // pred_fallthru
    _
  %v20 = vld [vmem:[%s0] sm:$0xff]
  %v21 = vld [vmem:[%s0 + $0x8] sm:$0xff]
  %v22 = vld [vmem:[%s0 + $0x10] sm:$0xff]
  %v23 = vld [vmem:[%s0 + $0x18] sm:$0xff]
  %v24 = vld [vmem:[%s0 + $0x20] sm:$0xff]
  %v25 = vld [vmem:[%s0 + $0x28] sm:$0xff]
  %v26 = vld [vmem:[%s0 + $0x30] sm:$0xff]
  %v27 = vld [vmem:[%s0 + $0x38] sm:$0xff]
  %v28 = vld [vmem:[%s0 + $0x40] sm:$0xff]
  %v29 = vld [vmem:[%s0 + $0x48] sm:$0xff]
  %v30 = vld [vmem:[%s0 + $0x50] sm:$0xff]
  %v31 = vld [vmem:[%s0 + $0x58] sm:$0xff]
  %v32 = vld [vmem:[%s0 + $0x60] sm:$0xff]
  %v33 = vld [vmem:[%s0 + $0x68] sm:$0xff]
  %v34 = vld [vmem:[%s0 + $0x70] sm:$0xff]
  %v35 = vld [vmem:[%s0 + $0x78] sm:$0xff]
  %v36 = vld [vmem:[%s3] sm:$0x1]
  %v38 = vlaneseq
  %v39 = vshrl.u32 %v38, 7
  %v40 = vsub.s32 0, %v39
  %v41 = vrot.slane %v36, %v40
  %v43 = vmul.f32 %v20, %v41
  %v44 = vmul.f32 %v21, %v41
  %v45 = vmul.f32 %v22, %v41
  %v46 = vmul.f32 %v23, %v41
  %v47 = vmul.f32 %v24, %v41
  %v48 = vmul.f32 %v25, %v41
  %v49 = vmul.f32 %v26, %v41
  %v50 = vmul.f32 %v27, %v41
  %v51 = vmul.f32 %v28, %v41
  %v52 = vmul.f32 %v29, %v41
  %v53 = vmul.f32 %v30, %v41
  %v54 = vmul.f32 %v31, %v41
  %v55 = vmul.f32 %v32, %v41
  %v56 = vmul.f32 %v33, %v41
  %v57 = vmul.f32 %v34, %v41
  %v58 = vmul.f32 %v35, %v41
  %v59 = vld [vmem:[%s4] sm:$0x1]
  %v61 = vlaneseq
  %v62 = vshrl.u32 %v61, 7
  %v63 = vsub.s32 0, %v62
  %v64 = vrot.slane %v59, %v63
  %v66 = vadd.f32 %v43, %v64
  %v67 = vadd.f32 %v44, %v64
  %v68 = vadd.f32 %v45, %v64
  %v69 = vadd.f32 %v46, %v64
  %v70 = vadd.f32 %v47, %v64
  %v71 = vadd.f32 %v48, %v64
  %v72 = vadd.f32 %v49, %v64
  %v73 = vadd.f32 %v50, %v64
  %v74 = vadd.f32 %v51, %v64
  %v75 = vadd.f32 %v52, %v64
  %v76 = vadd.f32 %v53, %v64
  %v77 = vadd.f32 %v54, %v64
  %v78 = vadd.f32 %v55, %v64
  %v79 = vadd.f32 %v56, %v64
  %v80 = vadd.f32 %v57, %v64
  %v81 = vadd.f32 %v58, %v64
  %v82 = vld [vmem:[%s1] sm:$0xff]
  %v83 = vld [vmem:[%s1 + $0x8] sm:$0xff]
  %v84 = vld [vmem:[%s1 + $0x10] sm:$0xff]
  %v85 = vld [vmem:[%s1 + $0x18] sm:$0xff]
  %v86 = vld [vmem:[%s1 + $0x20] sm:$0xff]
  %v87 = vld [vmem:[%s1 + $0x28] sm:$0xff]
  %v88 = vld [vmem:[%s1 + $0x30] sm:$0xff]
  %v89 = vld [vmem:[%s1 + $0x38] sm:$0xff]
  %v90 = vld [vmem:[%s1 + $0x40] sm:$0xff]
  %v91 = vld [vmem:[%s1 + $0x48] sm:$0xff]
  %v92 = vld [vmem:[%s1 + $0x50] sm:$0xff]
  %v93 = vld [vmem:[%s1 + $0x58] sm:$0xff]
  %v94 = vld [vmem:[%s1 + $0x60] sm:$0xff]
  %v95 = vld [vmem:[%s1 + $0x68] sm:$0xff]
  %v96 = vld [vmem:[%s1 + $0x70] sm:$0xff]
  %v97 = vld [vmem:[%s1 + $0x78] sm:$0xff]
  %v98 = vld [vmem:[%s2] sm:$0xf]
  %vm99 = vcmask 31744
  %v101 = vsel %vm99, %v82, 0
  %v104 = vsel %vm99, %v83, 0
  %v107 = vsel %vm99, %v84, 0
  %v110 = vsel %vm99, %v85, 0
  %v113 = vsel %vm99, %v86, 0
  %v116 = vsel %vm99, %v87, 0
  %v119 = vsel %vm99, %v88, 0
  %v122 = vsel %vm99, %v89, 0
  %v125 = vsel %vm99, %v90, 0
  %v128 = vsel %vm99, %v91, 0
  %v131 = vsel %vm99, %v92, 0
  %v134 = vsel %vm99, %v93, 0
  %v137 = vsel %vm99, %v94, 0
  %v140 = vsel %vm99, %v95, 0
  %v143 = vsel %vm99, %v96, 0
  %v146 = vsel %vm99, %v97, 0
  %vm148 = vcmask 1043456
  %v150 = vsel %vm148, %v98, 0
  %152 = vmatprep.subr.mxu0 0.0
  %153 = vmatpush1.msra.mxu0 %v150
  %154 = vmatprep.subr.mxu0 0.0
  %155 = vmatpush1.msra.mxu0 0.0
  %156 = vmatprep.subr.mxu0 0.0
  %157 = vmatpush1.msra.mxu0 0.0
  %158 = vmatprep.subr.mxu0 0.0
  %159 = vmatpush1.msra.mxu0 0.0
  %160 = vmatprep.subr.mxu0 0.0
  %161 = vmatpush1.msra.mxu0 0.0
  %162 = vmatprep.subr.mxu0 0.0
  %163 = vmatpush1.msra.mxu0 0.0
  %164 = vmatprep.subr.mxu0 0.0
  %165 = vmatpush1.msra.mxu0 0.0
  %166 = vmatprep.subr.mxu0 0.0
  %167 = vmatpush1.msra.mxu0 0.0
  %168 = vmatprep.subr.mxu0 0.0
  %169 = vmatpush1.msra.mxu0 0.0
  %170 = vmatprep.subr.mxu0 0.0
  %171 = vmatpush1.msra.mxu0 0.0
  %172 = vmatprep.subr.mxu0 0.0
  %173 = vmatpush1.msra.mxu0 0.0
  %174 = vmatprep.subr.mxu0 0.0
  %175 = vmatpush1.msra.mxu0 0.0
  %176 = vmatprep.subr.mxu0 0.0
  %177 = vmatpush1.msra.mxu0 0.0
  %178 = vmatprep.subr.mxu0 0.0
  %179 = vmatpush1.msra.mxu0 0.0
  %180 = vmatprep.subr.mxu0 0.0
  %181 = vmatpush1.msra.mxu0 0.0
  %182 = vmatprep.subr.mxu0 0.0
  %183 = vmatpush1.msra.mxu0 0.0
  %184 = vmatprep.subr.mxu0 0.0
  %185 = vmatpush1.msra.mxu0 0.0
  %186 = vmatprep.subr.mxu0 0.0
  %187 = vmatpush1.msra.mxu0 0.0
  %188 = vmatprep.subr.mxu0 0.0
  %189 = vmatpush1.msra.mxu0 0.0
  %190 = vmatprep.subr.mxu0 0.0
  %191 = vmatpush1.msra.mxu0 0.0
  %192 = vmatprep.subr.mxu0 0.0
  %193 = vmatpush1.msra.mxu0 0.0
  %194 = vmatprep.subr.mxu0 0.0
  %195 = vmatpush1.msra.mxu0 0.0
  %196 = vmatprep.subr.mxu0 0.0
  %197 = vmatpush1.msra.mxu0 0.0
  %198 = vmatprep.subr.mxu0 0.0
  %199 = vmatpush1.msra.mxu0 0.0
  %200 = vmatprep.subr.mxu0 0.0
  %201 = vmatpush1.msra.mxu0 0.0
  %202 = vmatprep.subr.mxu0 0.0
  %203 = vmatpush1.msra.mxu0 0.0
  %204 = vmatprep.subr.mxu0 0.0
  %205 = vmatpush1.msra.mxu0 0.0
  %206 = vmatprep.subr.mxu0 0.0
  %207 = vmatpush1.msra.mxu0 0.0
  %208 = vmatprep.subr.mxu0 0.0
  %209 = vmatpush1.msra.mxu0 0.0
  %210 = vmatprep.subr.mxu0 0.0
  %211 = vmatpush1.msra.mxu0 0.0
  %212 = vmatprep.subr.mxu0 0.0
  %213 = vmatpush1.msra.mxu0 0.0
  %214 = vmatprep.subr.mxu0 0.0
  %215 = vmatpush1.msra.mxu0 0.0
  %216 = vmatprep.mubr.f32.mxu0 0.0
  %217 = vmatmul.mubr.f32.gmra.mrb[0].mxu0 %v101
  %v218 = vpop.f32.mrb[0].mxu0
  %v219 = vadd.f32 0.0, %v218
  %v220 = vpop.f32.mrb[0].mxu0
  %221 = vmatprep.mubr.f32.mxu0 0.0
  %222 = vmatmul.mubr.f32.gmra.mrb[0].mxu0 %v104
  %v223 = vpop.f32.mrb[0].mxu0
  %v224 = vadd.f32 0.0, %v223
  %v225 = vpop.f32.mrb[0].mxu0
  %226 = vmatprep.mubr.f32.mxu0 0.0
  %227 = vmatmul.mubr.f32.gmra.mrb[0].mxu0 %v107
  %v228 = vpop.f32.mrb[0].mxu0
  %v229 = vadd.f32 0.0, %v228
  %v230 = vpop.f32.mrb[0].mxu0
  %231 = vmatprep.mubr.f32.mxu0 0.0
  %232 = vmatmul.mubr.f32.gmra.mrb[0].mxu0 %v110
  %v233 = vpop.f32.mrb[0].mxu0
  %v234 = vadd.f32 0.0, %v233
  %v235 = vpop.f32.mrb[0].mxu0
  %236 = vmatprep.mubr.f32.mxu0 0.0
  %237 = vmatmul.mubr.f32.gmra.mrb[0].mxu0 %v113
  %v238 = vpop.f32.mrb[0].mxu0
  %v239 = vadd.f32 0.0, %v238
  %v240 = vpop.f32.mrb[0].mxu0
  %241 = vmatprep.mubr.f32.mxu0 0.0
  %242 = vmatmul.mubr.f32.gmra.mrb[0].mxu0 %v116
  %v243 = vpop.f32.mrb[0].mxu0
  %v244 = vadd.f32 0.0, %v243
  %v245 = vpop.f32.mrb[0].mxu0
  %246 = vmatprep.mubr.f32.mxu0 0.0
  %247 = vmatmul.mubr.f32.gmra.mrb[0].mxu0 %v119
  %v248 = vpop.f32.mrb[0].mxu0
  %v249 = vadd.f32 0.0, %v248
  %v250 = vpop.f32.mrb[0].mxu0
  %251 = vmatprep.mubr.f32.mxu0 0.0
  %252 = vmatmul.mubr.f32.gmra.mrb[0].mxu0 %v122
  %v253 = vpop.f32.mrb[0].mxu0
  %v254 = vadd.f32 0.0, %v253
  %v255 = vpop.f32.mrb[0].mxu0
  %256 = vmatprep.mubr.f32.mxu0 0.0
  %257 = vmatmul.mubr.f32.gmra.mrb[0].mxu0 %v125
  %v258 = vpop.f32.mrb[0].mxu0
  %v259 = vadd.f32 0.0, %v258
  %v260 = vpop.f32.mrb[0].mxu0
  %261 = vmatprep.mubr.f32.mxu0 0.0
  %262 = vmatmul.mubr.f32.gmra.mrb[0].mxu0 %v128
  %v263 = vpop.f32.mrb[0].mxu0
  %v264 = vadd.f32 0.0, %v263
  %v265 = vpop.f32.mrb[0].mxu0
  %266 = vmatprep.mubr.f32.mxu0 0.0
  %267 = vmatmul.mubr.f32.gmra.mrb[0].mxu0 %v131
  %v268 = vpop.f32.mrb[0].mxu0
  %v269 = vadd.f32 0.0, %v268
  %v270 = vpop.f32.mrb[0].mxu0
  %271 = vmatprep.mubr.f32.mxu0 0.0
  %272 = vmatmul.mubr.f32.gmra.mrb[0].mxu0 %v134
  %v273 = vpop.f32.mrb[0].mxu0
  %v274 = vadd.f32 0.0, %v273
  %v275 = vpop.f32.mrb[0].mxu0
  %276 = vmatprep.mubr.f32.mxu0 0.0
  %277 = vmatmul.mubr.f32.gmra.mrb[0].mxu0 %v137
  %v278 = vpop.f32.mrb[0].mxu0
  %v279 = vadd.f32 0.0, %v278
  %v280 = vpop.f32.mrb[0].mxu0
  %281 = vmatprep.mubr.f32.mxu0 0.0
  %282 = vmatmul.mubr.f32.gmra.mrb[0].mxu0 %v140
  %v283 = vpop.f32.mrb[0].mxu0
  %v284 = vadd.f32 0.0, %v283
  %v285 = vpop.f32.mrb[0].mxu0
  %286 = vmatprep.mubr.f32.mxu0 0.0
  %287 = vmatmul.mubr.f32.gmra.mrb[0].mxu0 %v143
  %v288 = vpop.f32.mrb[0].mxu0
  %v289 = vadd.f32 0.0, %v288
  %v290 = vpop.f32.mrb[0].mxu0
  %291 = vmatprep.mubr.f32.mxu0 0.0
  %292 = vmatmul.mubr.f32.gmra.mrb[0].mxu0 %v146
  %v293 = vpop.f32.mrb[0].mxu0
  %v294 = vadd.f32 0.0, %v293
  %v295 = vpop.f32.mrb[0].mxu0
  %296 = vdwg.mxu0
  %v297 = vadd.f32 %v66, %v219
  %v298 = vadd.f32 %v67, %v224
  %v299 = vadd.f32 %v68, %v229
  %v300 = vadd.f32 %v69, %v234
  %v301 = vadd.f32 %v70, %v239
  %v302 = vadd.f32 %v71, %v244
  %v303 = vadd.f32 %v72, %v249
  %v304 = vadd.f32 %v73, %v254
  %v305 = vadd.f32 %v74, %v259
  %v306 = vadd.f32 %v75, %v264
  %v307 = vadd.f32 %v76, %v269
  %v308 = vadd.f32 %v77, %v274
  %v309 = vadd.f32 %v78, %v279
  %v310 = vadd.f32 %v79, %v284
  %v311 = vadd.f32 %v80, %v289
  %v312 = vadd.f32 %v81, %v294
  %vm313 = vcmp.ge.f32.partialorder %v297, 0.0
  %vm314 = vcmp.ge.f32.partialorder %v298, 0.0
  %vm315 = vcmp.ge.f32.partialorder %v299, 0.0
  %vm316 = vcmp.ge.f32.partialorder %v300, 0.0
  %vm317 = vcmp.ge.f32.partialorder %v301, 0.0
  %vm318 = vcmp.ge.f32.partialorder %v302, 0.0
  %vm319 = vcmp.ge.f32.partialorder %v303, 0.0
  %vm320 = vcmp.ge.f32.partialorder %v304, 0.0
  %vm321 = vcmp.ge.f32.partialorder %v305, 0.0
  %vm322 = vcmp.ge.f32.partialorder %v306, 0.0
  %vm323 = vcmp.ge.f32.partialorder %v307, 0.0
  %vm324 = vcmp.ge.f32.partialorder %v308, 0.0
  %vm325 = vcmp.ge.f32.partialorder %v309, 0.0
  %vm326 = vcmp.ge.f32.partialorder %v310, 0.0
  %vm327 = vcmp.ge.f32.partialorder %v311, 0.0
  %vm328 = vcmp.ge.f32.partialorder %v312, 0.0
  %v329 = vmul.f32 %v297, 0.2
  %v330 = vmul.f32 %v298, 0.2
  %v331 = vmul.f32 %v299, 0.2
  %v332 = vmul.f32 %v300, 0.2
  %v333 = vmul.f32 %v301, 0.2
  %v334 = vmul.f32 %v302, 0.2
  %v335 = vmul.f32 %v303, 0.2
  %v336 = vmul.f32 %v304, 0.2
  %v337 = vmul.f32 %v305, 0.2
  %v338 = vmul.f32 %v306, 0.2
  %v339 = vmul.f32 %v307, 0.2
  %v340 = vmul.f32 %v308, 0.2
  %v341 = vmul.f32 %v309, 0.2
  %v342 = vmul.f32 %v310, 0.2
  %v343 = vmul.f32 %v311, 0.2
  %v344 = vmul.f32 %v312, 0.2
  %v345 = vsel %vm313, %v297, %v329
  %v346 = vsel %vm314, %v298, %v330
  %v347 = vsel %vm315, %v299, %v331
  %v348 = vsel %vm316, %v300, %v332
  %v349 = vsel %vm317, %v301, %v333
  %v350 = vsel %vm318, %v302, %v334
  %v351 = vsel %vm319, %v303, %v335
  %v352 = vsel %vm320, %v304, %v336
  %v353 = vsel %vm321, %v305, %v337
  %v354 = vsel %vm322, %v306, %v338
  %v355 = vsel %vm323, %v307, %v339
  %v356 = vsel %vm324, %v308, %v340
  %v357 = vsel %vm325, %v309, %v341
  %v358 = vsel %vm326, %v310, %v342
  %v359 = vsel %vm327, %v311, %v343
  %v360 = vsel %vm328, %v312, %v344
  %361 = vst [vmem:[%s5] sm:$0xff] %v345
  %362 = vst [vmem:[%s5 + $0x8] sm:$0xff] %v346
  %363 = vst [vmem:[%s5 + $0x10] sm:$0xff] %v347
  %364 = vst [vmem:[%s5 + $0x18] sm:$0xff] %v348
  %365 = vst [vmem:[%s5 + $0x20] sm:$0xff] %v349
  %366 = vst [vmem:[%s5 + $0x28] sm:$0xff] %v350
  %367 = vst [vmem:[%s5 + $0x30] sm:$0xff] %v351
  %368 = vst [vmem:[%s5 + $0x38] sm:$0xff] %v352
  %369 = vst [vmem:[%s5 + $0x40] sm:$0xff] %v353
  %370 = vst [vmem:[%s5 + $0x48] sm:$0xff] %v354
  %371 = vst [vmem:[%s5 + $0x50] sm:$0xff] %v355
  %372 = vst [vmem:[%s5 + $0x58] sm:$0xff] %v356
  %373 = vst [vmem:[%s5 + $0x60] sm:$0xff] %v357
  %374 = vst [vmem:[%s5 + $0x68] sm:$0xff] %v358
  %375 = vst [vmem:[%s5 + $0x70] sm:$0xff] %v359
  %376 = vst [vmem:[%s5 + $0x78] sm:$0xff] %v360
  // Predicated region
  $region22: #{res_down_block.5} parent=0 // pred_check
    _
  $region23: #{res_down_block.5} parent=0 // pred_check_branch
    %378 = sbr.rel (0) target = $region25
  $region24: #{res_down_block.5} parent=0 // pred_region
    _
  $region25: #{res_down_block.5} parent=0 // pred_fallthru
    _
  // Predicated region
  $region26: #{res_down_block.5} parent=0 // pred_check
    _
  $region27: #{res_down_block.5} parent=0 // pred_check_branch
    %380 = sbr.rel (0) target = $region29
  $region28: #{res_down_block.5} parent=0 // pred_region
    _
  $region29: #{res_down_block.5} parent=0 // pred_fallthru
    _

// kernel: res_down_block.3
$region0: #{res_down_block.3}
  #allocation0 [shape = 'u32[]', space=smem, size = 0x4, offset = 0x4, fixed_abs, tag = 'smem constant byte address 0x4 - core index']
  #allocation1 [shape = 'u32[144,128]{1,0:T(1,128)}', space=vmem, size = 0x12000, scoped, tag = 'internal scratch']
  %s0 = inlined_call_operand.vmem [shape: f32[2,9,9,16], index: 0, kind: input, shape index: {}]
  %s1 = inlined_call_operand.vmem [shape: f32[4,16,128], index: 1, kind: input, shape index: {}]
  %s2 = inlined_call_operand.vmem [shape: f32[2,8,8,128], index: 2, kind: output, shape index: {0}]
  %s3 = inlined_call_operand.vmem [shape: f32[8,128], index: 3, kind: output, shape index: {1}]
  %s4 = inlined_call_operand.vmem [shape: f32[8,128], index: 4, kind: output, shape index: {2}]
  %5 = xla_tuple %s2, %s3, %s4
  %s6 = sld [smem:[#allocation0]]
  $region34: #{res_down_block.3} parent=0
    _
  %s8 = ssub.s32 1, %s6
  %s9 = scalar_select 0, %s8, %s6
  // Predicated region
  $region2: #{res_down_block.3} parent=0 // pred_check
    _
  $region3: #{res_down_block.3} parent=0 // pred_check_branch
    %11 = sbr.rel (0) target = $region5
  $region4: #{res_down_block.3} parent=0 // pred_region
    _
  $region5: #{res_down_block.3} parent=0 // pred_fallthru
    _
  // Predicated region
  $region6: #{res_down_block.3} parent=0 // pred_check
    _
  $region7: #{res_down_block.3} parent=0 // pred_check_branch
    %13 = sbr.rel (0) target = $region9
  $region8: #{res_down_block.3} parent=0 // pred_region
    _
  $region9: #{res_down_block.3} parent=0 // pred_fallthru
    _
  %v14 = vld [vmem:[%s0] sm:$0xff]
  %v15 = vld [vmem:[%s0 + $0x8] sm:$0x1]
  %v16 = vld [vmem:[%s0 + $0x10] sm:$0xff]
  %v17 = vld [vmem:[%s0 + $0x18] sm:$0x1]
  %v18 = vld [vmem:[%s0 + $0x20] sm:$0xff]
  %v19 = vld [vmem:[%s0 + $0x28] sm:$0x1]
  %v20 = vld [vmem:[%s0 + $0x30] sm:$0xff]
  %v21 = vld [vmem:[%s0 + $0x38] sm:$0x1]
  %v22 = vld [vmem:[%s0 + $0x40] sm:$0xff]
  %v23 = vld [vmem:[%s0 + $0x48] sm:$0x1]
  %v24 = vld [vmem:[%s0 + $0x50] sm:$0xff]
  %v25 = vld [vmem:[%s0 + $0x58] sm:$0x1]
  %v26 = vld [vmem:[%s0 + $0x60] sm:$0xff]
  %v27 = vld [vmem:[%s0 + $0x68] sm:$0x1]
  %v28 = vld [vmem:[%s0 + $0x70] sm:$0xff]
  %v29 = vld [vmem:[%s0 + $0x78] sm:$0x1]
  %v30 = vld [vmem:[%s0 + $0x80] sm:$0xff]
  %v31 = vld [vmem:[%s0 + $0x88] sm:$0x1]
  %v32 = vld [vmem:[%s0 + $0x90] sm:$0xff]
  %v33 = vld [vmem:[%s0 + $0x98] sm:$0x1]
  %v34 = vld [vmem:[%s0 + $0xa0] sm:$0xff]
  %v35 = vld [vmem:[%s0 + $0xa8] sm:$0x1]
  %v36 = vld [vmem:[%s0 + $0xb0] sm:$0xff]
  %v37 = vld [vmem:[%s0 + $0xb8] sm:$0x1]
  %v38 = vld [vmem:[%s0 + $0xc0] sm:$0xff]
  %v39 = vld [vmem:[%s0 + $0xc8] sm:$0x1]
  %v40 = vld [vmem:[%s0 + $0xd0] sm:$0xff]
  %v41 = vld [vmem:[%s0 + $0xd8] sm:$0x1]
  %v42 = vld [vmem:[%s0 + $0xe0] sm:$0xff]
  %v43 = vld [vmem:[%s0 + $0xe8] sm:$0x1]
  %v44 = vld [vmem:[%s0 + $0xf0] sm:$0xff]
  %v45 = vld [vmem:[%s0 + $0xf8] sm:$0x1]
  %v46 = vld [vmem:[%s0 + $0x100] sm:$0xff]
  %v47 = vld [vmem:[%s0 + $0x108] sm:$0x1]
  %v48 = vld [vmem:[%s0 + $0x110] sm:$0xff]
  %v49 = vld [vmem:[%s0 + $0x118] sm:$0x1]
  %v50 = vld [vmem:[%s1] sm:$0xff]
  %v51 = vld [vmem:[%s1 + $0x8] sm:$0xff]
  %s52 = scalar_lea.vmem %s1, 32
  %v53 = vld [vmem:[%s52] sm:$0xff]
  %v54 = vld [vmem:[%s52 + $0x8] sm:$0xff]
  %vm55 = vcmask 130048
  %v57 = vsel %vm55, %v16, 0
  %v60 = vsel %vm55, %v18, 0
  %v63 = vsel %vm55, %v20, 0
  %v66 = vsel %vm55, %v22, 0
  %v69 = vsel %vm55, %v24, 0
  %v72 = vsel %vm55, %v26, 0
  %v75 = vsel %vm55, %v28, 0
  %v78 = vsel %vm55, %v30, 0
  %v81 = vsel %vm55, %v34, 0
  %v84 = vsel %vm55, %v36, 0
  %v87 = vsel %vm55, %v38, 0
  %v90 = vsel %vm55, %v40, 0
  %v93 = vsel %vm55, %v42, 0
  %v96 = vsel %vm55, %v44, 0
  %v99 = vsel %vm55, %v46, 0
  %v102 = vsel %vm55, %v48, 0
  %104 = vmatprep.subr.mxu0 0.0
  %105 = vmatpush1.msra.mxu0 %v53
  %106 = vmatprep.subr.mxu0 0.0
  %107 = vmatpush1.msra.mxu0 %v54
  %108 = vmatprep.subr.mxu0 0.0
  %109 = vmatpush1.msra.mxu0 0.0
  %110 = vmatprep.subr.mxu0 0.0
  %111 = vmatpush1.msra.mxu0 0.0
  %112 = vmatprep.subr.mxu0 0.0
  %113 = vmatpush1.msra.mxu0 0.0
  %114 = vmatprep.subr.mxu0 0.0
  %115 = vmatpush1.msra.mxu0 0.0
  %116 = vmatprep.subr.mxu0 0.0
  %117 = vmatpush1.msra.mxu0 0.0
  %118 = vmatprep.subr.mxu0 0.0
  %119 = vmatpush1.msra.mxu0 0.0
  %120 = vmatprep.subr.mxu0 0.0
  %121 = vmatpush1.msra.mxu0 0.0
  %122 = vmatprep.subr.mxu0 0.0
  %123 = vmatpush1.msra.mxu0 0.0
  %124 = vmatprep.subr.mxu0 0.0
  %125 = vmatpush1.msra.mxu0 0.0
  %126 = vmatprep.subr.mxu0 0.0
  %127 = vmatpush1.msra.mxu0 0.0
  %128 = vmatprep.subr.mxu0 0.0
  %129 = vmatpush1.msra.mxu0 0.0
  %130 = vmatprep.subr.mxu0 0.0
  %131 = vmatpush1.msra.mxu0 0.0
  %132 = vmatprep.subr.mxu0 0.0
  %133 = vmatpush1.msra.mxu0 0.0
  %134 = vmatprep.subr.mxu0 0.0
  %135 = vmatpush1.msra.mxu0 0.0
  %136 = vmatprep.subr.mxu0 0.0
  %137 = vmatpush1.msra.mxu0 0.0
  %138 = vmatprep.subr.mxu0 0.0
  %139 = vmatpush1.msra.mxu0 0.0
  %140 = vmatprep.subr.mxu0 0.0
  %141 = vmatpush1.msra.mxu0 0.0
  %142 = vmatprep.subr.mxu0 0.0
  %143 = vmatpush1.msra.mxu0 0.0
  %144 = vmatprep.subr.mxu0 0.0
  %145 = vmatpush1.msra.mxu0 0.0
  %146 = vmatprep.subr.mxu0 0.0
  %147 = vmatpush1.msra.mxu0 0.0
  %148 = vmatprep.subr.mxu0 0.0
  %149 = vmatpush1.msra.mxu0 0.0
  %150 = vmatprep.subr.mxu0 0.0
  %151 = vmatpush1.msra.mxu0 0.0
  %152 = vmatprep.subr.mxu0 0.0
  %153 = vmatpush1.msra.mxu0 0.0
  %154 = vmatprep.subr.mxu0 0.0
  %155 = vmatpush1.msra.mxu0 0.0
  %156 = vmatprep.subr.mxu0 0.0
  %157 = vmatpush1.msra.mxu0 0.0
  %158 = vmatprep.subr.mxu0 0.0
  %159 = vmatpush1.msra.mxu0 0.0
  %160 = vmatprep.subr.mxu0 0.0
  %161 = vmatpush1.msra.mxu0 0.0
  %162 = vmatprep.subr.mxu0 0.0
  %163 = vmatpush1.msra.mxu0 0.0
  %164 = vmatprep.subr.mxu0 0.0
  %165 = vmatpush1.msra.mxu0 0.0
  %166 = vmatprep.subr.mxu0 0.0
  %167 = vmatpush1.msra.mxu0 0.0
  %168 = vmatprep.mubr.f32.mxu0 0.0
  %169 = vmatmul.mubr.f32.gmra.mrb[0].mxu0 %v57
  %v170 = vpop.f32.mrb[0].mxu0
  %v171 = vadd.f32 0.0, %v170
  %v172 = vpop.f32.mrb[0].mxu0
  %173 = vmatprep.mubr.f32.mxu0 0.0
  %174 = vmatmul.mubr.f32.gmra.mrb[0].mxu0 %v60
  %v175 = vpop.f32.mrb[0].mxu0
  %v176 = vadd.f32 0.0, %v175
  %v177 = vpop.f32.mrb[0].mxu0
  %178 = vmatprep.mubr.f32.mxu0 0.0
  %179 = vmatmul.mubr.f32.gmra.mrb[0].mxu0 %v63
  %v180 = vpop.f32.mrb[0].mxu0
  %v181 = vadd.f32 0.0, %v180
  %v182 = vpop.f32.mrb[0].mxu0
  %183 = vmatprep.mubr.f32.mxu0 0.0
  %184 = vmatmul.mubr.f32.gmra.mrb[0].mxu0 %v66
  %v185 = vpop.f32.mrb[0].mxu0
  %v186 = vadd.f32 0.0, %v185
  %v187 = vpop.f32.mrb[0].mxu0
  %188 = vmatprep.mubr.f32.mxu0 0.0
  %189 = vmatmul.mubr.f32.gmra.mrb[0].mxu0 %v69
  %v190 = vpop.f32.mrb[0].mxu0
  %v191 = vadd.f32 0.0, %v190
  %v192 = vpop.f32.mrb[0].mxu0
  %193 = vmatprep.mubr.f32.mxu0 0.0
  %194 = vmatmul.mubr.f32.gmra.mrb[0].mxu0 %v72
  %v195 = vpop.f32.mrb[0].mxu0
  %v196 = vadd.f32 0.0, %v195
  %v197 = vpop.f32.mrb[0].mxu0
  %198 = vmatprep.mubr.f32.mxu0 0.0
  %199 = vmatmul.mubr.f32.gmra.mrb[0].mxu0 %v75
  %v200 = vpop.f32.mrb[0].mxu0
  %v201 = vadd.f32 0.0, %v200
  %v202 = vpop.f32.mrb[0].mxu0
  %203 = vmatprep.mubr.f32.mxu0 0.0
  %204 = vmatmul.mubr.f32.gmra.mrb[0].mxu0 %v78
  %v205 = vpop.f32.mrb[0].mxu0
  %v206 = vadd.f32 0.0, %v205
  %v207 = vpop.f32.mrb[0].mxu0
  %208 = vmatprep.mubr.f32.mxu0 0.0
  %209 = vmatmul.mubr.f32.gmra.mrb[0].mxu0 %v81
  %v210 = vpop.f32.mrb[0].mxu0
  %v211 = vadd.f32 0.0, %v210
  %v212 = vpop.f32.mrb[0].mxu0
  %213 = vmatprep.mubr.f32.mxu0 0.0
  %214 = vmatmul.mubr.f32.gmra.mrb[0].mxu0 %v84
  %v215 = vpop.f32.mrb[0].mxu0
  %v216 = vadd.f32 0.0, %v215
  %v217 = vpop.f32.mrb[0].mxu0
  %218 = vmatprep.mubr.f32.mxu0 0.0
  %219 = vmatmul.mubr.f32.gmra.mrb[0].mxu0 %v87
  %v220 = vpop.f32.mrb[0].mxu0
  %v221 = vadd.f32 0.0, %v220
  %v222 = vpop.f32.mrb[0].mxu0
  %223 = vmatprep.mubr.f32.mxu0 0.0
  %224 = vmatmul.mubr.f32.gmra.mrb[0].mxu0 %v90
  %v225 = vpop.f32.mrb[0].mxu0
  %v226 = vadd.f32 0.0, %v225
  %v227 = vpop.f32.mrb[0].mxu0
  %228 = vmatprep.mubr.f32.mxu0 0.0
  %229 = vmatmul.mubr.f32.gmra.mrb[0].mxu0 %v93
  %v230 = vpop.f32.mrb[0].mxu0
  %v231 = vadd.f32 0.0, %v230
  %v232 = vpop.f32.mrb[0].mxu0
  %233 = vmatprep.mubr.f32.mxu0 0.0
  %234 = vmatmul.mubr.f32.gmra.mrb[0].mxu0 %v96
  %v235 = vpop.f32.mrb[0].mxu0
  %v236 = vadd.f32 0.0, %v235
  %v237 = vpop.f32.mrb[0].mxu0
  %238 = vmatprep.mubr.f32.mxu0 0.0
  %239 = vmatmul.mubr.f32.gmra.mrb[0].mxu0 %v99
  %v240 = vpop.f32.mrb[0].mxu0
  %v241 = vadd.f32 0.0, %v240
  %v242 = vpop.f32.mrb[0].mxu0
  %243 = vmatprep.mubr.f32.mxu0 0.0
  %244 = vmatmul.mubr.f32.gmra.mrb[0].mxu0 %v102
  %v245 = vpop.f32.mrb[0].mxu0
  %v246 = vadd.f32 0.0, %v245
  %v247 = vpop.f32.mrb[0].mxu0
  %248 = vdwg.mxu0
  %v250 = vsel %vm55, %v14, 0
  %v253 = vsel %vm55, %v32, 0
  %255 = vmatprep.subr.mxu0 0.0
  %256 = vmatpush1.msra.mxu0 %v50
  %257 = vmatprep.subr.mxu0 0.0
  %258 = vmatpush1.msra.mxu0 %v51
  %259 = vmatprep.subr.mxu0 0.0
  %260 = vmatpush1.msra.mxu0 0.0
  %261 = vmatprep.subr.mxu0 0.0
  %262 = vmatpush1.msra.mxu0 0.0
  %263 = vmatprep.subr.mxu0 0.0
  %264 = vmatpush1.msra.mxu0 0.0
  %265 = vmatprep.subr.mxu0 0.0
  %266 = vmatpush1.msra.mxu0 0.0
  %267 = vmatprep.subr.mxu0 0.0
  %268 = vmatpush1.msra.mxu0 0.0
  %269 = vmatprep.subr.mxu0 0.0
  %270 = vmatpush1.msra.mxu0 0.0
  %271 = vmatprep.subr.mxu0 0.0
  %272 = vmatpush1.msra.mxu0 0.0
  %273 = vmatprep.subr.mxu0 0.0
  %274 = vmatpush1.msra.mxu0 0.0
  %275 = vmatprep.subr.mxu0 0.0
  %276 = vmatpush1.msra.mxu0 0.0
  %277 = vmatprep.subr.mxu0 0.0
  %278 = vmatpush1.msra.mxu0 0.0
  %279 = vmatprep.subr.mxu0 0.0
  %280 = vmatpush1.msra.mxu0 0.0
  %281 = vmatprep.subr.mxu0 0.0
  %282 = vmatpush1.msra.mxu0 0.0
  %283 = vmatprep.subr.mxu0 0.0
  %284 = vmatpush1.msra.mxu0 0.0
  %285 = vmatprep.subr.mxu0 0.0
  %286 = vmatpush1.msra.mxu0 0.0
  %287 = vmatprep.subr.mxu0 0.0
  %288 = vmatpush1.msra.mxu0 0.0
  %289 = vmatprep.subr.mxu0 0.0
  %290 = vmatpush1.msra.mxu0 0.0
  %291 = vmatprep.subr.mxu0 0.0
  %292 = vmatpush1.msra.mxu0 0.0
  %293 = vmatprep.subr.mxu0 0.0
  %294 = vmatpush1.msra.mxu0 0.0
  %295 = vmatprep.subr.mxu0 0.0
  %296 = vmatpush1.msra.mxu0 0.0
  %297 = vmatprep.subr.mxu0 0.0
  %298 = vmatpush1.msra.mxu0 0.0
  %299 = vmatprep.subr.mxu0 0.0
  %300 = vmatpush1.msra.mxu0 0.0
  %301 = vmatprep.subr.mxu0 0.0
  %302 = vmatpush1.msra.mxu0 0.0
  %303 = vmatprep.subr.mxu0 0.0
  %304 = vmatpush1.msra.mxu0 0.0
  %305 = vmatprep.subr.mxu0 0.0
  %306 = vmatpush1.msra.mxu0 0.0
  %307 = vmatprep.subr.mxu0 0.0
  %308 = vmatpush1.msra.mxu0 0.0
  %309 = vmatprep.subr.mxu0 0.0
  %310 = vmatpush1.msra.mxu0 0.0
  %311 = vmatprep.subr.mxu0 0.0
  %312 = vmatpush1.msra.mxu0 0.0
  %313 = vmatprep.subr.mxu0 0.0
  %314 = vmatpush1.msra.mxu0 0.0
  %315 = vmatprep.subr.mxu0 0.0
  %316 = vmatpush1.msra.mxu0 0.0
  %317 = vmatprep.subr.mxu0 0.0
  %318 = vmatpush1.msra.mxu0 0.0
  %319 = vmatprep.mubr.f32.mxu0 0.0
  %320 = vmatmul.mubr.f32.gmra.mrb[0].mxu0 %v250
  %v321 = vpop.f32.mrb[0].mxu0
  %v322 = vadd.f32 %v171, %v321
  %v323 = vpop.f32.mrb[0].mxu0
  %324 = vmatprep.mubr.f32.mxu0 0.0
  %325 = vmatmul.mubr.f32.gmra.mrb[0].mxu0 %v57
  %v326 = vpop.f32.mrb[0].mxu0
  %v327 = vadd.f32 %v176, %v326
  %v328 = vpop.f32.mrb[0].mxu0
  %329 = vmatprep.mubr.f32.mxu0 0.0
  %330 = vmatmul.mubr.f32.gmra.mrb[0].mxu0 %v60
  %v331 = vpop.f32.mrb[0].mxu0
  %v332 = vadd.f32 %v181, %v331
  %v333 = vpop.f32.mrb[0].mxu0
  %334 = vmatprep.mubr.f32.mxu0 0.0
  %335 = vmatmul.mubr.f32.gmra.mrb[0].mxu0 %v63
  %v336 = vpop.f32.mrb[0].mxu0
  %v337 = vadd.f32 %v186, %v336
  %v338 = vpop.f32.mrb[0].mxu0
  %339 = vmatprep.mubr.f32.mxu0 0.0
  %340 = vmatmul.mubr.f32.gmra.mrb[0].mxu0 %v66
  %v341 = vpop.f32.mrb[0].mxu0
  %v342 = vadd.f32 %v191, %v341
  %v343 = vpop.f32.mrb[0].mxu0
  %344 = vmatprep.mubr.f32.mxu0 0.0
  %345 = vmatmul.mubr.f32.gmra.mrb[0].mxu0 %v69
  %v346 = vpop.f32.mrb[0].mxu0
  %v347 = vadd.f32 %v196, %v346
  %v348 = vpop.f32.mrb[0].mxu0
  %349 = vmatprep.mubr.f32.mxu0 0.0
  %350 = vmatmul.mubr.f32.gmra.mrb[0].mxu0 %v72
  %v351 = vpop.f32.mrb[0].mxu0
  %v352 = vadd.f32 %v201, %v351
  %v353 = vpop.f32.mrb[0].mxu0
  %354 = vmatprep.mubr.f32.mxu0 0.0
  %355 = vmatmul.mubr.f32.gmra.mrb[0].mxu0 %v75
  %v356 = vpop.f32.mrb[0].mxu0
  %v357 = vadd.f32 %v206, %v356
  %v358 = vpop.f32.mrb[0].mxu0
  %359 = vmatprep.mubr.f32.mxu0 0.0
  %360 = vmatmul.mubr.f32.gmra.mrb[0].mxu0 %v253
  %v361 = vpop.f32.mrb[0].mxu0
  %v362 = vadd.f32 %v211, %v361
  %v363 = vpop.f32.mrb[0].mxu0
  %364 = vmatprep.mubr.f32.mxu0 0.0
  %365 = vmatmul.mubr.f32.gmra.mrb[0].mxu0 %v81
  %v366 = vpop.f32.mrb[0].mxu0
  %v367 = vadd.f32 %v216, %v366
  %v368 = vpop.f32.mrb[0].mxu0
  %369 = vmatprep.mubr.f32.mxu0 0.0
  %370 = vmatmul.mubr.f32.gmra.mrb[0].mxu0 %v84
  %v371 = vpop.f32.mrb[0].mxu0
  %v372 = vadd.f32 %v221, %v371
  %v373 = vpop.f32.mrb[0].mxu0
  %374 = vmatprep.mubr.f32.mxu0 0.0
  %375 = vmatmul.mubr.f32.gmra.mrb[0].mxu0 %v87
  %v376 = vpop.f32.mrb[0].mxu0
  %v377 = vadd.f32 %v226, %v376
  %v378 = vpop.f32.mrb[0].mxu0
  %379 = vmatprep.mubr.f32.mxu0 0.0
  %380 = vmatmul.mubr.f32.gmra.mrb[0].mxu0 %v90
  %v381 = vpop.f32.mrb[0].mxu0
  %v382 = vadd.f32 %v231, %v381
  %v383 = vpop.f32.mrb[0].mxu0
  %384 = vmatprep.mubr.f32.mxu0 0.0
  %385 = vmatmul.mubr.f32.gmra.mrb[0].mxu0 %v93
  %v386 = vpop.f32.mrb[0].mxu0
  %v387 = vadd.f32 %v236, %v386
  %v388 = vpop.f32.mrb[0].mxu0
  %389 = vmatprep.mubr.f32.mxu0 0.0
  %390 = vmatmul.mubr.f32.gmra.mrb[0].mxu0 %v96
  %v391 = vpop.f32.mrb[0].mxu0
  %v392 = vadd.f32 %v241, %v391
  %v393 = vpop.f32.mrb[0].mxu0
  %394 = vmatprep.mubr.f32.mxu0 0.0
  %395 = vmatmul.mubr.f32.gmra.mrb[0].mxu0 %v99
  %v396 = vpop.f32.mrb[0].mxu0
  %v397 = vadd.f32 %v246, %v396
  %v398 = vpop.f32.mrb[0].mxu0
  %399 = vdwg.mxu0
  %vm416 = vcmask 1046528
  %v417 = vrot.slane %v14, 1
  %v418 = vrot.slane %v15, 1
  %v419 = vsel %vm416, %v417, %v418
  %v420 = vrot.slane %v16, 1
  %v421 = vrot.slane %v17, 1
  %v422 = vsel %vm416, %v420, %v421
  %v423 = vrot.slane %v18, 1
  %v424 = vrot.slane %v19, 1
  %v425 = vsel %vm416, %v423, %v424
  %v426 = vrot.slane %v20, 1
  %v427 = vrot.slane %v21, 1
  %v428 = vsel %vm416, %v426, %v427
  %v429 = vrot.slane %v22, 1
  %v430 = vrot.slane %v23, 1
  %v431 = vsel %vm416, %v429, %v430
  %v432 = vrot.slane %v24, 1
  %v433 = vrot.slane %v25, 1
  %v434 = vsel %vm416, %v432, %v433
  %v435 = vrot.slane %v26, 1
  %v436 = vrot.slane %v27, 1
  %v437 = vsel %vm416, %v435, %v436
  %v438 = vrot.slane %v28, 1
  %v439 = vrot.slane %v29, 1
  %v440 = vsel %vm416, %v438, %v439
  %v441 = vrot.slane %v32, 1
  %v442 = vrot.slane %v33, 1
  %v443 = vsel %vm416, %v441, %v442
  %v444 = vrot.slane %v34, 1
  %v445 = vrot.slane %v35, 1
  %v446 = vsel %vm416, %v444, %v445
  %v447 = vrot.slane %v36, 1
  %v448 = vrot.slane %v37, 1
  %v449 = vsel %vm416, %v447, %v448
  %v450 = vrot.slane %v38, 1
  %v451 = vrot.slane %v39, 1
  %v452 = vsel %vm416, %v450, %v451
  %v453 = vrot.slane %v40, 1
  %v454 = vrot.slane %v41, 1
  %v455 = vsel %vm416, %v453, %v454
  %v456 = vrot.slane %v42, 1
  %v457 = vrot.slane %v43, 1
  %v458 = vsel %vm416, %v456, %v457
  %v459 = vrot.slane %v44, 1
  %v460 = vrot.slane %v45, 1
  %v461 = vsel %vm416, %v459, %v460
  %v462 = vrot.slane %v46, 1
  %v463 = vrot.slane %v47, 1
  %v464 = vsel %vm416, %v462, %v463
  %s465 = scalar_lea.vmem %s1, 16
  %v466 = vld [vmem:[%s465] sm:$0xff]
  %v467 = vld [vmem:[%s465 + $0x8] sm:$0xff]
  %v468 = vsel %vm55, %v419, 0
  %v470 = vsel %vm55, %v422, 0
  %v472 = vsel %vm55, %v425, 0
  %v474 = vsel %vm55, %v428, 0
  %v476 = vsel %vm55, %v431, 0
  %v478 = vsel %vm55, %v434, 0
  %v480 = vsel %vm55, %v437, 0
  %v482 = vsel %vm55, %v440, 0
  %v484 = vsel %vm55, %v443, 0
  %v486 = vsel %vm55, %v446, 0
  %v488 = vsel %vm55, %v449, 0
  %v490 = vsel %vm55, %v452, 0
  %v492 = vsel %vm55, %v455, 0
  %v494 = vsel %vm55, %v458, 0
  %v496 = vsel %vm55, %v461, 0
  %v498 = vsel %vm55, %v464, 0
  %500 = vmatprep.subr.mxu0 0.0
  %501 = vmatpush1.msra.mxu0 %v466
  %502 = vmatprep.subr.mxu0 0.0
  %503 = vmatpush1.msra.mxu0 %v467
  %504 = vmatprep.subr.mxu0 0.0
  %505 = vmatpush1.msra.mxu0 0.0
  %506 = vmatprep.subr.mxu0 0.0
  %507 = vmatpush1.msra.mxu0 0.0
  %508 = vmatprep.subr.mxu0 0.0
  %509 = vmatpush1.msra.mxu0 0.0
  %510 = vmatprep.subr.mxu0 0.0
  %511 = vmatpush1.msra.mxu0 0.0
  %512 = vmatprep.subr.mxu0 0.0
  %513 = vmatpush1.msra.mxu0 0.0
  %514 = vmatprep.subr.mxu0 0.0
  %515 = vmatpush1.msra.mxu0 0.0
  %516 = vmatprep.subr.mxu0 0.0
  %517 = vmatpush1.msra.mxu0 0.0
  %518 = vmatprep.subr.mxu0 0.0
  %519 = vmatpush1.msra.mxu0 0.0
  %520 = vmatprep.subr.mxu0 0.0
  %521 = vmatpush1.msra.mxu0 0.0
  %522 = vmatprep.subr.mxu0 0.0
  %523 = vmatpush1.msra.mxu0 0.0
  %524 = vmatprep.subr.mxu0 0.0
  %525 = vmatpush1.msra.mxu0 0.0
  %526 = vmatprep.subr.mxu0 0.0
  %527 = vmatpush1.msra.mxu0 0.0
  %528 = vmatprep.subr.mxu0 0.0
  %529 = vmatpush1.msra.mxu0 0.0
  %530 = vmatprep.subr.mxu0 0.0
  %531 = vmatpush1.msra.mxu0 0.0
  %532 = vmatprep.subr.mxu0 0.0
  %533 = vmatpush1.msra.mxu0 0.0
  %534 = vmatprep.subr.mxu0 0.0
  %535 = vmatpush1.msra.mxu0 0.0
  %536 = vmatprep.subr.mxu0 0.0
  %537 = vmatpush1.msra.mxu0 0.0
  %538 = vmatprep.subr.mxu0 0.0
  %539 = vmatpush1.msra.mxu0 0.0
  %540 = vmatprep.subr.mxu0 0.0
  %541 = vmatpush1.msra.mxu0 0.0
  %542 = vmatprep.subr.mxu0 0.0
  %543 = vmatpush1.msra.mxu0 0.0
  %544 = vmatprep.subr.mxu0 0.0
  %545 = vmatpush1.msra.mxu0 0.0
  %546 = vmatprep.subr.mxu0 0.0
  %547 = vmatpush1.msra.mxu0 0.0
  %548 = vmatprep.subr.mxu0 0.0
  %549 = vmatpush1.msra.mxu0 0.0
  %550 = vmatprep.subr.mxu0 0.0
  %551 = vmatpush1.msra.mxu0 0.0
  %552 = vmatprep.subr.mxu0 0.0
  %553 = vmatpush1.msra.mxu0 0.0
  %554 = vmatprep.subr.mxu0 0.0
  %555 = vmatpush1.msra.mxu0 0.0
  %556 = vmatprep.subr.mxu0 0.0
  %557 = vmatpush1.msra.mxu0 0.0
  %558 = vmatprep.subr.mxu0 0.0
  %559 = vmatpush1.msra.mxu0 0.0
  %560 = vmatprep.subr.mxu0 0.0
  %561 = vmatpush1.msra.mxu0 0.0
  %562 = vmatprep.subr.mxu0 0.0
  %563 = vmatpush1.msra.mxu0 0.0
  %564 = vmatprep.mubr.f32.mxu0 0.0
  %565 = vmatmul.mubr.f32.gmra.mrb[0].mxu0 %v468
  %v566 = vpop.f32.mrb[0].mxu0
  %v567 = vadd.f32 0.0, %v566
  %v568 = vpop.f32.mrb[0].mxu0
  %569 = vmatprep.mubr.f32.mxu0 0.0
  %570 = vmatmul.mubr.f32.gmra.mrb[0].mxu0 %v470
  %v571 = vpop.f32.mrb[0].mxu0
  %v572 = vadd.f32 0.0, %v571
  %v573 = vpop.f32.mrb[0].mxu0
  %574 = vmatprep.mubr.f32.mxu0 0.0
  %575 = vmatmul.mubr.f32.gmra.mrb[0].mxu0 %v472
  %v576 = vpop.f32.mrb[0].mxu0
  %v577 = vadd.f32 0.0, %v576
  %v578 = vpop.f32.mrb[0].mxu0
  %579 = vmatprep.mubr.f32.mxu0 0.0
  %580 = vmatmul.mubr.f32.gmra.mrb[0].mxu0 %v474
  %v581 = vpop.f32.mrb[0].mxu0
  %v582 = vadd.f32 0.0, %v581
  %v583 = vpop.f32.mrb[0].mxu0
  %584 = vmatprep.mubr.f32.mxu0 0.0
  %585 = vmatmul.mubr.f32.gmra.mrb[0].mxu0 %v476
  %v586 = vpop.f32.mrb[0].mxu0
  %v587 = vadd.f32 0.0, %v586
  %v588 = vpop.f32.mrb[0].mxu0
  %589 = vmatprep.mubr.f32.mxu0 0.0
  %590 = vmatmul.mubr.f32.gmra.mrb[0].mxu0 %v478
  %v591 = vpop.f32.mrb[0].mxu0
  %v592 = vadd.f32 0.0, %v591
  %v593 = vpop.f32.mrb[0].mxu0
  %594 = vmatprep.mubr.f32.mxu0 0.0
  %595 = vmatmul.mubr.f32.gmra.mrb[0].mxu0 %v480
  %v596 = vpop.f32.mrb[0].mxu0
  %v597 = vadd.f32 0.0, %v596
  %v598 = vpop.f32.mrb[0].mxu0
  %599 = vmatprep.mubr.f32.mxu0 0.0
  %600 = vmatmul.mubr.f32.gmra.mrb[0].mxu0 %v482
  %v601 = vpop.f32.mrb[0].mxu0
  %v602 = vadd.f32 0.0, %v601
  %v603 = vpop.f32.mrb[0].mxu0
  %604 = vmatprep.mubr.f32.mxu0 0.0
  %605 = vmatmul.mubr.f32.gmra.mrb[0].mxu0 %v484
  %v606 = vpop.f32.mrb[0].mxu0
  %v607 = vadd.f32 0.0, %v606
  %v608 = vpop.f32.mrb[0].mxu0
  %609 = vmatprep.mubr.f32.mxu0 0.0
  %610 = vmatmul.mubr.f32.gmra.mrb[0].mxu0 %v486
  %v611 = vpop.f32.mrb[0].mxu0
  %v612 = vadd.f32 0.0, %v611
  %v613 = vpop.f32.mrb[0].mxu0
  %614 = vmatprep.mubr.f32.mxu0 0.0
  %615 = vmatmul.mubr.f32.gmra.mrb[0].mxu0 %v488
  %v616 = vpop.f32.mrb[0].mxu0
  %v617 = vadd.f32 0.0, %v616
  %v618 = vpop.f32.mrb[0].mxu0
  %619 = vmatprep.mubr.f32.mxu0 0.0
  %620 = vmatmul.mubr.f32.gmra.mrb[0].mxu0 %v490
  %v621 = vpop.f32.mrb[0].mxu0
  %v622 = vadd.f32 0.0, %v621
  %v623 = vpop.f32.mrb[0].mxu0
  %624 = vmatprep.mubr.f32.mxu0 0.0
  %625 = vmatmul.mubr.f32.gmra.mrb[0].mxu0 %v492
  %v626 = vpop.f32.mrb[0].mxu0
  %v627 = vadd.f32 0.0, %v626
  %v628 = vpop.f32.mrb[0].mxu0
  %629 = vmatprep.mubr.f32.mxu0 0.0
  %630 = vmatmul.mubr.f32.gmra.mrb[0].mxu0 %v494
  %v631 = vpop.f32.mrb[0].mxu0
  %v632 = vadd.f32 0.0, %v631
  %v633 = vpop.f32.mrb[0].mxu0
  %634 = vmatprep.mubr.f32.mxu0 0.0
  %635 = vmatmul.mubr.f32.gmra.mrb[0].mxu0 %v496
  %v636 = vpop.f32.mrb[0].mxu0
  %v637 = vadd.f32 0.0, %v636
  %v638 = vpop.f32.mrb[0].mxu0
  %639 = vmatprep.mubr.f32.mxu0 0.0
  %640 = vmatmul.mubr.f32.gmra.mrb[0].mxu0 %v498
  %v641 = vpop.f32.mrb[0].mxu0
  %v642 = vadd.f32 0.0, %v641
  %v643 = vpop.f32.mrb[0].mxu0
  %644 = vdwg.mxu0
  %v645 = vadd.f32 %v322, %v567
  %v646 = vadd.f32 %v327, %v572
  %v647 = vadd.f32 %v332, %v577
  %v648 = vadd.f32 %v337, %v582
  %v649 = vadd.f32 %v342, %v587
  %v650 = vadd.f32 %v347, %v592
  %v651 = vadd.f32 %v352, %v597
  %v652 = vadd.f32 %v357, %v602
  %v653 = vadd.f32 %v362, %v607
  %v654 = vadd.f32 %v367, %v612
  %v655 = vadd.f32 %v372, %v617
  %v656 = vadd.f32 %v377, %v622
  %v657 = vadd.f32 %v382, %v627
  %v658 = vadd.f32 %v387, %v632
  %v659 = vadd.f32 %v392, %v637
  %v660 = vadd.f32 %v397, %v642
  %v663 = vrot.slane %v30, 1
  %v664 = vrot.slane %v31, 1
  %v665 = vsel %vm416, %v663, %v664
  %v666 = vrot.slane %v48, 1
  %v667 = vrot.slane %v49, 1
  %v668 = vsel %vm416, %v666, %v667
  %s669 = scalar_lea.vmem %s1, 48
  %v670 = vld [vmem:[%s669] sm:$0xff]
  %v671 = vld [vmem:[%s669 + $0x8] sm:$0xff]
  %v672 = vsel %vm55, %v665, 0
  %v674 = vsel %vm55, %v668, 0
  %676 = vmatprep.subr.mxu0 0.0
  %677 = vmatpush1.msra.mxu0 %v670
  %678 = vmatprep.subr.mxu0 0.0
  %679 = vmatpush1.msra.mxu0 %v671
  %680 = vmatprep.subr.mxu0 0.0
  %681 = vmatpush1.msra.mxu0 0.0
  %682 = vmatprep.subr.mxu0 0.0
  %683 = vmatpush1.msra.mxu0 0.0
  %684 = vmatprep.subr.mxu0 0.0
  %685 = vmatpush1.msra.mxu0 0.0
  %686 = vmatprep.subr.mxu0 0.0
  %687 = vmatpush1.msra.mxu0 0.0
  %688 = vmatprep.subr.mxu0 0.0
  %689 = vmatpush1.msra.mxu0 0.0
  %690 = vmatprep.subr.mxu0 0.0
  %691 = vmatpush1.msra.mxu0 0.0
  %692 = vmatprep.subr.mxu0 0.0
  %693 = vmatpush1.msra.mxu0 0.0
  %694 = vmatprep.subr.mxu0 0.0
  %695 = vmatpush1.msra.mxu0 0.0
  %696 = vmatprep.subr.mxu0 0.0
  %697 = vmatpush1.msra.mxu0 0.0
  %698 = vmatprep.subr.mxu0 0.0
  %699 = vmatpush1.msra.mxu0 0.0
  %700 = vmatprep.subr.mxu0 0.0
  %701 = vmatpush1.msra.mxu0 0.0
  %702 = vmatprep.subr.mxu0 0.0
  %703 = vmatpush1.msra.mxu0 0.0
  %704 = vmatprep.subr.mxu0 0.0
  %705 = vmatpush1.msra.mxu0 0.0
  %706 = vmatprep.subr.mxu0 0.0
  %707 = vmatpush1.msra.mxu0 0.0
  %708 = vmatprep.subr.mxu0 0.0
  %709 = vmatpush1.msra.mxu0 0.0
  %710 = vmatprep.subr.mxu0 0.0
  %711 = vmatpush1.msra.mxu0 0.0
  %712 = vmatprep.subr.mxu0 0.0
  %713 = vmatpush1.msra.mxu0 0.0
  %714 = vmatprep.subr.mxu0 0.0
  %715 = vmatpush1.msra.mxu0 0.0
  %716 = vmatprep.subr.mxu0 0.0
  %717 = vmatpush1.msra.mxu0 0.0
  %718 = vmatprep.subr.mxu0 0.0
  %719 = vmatpush1.msra.mxu0 0.0
  %720 = vmatprep.subr.mxu0 0.0
  %721 = vmatpush1.msra.mxu0 0.0
  %722 = vmatprep.subr.mxu0 0.0
  %723 = vmatpush1.msra.mxu0 0.0
  %724 = vmatprep.subr.mxu0 0.0
  %725 = vmatpush1.msra.mxu0 0.0
  %726 = vmatprep.subr.mxu0 0.0
  %727 = vmatpush1.msra.mxu0 0.0
  %728 = vmatprep.subr.mxu0 0.0
  %729 = vmatpush1.msra.mxu0 0.0
  %730 = vmatprep.subr.mxu0 0.0
  %731 = vmatpush1.msra.mxu0 0.0
  %732 = vmatprep.subr.mxu0 0.0
  %733 = vmatpush1.msra.mxu0 0.0
  %734 = vmatprep.subr.mxu0 0.0
  %735 = vmatpush1.msra.mxu0 0.0
  %736 = vmatprep.subr.mxu0 0.0
  %737 = vmatpush1.msra.mxu0 0.0
  %738 = vmatprep.subr.mxu0 0.0
  %739 = vmatpush1.msra.mxu0 0.0
  %740 = vmatprep.mubr.f32.mxu0 0.0
  %741 = vmatmul.mubr.f32.gmra.mrb[0].mxu0 %v470
  %v742 = vpop.f32.mrb[0].mxu0
  %v743 = vadd.f32 0.0, %v742
  %v744 = vpop.f32.mrb[0].mxu0
  %745 = vmatprep.mubr.f32.mxu0 0.0
  %746 = vmatmul.mubr.f32.gmra.mrb[0].mxu0 %v472
  %v747 = vpop.f32.mrb[0].mxu0
  %v748 = vadd.f32 0.0, %v747
  %v749 = vpop.f32.mrb[0].mxu0
  %750 = vmatprep.mubr.f32.mxu0 0.0
  %751 = vmatmul.mubr.f32.gmra.mrb[0].mxu0 %v474
  %v752 = vpop.f32.mrb[0].mxu0
  %v753 = vadd.f32 0.0, %v752
  %v754 = vpop.f32.mrb[0].mxu0
  %755 = vmatprep.mubr.f32.mxu0 0.0
  %756 = vmatmul.mubr.f32.gmra.mrb[0].mxu0 %v476
  %v757 = vpop.f32.mrb[0].mxu0
  %v758 = vadd.f32 0.0, %v757
  %v759 = vpop.f32.mrb[0].mxu0
  %760 = vmatprep.mubr.f32.mxu0 0.0
  %761 = vmatmul.mubr.f32.gmra.mrb[0].mxu0 %v478
  %v762 = vpop.f32.mrb[0].mxu0
  %v763 = vadd.f32 0.0, %v762
  %v764 = vpop.f32.mrb[0].mxu0
  %765 = vmatprep.mubr.f32.mxu0 0.0
  %766 = vmatmul.mubr.f32.gmra.mrb[0].mxu0 %v480
  %v767 = vpop.f32.mrb[0].mxu0
  %v768 = vadd.f32 0.0, %v767
  %v769 = vpop.f32.mrb[0].mxu0
  %770 = vmatprep.mubr.f32.mxu0 0.0
  %771 = vmatmul.mubr.f32.gmra.mrb[0].mxu0 %v482
  %v772 = vpop.f32.mrb[0].mxu0
  %v773 = vadd.f32 0.0, %v772
  %v774 = vpop.f32.mrb[0].mxu0
  %775 = vmatprep.mubr.f32.mxu0 0.0
  %776 = vmatmul.mubr.f32.gmra.mrb[0].mxu0 %v672
  %v777 = vpop.f32.mrb[0].mxu0
  %v778 = vadd.f32 0.0, %v777
  %v779 = vpop.f32.mrb[0].mxu0
  %780 = vmatprep.mubr.f32.mxu0 0.0
  %781 = vmatmul.mubr.f32.gmra.mrb[0].mxu0 %v486
  %v782 = vpop.f32.mrb[0].mxu0
  %v783 = vadd.f32 0.0, %v782
  %v784 = vpop.f32.mrb[0].mxu0
  %785 = vmatprep.mubr.f32.mxu0 0.0
  %786 = vmatmul.mubr.f32.gmra.mrb[0].mxu0 %v488
  %v787 = vpop.f32.mrb[0].mxu0
  %v788 = vadd.f32 0.0, %v787
  %v789 = vpop.f32.mrb[0].mxu0
  %790 = vmatprep.mubr.f32.mxu0 0.0
  %791 = vmatmul.mubr.f32.gmra.mrb[0].mxu0 %v490
  %v792 = vpop.f32.mrb[0].mxu0
  %v793 = vadd.f32 0.0, %v792
  %v794 = vpop.f32.mrb[0].mxu0
  %795 = vmatprep.mubr.f32.mxu0 0.0
  %796 = vmatmul.mubr.f32.gmra.mrb[0].mxu0 %v492
  %v797 = vpop.f32.mrb[0].mxu0
  %v798 = vadd.f32 0.0, %v797
  %v799 = vpop.f32.mrb[0].mxu0
  %800 = vmatprep.mubr.f32.mxu0 0.0
  %801 = vmatmul.mubr.f32.gmra.mrb[0].mxu0 %v494
  %v802 = vpop.f32.mrb[0].mxu0
  %v803 = vadd.f32 0.0, %v802
  %v804 = vpop.f32.mrb[0].mxu0
  %805 = vmatprep.mubr.f32.mxu0 0.0
  %806 = vmatmul.mubr.f32.gmra.mrb[0].mxu0 %v496
  %v807 = vpop.f32.mrb[0].mxu0
  %v808 = vadd.f32 0.0, %v807
  %v809 = vpop.f32.mrb[0].mxu0
  %810 = vmatprep.mubr.f32.mxu0 0.0
  %811 = vmatmul.mubr.f32.gmra.mrb[0].mxu0 %v498
  %v812 = vpop.f32.mrb[0].mxu0
  %v813 = vadd.f32 0.0, %v812
  %v814 = vpop.f32.mrb[0].mxu0
  %815 = vmatprep.mubr.f32.mxu0 0.0
  %816 = vmatmul.mubr.f32.gmra.mrb[0].mxu0 %v674
  %v817 = vpop.f32.mrb[0].mxu0
  %v818 = vadd.f32 0.0, %v817
  %v819 = vpop.f32.mrb[0].mxu0
  %820 = vdwg.mxu0
  %v821 = vadd.f32 %v645, %v743
  %v822 = vadd.f32 %v646, %v748
  %v823 = vadd.f32 %v647, %v753
  %v824 = vadd.f32 %v648, %v758
  %v825 = vadd.f32 %v649, %v763
  %v826 = vadd.f32 %v650, %v768
  %v827 = vadd.f32 %v651, %v773
  %v828 = vadd.f32 %v652, %v778
  %v829 = vadd.f32 %v653, %v783
  %v830 = vadd.f32 %v654, %v788
  %v831 = vadd.f32 %v655, %v793
  %v832 = vadd.f32 %v656, %v798
  %v833 = vadd.f32 %v657, %v803
  %v834 = vadd.f32 %v658, %v808
  %v835 = vadd.f32 %v659, %v813
  %v836 = vadd.f32 %v660, %v818
  %837 = vst [vmem:[%s2] sm:$0xff] %v821
  %838 = vst [vmem:[%s2 + $0x8] sm:$0xff] %v822
  %839 = vst [vmem:[%s2 + $0x10] sm:$0xff] %v823
  %840 = vst [vmem:[%s2 + $0x18] sm:$0xff] %v824
  %841 = vst [vmem:[%s2 + $0x20] sm:$0xff] %v825
  %842 = vst [vmem:[%s2 + $0x28] sm:$0xff] %v826
  %843 = vst [vmem:[%s2 + $0x30] sm:$0xff] %v827
  %844 = vst [vmem:[%s2 + $0x38] sm:$0xff] %v828
  %845 = vst [vmem:[%s2 + $0x40] sm:$0xff] %v829
  %846 = vst [vmem:[%s2 + $0x48] sm:$0xff] %v830
  %847 = vst [vmem:[%s2 + $0x50] sm:$0xff] %v831
  %848 = vst [vmem:[%s2 + $0x58] sm:$0xff] %v832
  %849 = vst [vmem:[%s2 + $0x60] sm:$0xff] %v833
  %850 = vst [vmem:[%s2 + $0x68] sm:$0xff] %v834
  %851 = vst [vmem:[%s2 + $0x70] sm:$0xff] %v835
  %852 = vst [vmem:[%s2 + $0x78] sm:$0xff] %v836
  %v853 = vadd.f32 %v821, %v822
  %v854 = vadd.f32 %v853, %v823
  %v855 = vadd.f32 %v854, %v824
  %v856 = vadd.f32 %v855, %v825
  %v857 = vadd.f32 %v856, %v826
  %v858 = vadd.f32 %v857, %v827
  %v859 = vadd.f32 %v858, %v828
  %v860 = vadd.f32 %v859, %v829
  %v861 = vadd.f32 %v860, %v830
  %v862 = vadd.f32 %v861, %v831
  %v863 = vadd.f32 %v862, %v832
  %v864 = vadd.f32 %v863, %v833
  %v865 = vadd.f32 %v864, %v834
  %v866 = vadd.f32 %v865, %v835
  %v867 = vadd.f32 %v866, %v836
  %868 = vst [vmem:[%s3] sm:$0xff] %v867
  %v869 = vmul.f32 %v821, %v821
  %v870 = vmul.f32 %v822, %v822
  %v871 = vmul.f32 %v823, %v823
  %v872 = vmul.f32 %v824, %v824
  %v873 = vmul.f32 %v825, %v825
  %v874 = vmul.f32 %v826, %v826
  %v875 = vmul.f32 %v827, %v827
  %v876 = vmul.f32 %v828, %v828
  %v877 = vmul.f32 %v829, %v829
  %v878 = vmul.f32 %v830, %v830
  %v879 = vmul.f32 %v831, %v831
  %v880 = vmul.f32 %v832, %v832
  %v881 = vmul.f32 %v833, %v833
  %v882 = vmul.f32 %v834, %v834
  %v883 = vmul.f32 %v835, %v835
  %v884 = vmul.f32 %v836, %v836
  %v885 = vadd.f32 %v869, %v870
  %v886 = vadd.f32 %v885, %v871
  %v887 = vadd.f32 %v886, %v872
  %v888 = vadd.f32 %v887, %v873
  %v889 = vadd.f32 %v888, %v874
  %v890 = vadd.f32 %v889, %v875
  %v891 = vadd.f32 %v890, %v876
  %v892 = vadd.f32 %v891, %v877
  %v893 = vadd.f32 %v892, %v878
  %v894 = vadd.f32 %v893, %v879
  %v895 = vadd.f32 %v894, %v880
  %v896 = vadd.f32 %v895, %v881
  %v897 = vadd.f32 %v896, %v882
  %v898 = vadd.f32 %v897, %v883
  %v899 = vadd.f32 %v898, %v884
  %900 = vst [vmem:[%s4] sm:$0xff] %v899
  // Predicated region
  $region10: #{res_down_block.3} parent=0 // pred_check
    _
  $region11: #{res_down_block.3} parent=0 // pred_check_branch
    %902 = sbr.rel (0) target = $region13
  $region12: #{res_down_block.3} parent=0 // pred_region
    _
  $region13: #{res_down_block.3} parent=0 // pred_fallthru
    _
  // Predicated region
  $region14: #{res_down_block.3} parent=0 // pred_check
    _
  $region15: #{res_down_block.3} parent=0 // pred_check_branch
    %904 = sbr.rel (0) target = $region17
  $region16: #{res_down_block.3} parent=0 // pred_region
    _
  $region17: #{res_down_block.3} parent=0 // pred_fallthru
    _
  // Predicated region
  $region18: #{res_down_block.3} parent=0 // pred_check
    _
  $region19: #{res_down_block.3} parent=0 // pred_check_branch
    %906 = sbr.rel (0) target = $region21
  $region20: #{res_down_block.3} parent=0 // pred_region
    _
  $region21: #{res_down_block.3} parent=0 // pred_fallthru
    _
  // Predicated region
  $region22: #{res_down_block.3} parent=0 // pred_check
    _
  $region23: #{res_down_block.3} parent=0 // pred_check_branch
    %908 = sbr.rel (0) target = $region25
  $region24: #{res_down_block.3} parent=0 // pred_region
    _
  $region25: #{res_down_block.3} parent=0 // pred_fallthru
    _
  // Predicated region
  $region26: #{res_down_block.3} parent=0 // pred_check
    _
  $region27: #{res_down_block.3} parent=0 // pred_check_branch
    %910 = sbr.rel (0) target = $region29
  $region28: #{res_down_block.3} parent=0 // pred_region
    _
  $region29: #{res_down_block.3} parent=0 // pred_fallthru
    _
  // Predicated region
  $region30: #{res_down_block.3} parent=0 // pred_check
    _
  $region31: #{res_down_block.3} parent=0 // pred_check_branch
    %912 = sbr.rel (0) target = $region33
  $region32: #{res_down_block.3} parent=0 // pred_region
    _
  $region33: #{res_down_block.3} parent=0 // pred_fallthru
    _

// kernel: res_down_block.4
$region0: #{res_down_block.4}
  #allocation0 [shape = 'u32[]', space=smem, size = 0x4, offset = 0x4, fixed_abs, tag = 'smem constant byte address 0x4 - core index']
  #allocation1 [shape = 'u32[144,128]{1,0:T(1,128)}', space=vmem, size = 0x12000, scoped, tag = 'internal scratch']
  #allocation2 [shape = 'f32[2,10,10,128]{3,2,1,0:T(8,128)}', space=vmem, size = 0x28000, scoped, tag = 'scratch operand']
  %s0 = inlined_call_operand.vmem [shape: f32[2,8,8,128], index: 0, kind: input, shape index: {}]
  %s1 = inlined_call_operand.vmem [shape: f32[9,128,128], index: 1, kind: input, shape index: {}]
  %s2 = inlined_call_operand.vmem [shape: f32[1,128], index: 2, kind: input, shape index: {}]
  %s3 = inlined_call_operand.vmem [shape: f32[1,128], index: 3, kind: input, shape index: {}]
  %s4 = inlined_call_operand.vmem [shape: f32[128,128], index: 4, kind: output, shape index: {0}]
  %s5 = inlined_call_operand.vmem [shape: f32[8,128], index: 5, kind: output, shape index: {1}]
  %s6 = inlined_call_operand.vmem [shape: f32[8,128], index: 6, kind: output, shape index: {2}]
  %7 = xla_tuple %s4, %s5, %s6
  %s8 = sld [smem:[#allocation0]]
  $region42: #{res_down_block.4} parent=0
    _
  %s10 = ssub.s32 1, %s8
  %s11 = scalar_select 0, %s10, %s8
  // Predicated region
  $region2: #{res_down_block.4} parent=0 // pred_check
    _
  $region3: #{res_down_block.4} parent=0 // pred_check_branch
    %13 = sbr.rel (0) target = $region5
  $region4: #{res_down_block.4} parent=0 // pred_region
    _
  $region5: #{res_down_block.4} parent=0 // pred_fallthru
    _
  // Predicated region
  $region6: #{res_down_block.4} parent=0 // pred_check
    _
  $region7: #{res_down_block.4} parent=0 // pred_check_branch
    %15 = sbr.rel (0) target = $region9
  $region8: #{res_down_block.4} parent=0 // pred_region
    _
  $region9: #{res_down_block.4} parent=0 // pred_fallthru
    _
  // Predicated region
  $region10: #{res_down_block.4} parent=0 // pred_check
    _
  $region11: #{res_down_block.4} parent=0 // pred_check_branch
    %17 = sbr.rel (0) target = $region13
  $region12: #{res_down_block.4} parent=0 // pred_region
    _
  $region13: #{res_down_block.4} parent=0 // pred_fallthru
    _
  // Predicated region
  $region14: #{res_down_block.4} parent=0 // pred_check
    _
  $region15: #{res_down_block.4} parent=0 // pred_check_branch
    %19 = sbr.rel (0) target = $region17
  $region16: #{res_down_block.4} parent=0 // pred_region
    _
  $region17: #{res_down_block.4} parent=0 // pred_fallthru
    _
  %v20 = vld [vmem:[%s2] sm:$0x1]
  %v21 = vld [vmem:[%s3] sm:$0x1]
  %v22 = vld [vmem:[%s0] sm:$0xff]
  %v23 = vld [vmem:[%s0 + $0x8] sm:$0xff]
  %v24 = vld [vmem:[%s0 + $0x10] sm:$0xff]
  %v25 = vld [vmem:[%s0 + $0x18] sm:$0xff]
  %v26 = vld [vmem:[%s0 + $0x20] sm:$0xff]
  %v27 = vld [vmem:[%s0 + $0x28] sm:$0xff]
  %v28 = vld [vmem:[%s0 + $0x30] sm:$0xff]
  %v29 = vld [vmem:[%s0 + $0x38] sm:$0xff]
  %v30 = vld [vmem:[%s0 + $0x40] sm:$0xff]
  %v31 = vld [vmem:[%s0 + $0x48] sm:$0xff]
  %v32 = vld [vmem:[%s0 + $0x50] sm:$0xff]
  %v33 = vld [vmem:[%s0 + $0x58] sm:$0xff]
  %v34 = vld [vmem:[%s0 + $0x60] sm:$0xff]
  %v35 = vld [vmem:[%s0 + $0x68] sm:$0xff]
  %v36 = vld [vmem:[%s0 + $0x70] sm:$0xff]
  %v37 = vld [vmem:[%s0 + $0x78] sm:$0xff]
  %v39 = vlaneseq
  %v40 = vshrl.u32 %v39, 7
  %v41 = vsub.s32 0, %v40
  %v42 = vrot.slane %v20, %v41
  %v44 = vmul.f32 %v22, %v42
  %v45 = vmul.f32 %v23, %v42
  %v46 = vmul.f32 %v24, %v42
  %v47 = vmul.f32 %v25, %v42
  %v48 = vmul.f32 %v26, %v42
  %v49 = vmul.f32 %v27, %v42
  %v50 = vmul.f32 %v28, %v42
  %v51 = vmul.f32 %v29, %v42
  %v52 = vmul.f32 %v30, %v42
  %v53 = vmul.f32 %v31, %v42
  %v54 = vmul.f32 %v32, %v42
  %v55 = vmul.f32 %v33, %v42
  %v56 = vmul.f32 %v34, %v42
  %v57 = vmul.f32 %v35, %v42
  %v58 = vmul.f32 %v36, %v42
  %v59 = vmul.f32 %v37, %v42
  %v61 = vlaneseq
  %v62 = vshrl.u32 %v61, 7
  %v63 = vsub.s32 0, %v62
  %v64 = vrot.slane %v21, %v63
  %v66 = vadd.f32 %v44, %v64
  %v67 = vadd.f32 %v45, %v64
  %v68 = vadd.f32 %v46, %v64
  %v69 = vadd.f32 %v47, %v64
  %v70 = vadd.f32 %v48, %v64
  %v71 = vadd.f32 %v49, %v64
  %v72 = vadd.f32 %v50, %v64
  %v73 = vadd.f32 %v51, %v64
  %v74 = vadd.f32 %v52, %v64
  %v75 = vadd.f32 %v53, %v64
  %v76 = vadd.f32 %v54, %v64
  %v77 = vadd.f32 %v55, %v64
  %v78 = vadd.f32 %v56, %v64
  %v79 = vadd.f32 %v57, %v64
  %v80 = vadd.f32 %v58, %v64
  %v81 = vadd.f32 %v59, %v64
  %vm82 = vcmp.ge.f32.partialorder %v66, 0.0
  %vm83 = vcmp.ge.f32.partialorder %v67, 0.0
  %vm84 = vcmp.ge.f32.partialorder %v68, 0.0
  %vm85 = vcmp.ge.f32.partialorder %v69, 0.0
  %vm86 = vcmp.ge.f32.partialorder %v70, 0.0
  %vm87 = vcmp.ge.f32.partialorder %v71, 0.0
  %vm88 = vcmp.ge.f32.partialorder %v72, 0.0
  %vm89 = vcmp.ge.f32.partialorder %v73, 0.0
  %vm90 = vcmp.ge.f32.partialorder %v74, 0.0
  %vm91 = vcmp.ge.f32.partialorder %v75, 0.0
  %vm92 = vcmp.ge.f32.partialorder %v76, 0.0
  %vm93 = vcmp.ge.f32.partialorder %v77, 0.0
  %vm94 = vcmp.ge.f32.partialorder %v78, 0.0
  %vm95 = vcmp.ge.f32.partialorder %v79, 0.0
  %vm96 = vcmp.ge.f32.partialorder %v80, 0.0
  %vm97 = vcmp.ge.f32.partialorder %v81, 0.0
  %v98 = vmul.f32 %v66, 0.2
  %v99 = vmul.f32 %v67, 0.2
  %v100 = vmul.f32 %v68, 0.2
  %v101 = vmul.f32 %v69, 0.2
  %v102 = vmul.f32 %v70, 0.2
  %v103 = vmul.f32 %v71, 0.2
  %v104 = vmul.f32 %v72, 0.2
  %v105 = vmul.f32 %v73, 0.2
  %v106 = vmul.f32 %v74, 0.2
  %v107 = vmul.f32 %v75, 0.2
  %v108 = vmul.f32 %v76, 0.2
  %v109 = vmul.f32 %v77, 0.2
  %v110 = vmul.f32 %v78, 0.2
  %v111 = vmul.f32 %v79, 0.2
  %v112 = vmul.f32 %v80, 0.2
  %v113 = vmul.f32 %v81, 0.2
  %v114 = vsel %vm82, %v66, %v98
  %v115 = vsel %vm83, %v67, %v99
  %v116 = vsel %vm84, %v68, %v100
  %v117 = vsel %vm85, %v69, %v101
  %v118 = vsel %vm86, %v70, %v102
  %v119 = vsel %vm87, %v71, %v103
  %v120 = vsel %vm88, %v72, %v104
  %v121 = vsel %vm89, %v73, %v105
  %v122 = vsel %vm90, %v74, %v106
  %v123 = vsel %vm91, %v75, %v107
  %v124 = vsel %vm92, %v76, %v108
  %v125 = vsel %vm93, %v77, %v109
  %v126 = vsel %vm94, %v78, %v110
  %v127 = vsel %vm95, %v79, %v111
  %v128 = vsel %vm96, %v80, %v112
  %v129 = vsel %vm97, %v81, %v113
  %130 = vst [vmem:[#allocation2] sm:$0xff] 0.0
  %131 = vst [vmem:[#allocation2 + $0x8] sm:$0x3] 0.0
  %132 = vst [vmem:[#allocation2 + $0x10] sm:$0xff] 0.0
  %133 = vst [vmem:[#allocation2 + $0x18] sm:$0x3] 0.0
  %134 = vst [vmem:[#allocation2 + $0x20] sm:$0xff] 0.0
  %135 = vst [vmem:[#allocation2 + $0x28] sm:$0x3] 0.0
  %136 = vst [vmem:[#allocation2 + $0x30] sm:$0xff] 0.0
  %137 = vst [vmem:[#allocation2 + $0x38] sm:$0x3] 0.0
  %138 = vst [vmem:[#allocation2 + $0x40] sm:$0xff] 0.0
  %139 = vst [vmem:[#allocation2 + $0x48] sm:$0x3] 0.0
  %140 = vst [vmem:[#allocation2 + $0x50] sm:$0xff] 0.0
  %141 = vst [vmem:[#allocation2 + $0x58] sm:$0x3] 0.0
  %142 = vst [vmem:[#allocation2 + $0x60] sm:$0xff] 0.0
  %143 = vst [vmem:[#allocation2 + $0x68] sm:$0x3] 0.0
  %144 = vst [vmem:[#allocation2 + $0x70] sm:$0xff] 0.0
  %145 = vst [vmem:[#allocation2 + $0x78] sm:$0x3] 0.0
  %146 = vst [vmem:[#allocation2 + $0x80] sm:$0xff] 0.0
  %147 = vst [vmem:[#allocation2 + $0x88] sm:$0x3] 0.0
  %148 = vst [vmem:[#allocation2 + $0x90] sm:$0xff] 0.0
  %149 = vst [vmem:[#allocation2 + $0x98] sm:$0x3] 0.0
  %150 = vst [vmem:[#allocation2 + $0xa0] sm:$0xff] 0.0
  %151 = vst [vmem:[#allocation2 + $0xa8] sm:$0x3] 0.0
  %152 = vst [vmem:[#allocation2 + $0xb0] sm:$0xff] 0.0
  %153 = vst [vmem:[#allocation2 + $0xb8] sm:$0x3] 0.0
  %154 = vst [vmem:[#allocation2 + $0xc0] sm:$0xff] 0.0
  %155 = vst [vmem:[#allocation2 + $0xc8] sm:$0x3] 0.0
  %156 = vst [vmem:[#allocation2 + $0xd0] sm:$0xff] 0.0
  %157 = vst [vmem:[#allocation2 + $0xd8] sm:$0x3] 0.0
  %158 = vst [vmem:[#allocation2 + $0xe0] sm:$0xff] 0.0
  %159 = vst [vmem:[#allocation2 + $0xe8] sm:$0x3] 0.0
  %160 = vst [vmem:[#allocation2 + $0xf0] sm:$0xff] 0.0
  %161 = vst [vmem:[#allocation2 + $0xf8] sm:$0x3] 0.0
  %162 = vst [vmem:[#allocation2 + $0x100] sm:$0xff] 0.0
  %163 = vst [vmem:[#allocation2 + $0x108] sm:$0x3] 0.0
  %164 = vst [vmem:[#allocation2 + $0x110] sm:$0xff] 0.0
  %165 = vst [vmem:[#allocation2 + $0x118] sm:$0x3] 0.0
  %166 = vst [vmem:[#allocation2 + $0x120] sm:$0xff] 0.0
  %167 = vst [vmem:[#allocation2 + $0x128] sm:$0x3] 0.0
  %168 = vst [vmem:[#allocation2 + $0x130] sm:$0xff] 0.0
  %169 = vst [vmem:[#allocation2 + $0x138] sm:$0x3] 0.0
  %s170 = scalar_lea.vmem [#allocation2], 16
  %171 = vst [vmem:[%s170 + $0x1] sm:$0xff] %v114
  %172 = vst [vmem:[%s170 + $0x11] sm:$0xff] %v115
  %173 = vst [vmem:[%s170 + $0x21] sm:$0xff] %v116
  %174 = vst [vmem:[%s170 + $0x31] sm:$0xff] %v117
  %175 = vst [vmem:[%s170 + $0x41] sm:$0xff] %v118
  %176 = vst [vmem:[%s170 + $0x51] sm:$0xff] %v119
  %177 = vst [vmem:[%s170 + $0x61] sm:$0xff] %v120
  %178 = vst [vmem:[%s170 + $0x71] sm:$0xff] %v121
  %179 = vst [vmem:[%s170 + $0xa1] sm:$0xff] %v122
  %180 = vst [vmem:[%s170 + $0xb1] sm:$0xff] %v123
  %181 = vst [vmem:[%s170 + $0xc1] sm:$0xff] %v124
  %182 = vst [vmem:[%s170 + $0xd1] sm:$0xff] %v125
  %183 = vst [vmem:[%s170 + $0xe1] sm:$0xff] %v126
  %184 = vst [vmem:[%s170 + $0xf1] sm:$0xff] %v127
  %185 = vst [vmem:[%s170 + $0x101] sm:$0xff] %v128
  %186 = vst [vmem:[%s170 + $0x111] sm:$0xff] %v129
  %v187 = vld [vmem:[#allocation2] sm:$0xff]
  %v188 = vld [vmem:[#allocation2 + $0x10] sm:$0xff]
  %v189 = vld [vmem:[#allocation2 + $0x20] sm:$0xff]
  %v190 = vld [vmem:[#allocation2 + $0x30] sm:$0xff]
  %v191 = vld [vmem:[#allocation2 + $0x40] sm:$0xff]
  %v192 = vld [vmem:[#allocation2 + $0x50] sm:$0xff]
  %v193 = vld [vmem:[#allocation2 + $0x60] sm:$0xff]
  %v194 = vld [vmem:[#allocation2 + $0x70] sm:$0xff]
  %v195 = vld [vmem:[#allocation2 + $0x80] sm:$0xff]
  %v196 = vld [vmem:[#allocation2 + $0x90] sm:$0xff]
  %v197 = vld [vmem:[#allocation2 + $0xa0] sm:$0xff]
  %v198 = vld [vmem:[#allocation2 + $0xb0] sm:$0xff]
  %v199 = vld [vmem:[#allocation2 + $0xc0] sm:$0xff]
  %v200 = vld [vmem:[#allocation2 + $0xd0] sm:$0xff]
  %v201 = vld [vmem:[#allocation2 + $0xe0] sm:$0xff]
  %v202 = vld [vmem:[#allocation2 + $0xf0] sm:$0xff]
  %v203 = vld [vmem:[#allocation2 + $0x100] sm:$0xff]
  %v204 = vld [vmem:[#allocation2 + $0x110] sm:$0xff]
  %v205 = vld [vmem:[#allocation2 + $0x120] sm:$0xff]
  %v206 = vld [vmem:[#allocation2 + $0x130] sm:$0xff]
  %v207 = vld [vmem:[%s1] sm:$0xff]
  %v208 = vld [vmem:[%s1 + $0x8] sm:$0xff]
  %v209 = vld [vmem:[%s1 + $0x10] sm:$0xff]
  %v210 = vld [vmem:[%s1 + $0x18] sm:$0xff]
  %v211 = vld [vmem:[%s1 + $0x20] sm:$0xff]
  %v212 = vld [vmem:[%s1 + $0x28] sm:$0xff]
  %v213 = vld [vmem:[%s1 + $0x30] sm:$0xff]
  %v214 = vld [vmem:[%s1 + $0x38] sm:$0xff]
  %v215 = vld [vmem:[%s1 + $0x40] sm:$0xff]
  %v216 = vld [vmem:[%s1 + $0x48] sm:$0xff]
  %v217 = vld [vmem:[%s1 + $0x50] sm:$0xff]
  %v218 = vld [vmem:[%s1 + $0x58] sm:$0xff]
  %v219 = vld [vmem:[%s1 + $0x60] sm:$0xff]
  %v220 = vld [vmem:[%s1 + $0x68] sm:$0xff]
  %v221 = vld [vmem:[%s1 + $0x70] sm:$0xff]
  %v222 = vld [vmem:[%s1 + $0x78] sm:$0xff]
  %s223 = scalar_lea.vmem %s1, 384
  %v224 = vld [vmem:[%s223] sm:$0xff]
  %v225 = vld [vmem:[%s223 + $0x8] sm:$0xff]
  %v226 = vld [vmem:[%s223 + $0x10] sm:$0xff]
  %v227 = vld [vmem:[%s223 + $0x18] sm:$0xff]
  %v228 = vld [vmem:[%s223 + $0x20] sm:$0xff]
  %v229 = vld [vmem:[%s223 + $0x28] sm:$0xff]
  %v230 = vld [vmem:[%s223 + $0x30] sm:$0xff]
  %v231 = vld [vmem:[%s223 + $0x38] sm:$0xff]
  %v232 = vld [vmem:[%s223 + $0x40] sm:$0xff]
  %v233 = vld [vmem:[%s223 + $0x48] sm:$0xff]
  %v234 = vld [vmem:[%s223 + $0x50] sm:$0xff]
  %v235 = vld [vmem:[%s223 + $0x58] sm:$0xff]
  %v236 = vld [vmem:[%s223 + $0x60] sm:$0xff]
  %v237 = vld [vmem:[%s223 + $0x68] sm:$0xff]
  %v238 = vld [vmem:[%s223 + $0x70] sm:$0xff]
  %v239 = vld [vmem:[%s223 + $0x78] sm:$0xff]
  %240 = vmatprep.subr.mxu0 0.0
  %241 = vmatpush1.msra.mxu0 %v224
  %242 = vmatprep.subr.mxu0 0.0
  %243 = vmatpush1.msra.mxu0 %v225
  %244 = vmatprep.subr.mxu0 0.0
  %245 = vmatpush1.msra.mxu0 %v226
  %246 = vmatprep.subr.mxu0 0.0
  %247 = vmatpush1.msra.mxu0 %v227
  %248 = vmatprep.subr.mxu0 0.0
  %249 = vmatpush1.msra.mxu0 %v228
  %250 = vmatprep.subr.mxu0 0.0
  %251 = vmatpush1.msra.mxu0 %v229
  %252 = vmatprep.subr.mxu0 0.0
  %253 = vmatpush1.msra.mxu0 %v230
  %254 = vmatprep.subr.mxu0 0.0
  %255 = vmatpush1.msra.mxu0 %v231
  %256 = vmatprep.subr.mxu0 0.0
  %257 = vmatpush1.msra.mxu0 %v232
  %258 = vmatprep.subr.mxu0 0.0
  %259 = vmatpush1.msra.mxu0 %v233
  %260 = vmatprep.subr.mxu0 0.0
  %261 = vmatpush1.msra.mxu0 %v234
  %262 = vmatprep.subr.mxu0 0.0
  %263 = vmatpush1.msra.mxu0 %v235
  %264 = vmatprep.subr.mxu0 0.0
  %265 = vmatpush1.msra.mxu0 %v236
  %266 = vmatprep.subr.mxu0 0.0
  %267 = vmatpush1.msra.mxu0 %v237
  %268 = vmatprep.subr.mxu0 0.0
  %269 = vmatpush1.msra.mxu0 %v238
  %270 = vmatprep.subr.mxu0 0.0
  %271 = vmatpush1.msra.mxu0 %v239
  %272 = vmatprep.subr.mxu0 0.0
  %273 = vmatpush1.msra.mxu0 0.0
  %274 = vmatprep.subr.mxu0 0.0
  %275 = vmatpush1.msra.mxu0 0.0
  %276 = vmatprep.subr.mxu0 0.0
  %277 = vmatpush1.msra.mxu0 0.0
  %278 = vmatprep.subr.mxu0 0.0
  %279 = vmatpush1.msra.mxu0 0.0
  %280 = vmatprep.subr.mxu0 0.0
  %281 = vmatpush1.msra.mxu0 0.0
  %282 = vmatprep.subr.mxu0 0.0
  %283 = vmatpush1.msra.mxu0 0.0
  %284 = vmatprep.subr.mxu0 0.0
  %285 = vmatpush1.msra.mxu0 0.0
  %286 = vmatprep.subr.mxu0 0.0
  %287 = vmatpush1.msra.mxu0 0.0
  %288 = vmatprep.subr.mxu0 0.0
  %289 = vmatpush1.msra.mxu0 0.0
  %290 = vmatprep.subr.mxu0 0.0
  %291 = vmatpush1.msra.mxu0 0.0
  %292 = vmatprep.subr.mxu0 0.0
  %293 = vmatpush1.msra.mxu0 0.0
  %294 = vmatprep.subr.mxu0 0.0
  %295 = vmatpush1.msra.mxu0 0.0
  %296 = vmatprep.subr.mxu0 0.0
  %297 = vmatpush1.msra.mxu0 0.0
  %298 = vmatprep.subr.mxu0 0.0
  %299 = vmatpush1.msra.mxu0 0.0
  %300 = vmatprep.subr.mxu0 0.0
  %301 = vmatpush1.msra.mxu0 0.0
  %302 = vmatprep.subr.mxu0 0.0
  %303 = vmatpush1.msra.mxu0 0.0
  %304 = vmatprep.mubr.f32.mxu0 0.0
  %305 = vmatmul.mubr.f32.gmra.mrb[0].mxu0 %v188
  %v306 = vpop.f32.mrb[0].mxu0
  %v307 = vadd.f32 0.0, %v306
  %v308 = vpop.f32.mrb[0].mxu0
  %309 = vmatprep.mubr.f32.mxu0 0.0
  %310 = vmatmul.mubr.f32.gmra.mrb[0].mxu0 %v189
  %v311 = vpop.f32.mrb[0].mxu0
  %v312 = vadd.f32 0.0, %v311
  %v313 = vpop.f32.mrb[0].mxu0
  %314 = vmatprep.mubr.f32.mxu0 0.0
  %315 = vmatmul.mubr.f32.gmra.mrb[0].mxu0 %v190
  %v316 = vpop.f32.mrb[0].mxu0
  %v317 = vadd.f32 0.0, %v316
  %v318 = vpop.f32.mrb[0].mxu0
  %319 = vmatprep.mubr.f32.mxu0 0.0
  %320 = vmatmul.mubr.f32.gmra.mrb[0].mxu0 %v191
  %v321 = vpop.f32.mrb[0].mxu0
  %v322 = vadd.f32 0.0, %v321
  %v323 = vpop.f32.mrb[0].mxu0
  %324 = vmatprep.mubr.f32.mxu0 0.0
  %325 = vmatmul.mubr.f32.gmra.mrb[0].mxu0 %v192
  %v326 = vpop.f32.mrb[0].mxu0
  %v327 = vadd.f32 0.0, %v326
  %v328 = vpop.f32.mrb[0].mxu0
  %329 = vmatprep.mubr.f32.mxu0 0.0
  %330 = vmatmul.mubr.f32.gmra.mrb[0].mxu0 %v193
  %v331 = vpop.f32.mrb[0].mxu0
  %v332 = vadd.f32 0.0, %v331
  %v333 = vpop.f32.mrb[0].mxu0
  %334 = vmatprep.mubr.f32.mxu0 0.0
  %335 = vmatmul.mubr.f32.gmra.mrb[0].mxu0 %v194
  %v336 = vpop.f32.mrb[0].mxu0
  %v337 = vadd.f32 0.0, %v336
  %v338 = vpop.f32.mrb[0].mxu0
  %339 = vmatprep.mubr.f32.mxu0 0.0
  %340 = vmatmul.mubr.f32.gmra.mrb[0].mxu0 %v195
  %v341 = vpop.f32.mrb[0].mxu0
  %v342 = vadd.f32 0.0, %v341
  %v343 = vpop.f32.mrb[0].mxu0
  %344 = vmatprep.mubr.f32.mxu0 0.0
  %345 = vmatmul.mubr.f32.gmra.mrb[0].mxu0 %v198
  %v346 = vpop.f32.mrb[0].mxu0
  %v347 = vadd.f32 0.0, %v346
  %v348 = vpop.f32.mrb[0].mxu0
  %349 = vmatprep.mubr.f32.mxu0 0.0
  %350 = vmatmul.mubr.f32.gmra.mrb[0].mxu0 %v199
  %v351 = vpop.f32.mrb[0].mxu0
  %v352 = vadd.f32 0.0, %v351
  %v353 = vpop.f32.mrb[0].mxu0
  %354 = vmatprep.mubr.f32.mxu0 0.0
  %355 = vmatmul.mubr.f32.gmra.mrb[0].mxu0 %v200
  %v356 = vpop.f32.mrb[0].mxu0
  %v357 = vadd.f32 0.0, %v356
  %v358 = vpop.f32.mrb[0].mxu0
  %359 = vmatprep.mubr.f32.mxu0 0.0
  %360 = vmatmul.mubr.f32.gmra.mrb[0].mxu0 %v201
  %v361 = vpop.f32.mrb[0].mxu0
  %v362 = vadd.f32 0.0, %v361
  %v363 = vpop.f32.mrb[0].mxu0
  %364 = vmatprep.mubr.f32.mxu0 0.0
  %365 = vmatmul.mubr.f32.gmra.mrb[0].mxu0 %v202
  %v366 = vpop.f32.mrb[0].mxu0
  %v367 = vadd.f32 0.0, %v366
  %v368 = vpop.f32.mrb[0].mxu0
  %369 = vmatprep.mubr.f32.mxu0 0.0
  %370 = vmatmul.mubr.f32.gmra.mrb[0].mxu0 %v203
  %v371 = vpop.f32.mrb[0].mxu0
  %v372 = vadd.f32 0.0, %v371
  %v373 = vpop.f32.mrb[0].mxu0
  %374 = vmatprep.mubr.f32.mxu0 0.0
  %375 = vmatmul.mubr.f32.gmra.mrb[0].mxu0 %v204
  %v376 = vpop.f32.mrb[0].mxu0
  %v377 = vadd.f32 0.0, %v376
  %v378 = vpop.f32.mrb[0].mxu0
  %379 = vmatprep.mubr.f32.mxu0 0.0
  %380 = vmatmul.mubr.f32.gmra.mrb[0].mxu0 %v205
  %v381 = vpop.f32.mrb[0].mxu0
  %v382 = vadd.f32 0.0, %v381
  %v383 = vpop.f32.mrb[0].mxu0
  %384 = vdwg.mxu0
  %385 = vmatprep.subr.mxu0 0.0
  %386 = vmatpush1.msra.mxu0 %v207
  %387 = vmatprep.subr.mxu0 0.0
  %388 = vmatpush1.msra.mxu0 %v208
  %389 = vmatprep.subr.mxu0 0.0
  %390 = vmatpush1.msra.mxu0 %v209
  %391 = vmatprep.subr.mxu0 0.0
  %392 = vmatpush1.msra.mxu0 %v210
  %393 = vmatprep.subr.mxu0 0.0
  %394 = vmatpush1.msra.mxu0 %v211
  %395 = vmatprep.subr.mxu0 0.0
  %396 = vmatpush1.msra.mxu0 %v212
  %397 = vmatprep.subr.mxu0 0.0
  %398 = vmatpush1.msra.mxu0 %v213
  %399 = vmatprep.subr.mxu0 0.0
  %400 = vmatpush1.msra.mxu0 %v214
  %401 = vmatprep.subr.mxu0 0.0
  %402 = vmatpush1.msra.mxu0 %v215
  %403 = vmatprep.subr.mxu0 0.0
  %404 = vmatpush1.msra.mxu0 %v216
  %405 = vmatprep.subr.mxu0 0.0
  %406 = vmatpush1.msra.mxu0 %v217
  %407 = vmatprep.subr.mxu0 0.0
  %408 = vmatpush1.msra.mxu0 %v218
  %409 = vmatprep.subr.mxu0 0.0
  %410 = vmatpush1.msra.mxu0 %v219
  %411 = vmatprep.subr.mxu0 0.0
  %412 = vmatpush1.msra.mxu0 %v220
  %413 = vmatprep.subr.mxu0 0.0
  %414 = vmatpush1.msra.mxu0 %v221
  %415 = vmatprep.subr.mxu0 0.0
  %416 = vmatpush1.msra.mxu0 %v222
  %417 = vmatprep.subr.mxu0 0.0
  %418 = vmatpush1.msra.mxu0 0.0
  %419 = vmatprep.subr.mxu0 0.0
  %420 = vmatpush1.msra.mxu0 0.0
  %421 = vmatprep.subr.mxu0 0.0
  %422 = vmatpush1.msra.mxu0 0.0
  %423 = vmatprep.subr.mxu0 0.0
  %424 = vmatpush1.msra.mxu0 0.0
  %425 = vmatprep.subr.mxu0 0.0
  %426 = vmatpush1.msra.mxu0 0.0
  %427 = vmatprep.subr.mxu0 0.0
  %428 = vmatpush1.msra.mxu0 0.0
  %429 = vmatprep.subr.mxu0 0.0
  %430 = vmatpush1.msra.mxu0 0.0
  %431 = vmatprep.subr.mxu0 0.0
  %432 = vmatpush1.msra.mxu0 0.0
  %433 = vmatprep.subr.mxu0 0.0
  %434 = vmatpush1.msra.mxu0 0.0
  %435 = vmatprep.subr.mxu0 0.0
  %436 = vmatpush1.msra.mxu0 0.0
  %437 = vmatprep.subr.mxu0 0.0
  %438 = vmatpush1.msra.mxu0 0.0
  %439 = vmatprep.subr.mxu0 0.0
  %440 = vmatpush1.msra.mxu0 0.0
  %441 = vmatprep.subr.mxu0 0.0
  %442 = vmatpush1.msra.mxu0 0.0
  %443 = vmatprep.subr.mxu0 0.0
  %444 = vmatpush1.msra.mxu0 0.0
  %445 = vmatprep.subr.mxu0 0.0
  %446 = vmatpush1.msra.mxu0 0.0
  %447 = vmatprep.subr.mxu0 0.0
  %448 = vmatpush1.msra.mxu0 0.0
  %449 = vmatprep.mubr.f32.mxu0 0.0
  %450 = vmatmul.mubr.f32.gmra.mrb[0].mxu0 %v187
  %v451 = vpop.f32.mrb[0].mxu0
  %v452 = vadd.f32 %v307, %v451
  %v453 = vpop.f32.mrb[0].mxu0
  %454 = vmatprep.mubr.f32.mxu0 0.0
  %455 = vmatmul.mubr.f32.gmra.mrb[0].mxu0 %v188
  %v456 = vpop.f32.mrb[0].mxu0
  %v457 = vadd.f32 %v312, %v456
  %v458 = vpop.f32.mrb[0].mxu0
  %459 = vmatprep.mubr.f32.mxu0 0.0
  %460 = vmatmul.mubr.f32.gmra.mrb[0].mxu0 %v189
  %v461 = vpop.f32.mrb[0].mxu0
  %v462 = vadd.f32 %v317, %v461
  %v463 = vpop.f32.mrb[0].mxu0
  %464 = vmatprep.mubr.f32.mxu0 0.0
  %465 = vmatmul.mubr.f32.gmra.mrb[0].mxu0 %v190
  %v466 = vpop.f32.mrb[0].mxu0
  %v467 = vadd.f32 %v322, %v466
  %v468 = vpop.f32.mrb[0].mxu0
  %469 = vmatprep.mubr.f32.mxu0 0.0
  %470 = vmatmul.mubr.f32.gmra.mrb[0].mxu0 %v191
  %v471 = vpop.f32.mrb[0].mxu0
  %v472 = vadd.f32 %v327, %v471
  %v473 = vpop.f32.mrb[0].mxu0
  %474 = vmatprep.mubr.f32.mxu0 0.0
  %475 = vmatmul.mubr.f32.gmra.mrb[0].mxu0 %v192
  %v476 = vpop.f32.mrb[0].mxu0
  %v477 = vadd.f32 %v332, %v476
  %v478 = vpop.f32.mrb[0].mxu0
  %479 = vmatprep.mubr.f32.mxu0 0.0
  %480 = vmatmul.mubr.f32.gmra.mrb[0].mxu0 %v193
  %v481 = vpop.f32.mrb[0].mxu0
  %v482 = vadd.f32 %v337, %v481
  %v483 = vpop.f32.mrb[0].mxu0
  %484 = vmatprep.mubr.f32.mxu0 0.0
  %485 = vmatmul.mubr.f32.gmra.mrb[0].mxu0 %v194
  %v486 = vpop.f32.mrb[0].mxu0
  %v487 = vadd.f32 %v342, %v486
  %v488 = vpop.f32.mrb[0].mxu0
  %489 = vmatprep.mubr.f32.mxu0 0.0
  %490 = vmatmul.mubr.f32.gmra.mrb[0].mxu0 %v197
  %v491 = vpop.f32.mrb[0].mxu0
  %v492 = vadd.f32 %v347, %v491
  %v493 = vpop.f32.mrb[0].mxu0
  %494 = vmatprep.mubr.f32.mxu0 0.0
  %495 = vmatmul.mubr.f32.gmra.mrb[0].mxu0 %v198
  %v496 = vpop.f32.mrb[0].mxu0
  %v497 = vadd.f32 %v352, %v496
  %v498 = vpop.f32.mrb[0].mxu0
  %499 = vmatprep.mubr.f32.mxu0 0.0
  %500 = vmatmul.mubr.f32.gmra.mrb[0].mxu0 %v199
  %v501 = vpop.f32.mrb[0].mxu0
  %v502 = vadd.f32 %v357, %v501
  %v503 = vpop.f32.mrb[0].mxu0
  %504 = vmatprep.mubr.f32.mxu0 0.0
  %505 = vmatmul.mubr.f32.gmra.mrb[0].mxu0 %v200
  %v506 = vpop.f32.mrb[0].mxu0
  %v507 = vadd.f32 %v362, %v506
  %v508 = vpop.f32.mrb[0].mxu0
  %509 = vmatprep.mubr.f32.mxu0 0.0
  %510 = vmatmul.mubr.f32.gmra.mrb[0].mxu0 %v201
  %v511 = vpop.f32.mrb[0].mxu0
  %v512 = vadd.f32 %v367, %v511
  %v513 = vpop.f32.mrb[0].mxu0
  %514 = vmatprep.mubr.f32.mxu0 0.0
  %515 = vmatmul.mubr.f32.gmra.mrb[0].mxu0 %v202
  %v516 = vpop.f32.mrb[0].mxu0
  %v517 = vadd.f32 %v372, %v516
  %v518 = vpop.f32.mrb[0].mxu0
  %519 = vmatprep.mubr.f32.mxu0 0.0
  %520 = vmatmul.mubr.f32.gmra.mrb[0].mxu0 %v203
  %v521 = vpop.f32.mrb[0].mxu0
  %v522 = vadd.f32 %v377, %v521
  %v523 = vpop.f32.mrb[0].mxu0
  %524 = vmatprep.mubr.f32.mxu0 0.0
  %525 = vmatmul.mubr.f32.gmra.mrb[0].mxu0 %v204
  %v526 = vpop.f32.mrb[0].mxu0
  %v527 = vadd.f32 %v382, %v526
  %v528 = vpop.f32.mrb[0].mxu0
  %529 = vdwg.mxu0
  %s530 = scalar_lea.vmem %s1, 768
  %v531 = vld [vmem:[%s530] sm:$0xff]
  %v532 = vld [vmem:[%s530 + $0x8] sm:$0xff]
  %v533 = vld [vmem:[%s530 + $0x10] sm:$0xff]
  %v534 = vld [vmem:[%s530 + $0x18] sm:$0xff]
  %v535 = vld [vmem:[%s530 + $0x20] sm:$0xff]
  %v536 = vld [vmem:[%s530 + $0x28] sm:$0xff]
  %v537 = vld [vmem:[%s530 + $0x30] sm:$0xff]
  %v538 = vld [vmem:[%s530 + $0x38] sm:$0xff]
  %v539 = vld [vmem:[%s530 + $0x40] sm:$0xff]
  %v540 = vld [vmem:[%s530 + $0x48] sm:$0xff]
  %v541 = vld [vmem:[%s530 + $0x50] sm:$0xff]
  %v542 = vld [vmem:[%s530 + $0x58] sm:$0xff]
  %v543 = vld [vmem:[%s530 + $0x60] sm:$0xff]
  %v544 = vld [vmem:[%s530 + $0x68] sm:$0xff]
  %v545 = vld [vmem:[%s530 + $0x70] sm:$0xff]
  %v546 = vld [vmem:[%s530 + $0x78] sm:$0xff]
  %547 = vmatprep.subr.mxu0 0.0
  %548 = vmatpush1.msra.mxu0 %v531
  %549 = vmatprep.subr.mxu0 0.0
  %550 = vmatpush1.msra.mxu0 %v532
  %551 = vmatprep.subr.mxu0 0.0
  %552 = vmatpush1.msra.mxu0 %v533
  %553 = vmatprep.subr.mxu0 0.0
  %554 = vmatpush1.msra.mxu0 %v534
  %555 = vmatprep.subr.mxu0 0.0
  %556 = vmatpush1.msra.mxu0 %v535
  %557 = vmatprep.subr.mxu0 0.0
  %558 = vmatpush1.msra.mxu0 %v536
  %559 = vmatprep.subr.mxu0 0.0
  %560 = vmatpush1.msra.mxu0 %v537
  %561 = vmatprep.subr.mxu0 0.0
  %562 = vmatpush1.msra.mxu0 %v538
  %563 = vmatprep.subr.mxu0 0.0
  %564 = vmatpush1.msra.mxu0 %v539
  %565 = vmatprep.subr.mxu0 0.0
  %566 = vmatpush1.msra.mxu0 %v540
  %567 = vmatprep.subr.mxu0 0.0
  %568 = vmatpush1.msra.mxu0 %v541
  %569 = vmatprep.subr.mxu0 0.0
  %570 = vmatpush1.msra.mxu0 %v542
  %571 = vmatprep.subr.mxu0 0.0
  %572 = vmatpush1.msra.mxu0 %v543
  %573 = vmatprep.subr.mxu0 0.0
  %574 = vmatpush1.msra.mxu0 %v544
  %575 = vmatprep.subr.mxu0 0.0
  %576 = vmatpush1.msra.mxu0 %v545
  %577 = vmatprep.subr.mxu0 0.0
  %578 = vmatpush1.msra.mxu0 %v546
  %579 = vmatprep.subr.mxu0 0.0
  %580 = vmatpush1.msra.mxu0 0.0
  %581 = vmatprep.subr.mxu0 0.0
  %582 = vmatpush1.msra.mxu0 0.0
  %583 = vmatprep.subr.mxu0 0.0
  %584 = vmatpush1.msra.mxu0 0.0
  %585 = vmatprep.subr.mxu0 0.0
  %586 = vmatpush1.msra.mxu0 0.0
  %587 = vmatprep.subr.mxu0 0.0
  %588 = vmatpush1.msra.mxu0 0.0
  %589 = vmatprep.subr.mxu0 0.0
  %590 = vmatpush1.msra.mxu0 0.0
  %591 = vmatprep.subr.mxu0 0.0
  %592 = vmatpush1.msra.mxu0 0.0
  %593 = vmatprep.subr.mxu0 0.0
  %594 = vmatpush1.msra.mxu0 0.0
  %595 = vmatprep.subr.mxu0 0.0
  %596 = vmatpush1.msra.mxu0 0.0
  %597 = vmatprep.subr.mxu0 0.0
  %598 = vmatpush1.msra.mxu0 0.0
  %599 = vmatprep.subr.mxu0 0.0
  %600 = vmatpush1.msra.mxu0 0.0
  %601 = vmatprep.subr.mxu0 0.0
  %602 = vmatpush1.msra.mxu0 0.0
  %603 = vmatprep.subr.mxu0 0.0
  %604 = vmatpush1.msra.mxu0 0.0
  %605 = vmatprep.subr.mxu0 0.0
  %606 = vmatpush1.msra.mxu0 0.0
  %607 = vmatprep.subr.mxu0 0.0
  %608 = vmatpush1.msra.mxu0 0.0
  %609 = vmatprep.subr.mxu0 0.0
  %610 = vmatpush1.msra.mxu0 0.0
  %611 = vmatprep.mubr.f32.mxu0 0.0
  %612 = vmatmul.mubr.f32.gmra.mrb[0].mxu0 %v189
  %v613 = vpop.f32.mrb[0].mxu0
  %v614 = vadd.f32 0.0, %v613
  %v615 = vpop.f32.mrb[0].mxu0
  %616 = vmatprep.mubr.f32.mxu0 0.0
  %617 = vmatmul.mubr.f32.gmra.mrb[0].mxu0 %v190
  %v618 = vpop.f32.mrb[0].mxu0
  %v619 = vadd.f32 0.0, %v618
  %v620 = vpop.f32.mrb[0].mxu0
  %621 = vmatprep.mubr.f32.mxu0 0.0
  %622 = vmatmul.mubr.f32.gmra.mrb[0].mxu0 %v191
  %v623 = vpop.f32.mrb[0].mxu0
  %v624 = vadd.f32 0.0, %v623
  %v625 = vpop.f32.mrb[0].mxu0
  %626 = vmatprep.mubr.f32.mxu0 0.0
  %627 = vmatmul.mubr.f32.gmra.mrb[0].mxu0 %v192
  %v628 = vpop.f32.mrb[0].mxu0
  %v629 = vadd.f32 0.0, %v628
  %v630 = vpop.f32.mrb[0].mxu0
  %631 = vmatprep.mubr.f32.mxu0 0.0
  %632 = vmatmul.mubr.f32.gmra.mrb[0].mxu0 %v193
  %v633 = vpop.f32.mrb[0].mxu0
  %v634 = vadd.f32 0.0, %v633
  %v635 = vpop.f32.mrb[0].mxu0
  %636 = vmatprep.mubr.f32.mxu0 0.0
  %637 = vmatmul.mubr.f32.gmra.mrb[0].mxu0 %v194
  %v638 = vpop.f32.mrb[0].mxu0
  %v639 = vadd.f32 0.0, %v638
  %v640 = vpop.f32.mrb[0].mxu0
  %641 = vmatprep.mubr.f32.mxu0 0.0
  %642 = vmatmul.mubr.f32.gmra.mrb[0].mxu0 %v195
  %v643 = vpop.f32.mrb[0].mxu0
  %v644 = vadd.f32 0.0, %v643
  %v645 = vpop.f32.mrb[0].mxu0
  %646 = vmatprep.mubr.f32.mxu0 0.0
  %647 = vmatmul.mubr.f32.gmra.mrb[0].mxu0 %v196
  %v648 = vpop.f32.mrb[0].mxu0
  %v649 = vadd.f32 0.0, %v648
  %v650 = vpop.f32.mrb[0].mxu0
  %651 = vmatprep.mubr.f32.mxu0 0.0
  %652 = vmatmul.mubr.f32.gmra.mrb[0].mxu0 %v199
  %v653 = vpop.f32.mrb[0].mxu0
  %v654 = vadd.f32 0.0, %v653
  %v655 = vpop.f32.mrb[0].mxu0
  %656 = vmatprep.mubr.f32.mxu0 0.0
  %657 = vmatmul.mubr.f32.gmra.mrb[0].mxu0 %v200
  %v658 = vpop.f32.mrb[0].mxu0
  %v659 = vadd.f32 0.0, %v658
  %v660 = vpop.f32.mrb[0].mxu0
  %661 = vmatprep.mubr.f32.mxu0 0.0
  %662 = vmatmul.mubr.f32.gmra.mrb[0].mxu0 %v201
  %v663 = vpop.f32.mrb[0].mxu0
  %v664 = vadd.f32 0.0, %v663
  %v665 = vpop.f32.mrb[0].mxu0
  %666 = vmatprep.mubr.f32.mxu0 0.0
  %667 = vmatmul.mubr.f32.gmra.mrb[0].mxu0 %v202
  %v668 = vpop.f32.mrb[0].mxu0
  %v669 = vadd.f32 0.0, %v668
  %v670 = vpop.f32.mrb[0].mxu0
  %671 = vmatprep.mubr.f32.mxu0 0.0
  %672 = vmatmul.mubr.f32.gmra.mrb[0].mxu0 %v203
  %v673 = vpop.f32.mrb[0].mxu0
  %v674 = vadd.f32 0.0, %v673
  %v675 = vpop.f32.mrb[0].mxu0
  %676 = vmatprep.mubr.f32.mxu0 0.0
  %677 = vmatmul.mubr.f32.gmra.mrb[0].mxu0 %v204
  %v678 = vpop.f32.mrb[0].mxu0
  %v679 = vadd.f32 0.0, %v678
  %v680 = vpop.f32.mrb[0].mxu0
  %681 = vmatprep.mubr.f32.mxu0 0.0
  %682 = vmatmul.mubr.f32.gmra.mrb[0].mxu0 %v205
  %v683 = vpop.f32.mrb[0].mxu0
  %v684 = vadd.f32 0.0, %v683
  %v685 = vpop.f32.mrb[0].mxu0
  %686 = vmatprep.mubr.f32.mxu0 0.0
  %687 = vmatmul.mubr.f32.gmra.mrb[0].mxu0 %v206
  %v688 = vpop.f32.mrb[0].mxu0
  %v689 = vadd.f32 0.0, %v688
  %v690 = vpop.f32.mrb[0].mxu0
  %691 = vdwg.mxu0
  %v692 = vadd.f32 %v452, %v614
  %v693 = vadd.f32 %v457, %v619
  %v694 = vadd.f32 %v462, %v624
  %v695 = vadd.f32 %v467, %v629
  %v696 = vadd.f32 %v472, %v634
  %v697 = vadd.f32 %v477, %v639
  %v698 = vadd.f32 %v482, %v644
  %v699 = vadd.f32 %v487, %v649
  %v700 = vadd.f32 %v492, %v654
  %v701 = vadd.f32 %v497, %v659
  %v702 = vadd.f32 %v502, %v664
  %v703 = vadd.f32 %v507, %v669
  %v704 = vadd.f32 %v512, %v674
  %v705 = vadd.f32 %v517, %v679
  %v706 = vadd.f32 %v522, %v684
  %v707 = vadd.f32 %v527, %v689
  %v708 = vld [vmem:[#allocation2 + $0x1] sm:$0xff]
  %v709 = vld [vmem:[#allocation2 + $0x11] sm:$0xff]
  %v710 = vld [vmem:[#allocation2 + $0x21] sm:$0xff]
  %v711 = vld [vmem:[#allocation2 + $0x31] sm:$0xff]
  %v712 = vld [vmem:[#allocation2 + $0x41] sm:$0xff]
  %v713 = vld [vmem:[#allocation2 + $0x51] sm:$0xff]
  %v714 = vld [vmem:[#allocation2 + $0x61] sm:$0xff]
  %v715 = vld [vmem:[#allocation2 + $0x71] sm:$0xff]
  %v716 = vld [vmem:[#allocation2 + $0x81] sm:$0xff]
  %v717 = vld [vmem:[#allocation2 + $0x91] sm:$0xff]
  %v718 = vld [vmem:[#allocation2 + $0xa1] sm:$0xff]
  %v719 = vld [vmem:[#allocation2 + $0xb1] sm:$0xff]
  %v720 = vld [vmem:[#allocation2 + $0xc1] sm:$0xff]
  %v721 = vld [vmem:[#allocation2 + $0xd1] sm:$0xff]
  %v722 = vld [vmem:[#allocation2 + $0xe1] sm:$0xff]
  %v723 = vld [vmem:[#allocation2 + $0xf1] sm:$0xff]
  %v724 = vld [vmem:[#allocation2 + $0x101] sm:$0xff]
  %v725 = vld [vmem:[#allocation2 + $0x111] sm:$0xff]
  %v726 = vld [vmem:[#allocation2 + $0x121] sm:$0xff]
  %v727 = vld [vmem:[#allocation2 + $0x131] sm:$0xff]
  %s728 = scalar_lea.vmem %s1, 128
  %v729 = vld [vmem:[%s728] sm:$0xff]
  %v730 = vld [vmem:[%s728 + $0x8] sm:$0xff]
  %v731 = vld [vmem:[%s728 + $0x10] sm:$0xff]
  %v732 = vld [vmem:[%s728 + $0x18] sm:$0xff]
  %v733 = vld [vmem:[%s728 + $0x20] sm:$0xff]
  %v734 = vld [vmem:[%s728 + $0x28] sm:$0xff]
  %v735 = vld [vmem:[%s728 + $0x30] sm:$0xff]
  %v736 = vld [vmem:[%s728 + $0x38] sm:$0xff]
  %v737 = vld [vmem:[%s728 + $0x40] sm:$0xff]
  %v738 = vld [vmem:[%s728 + $0x48] sm:$0xff]
  %v739 = vld [vmem:[%s728 + $0x50] sm:$0xff]
  %v740 = vld [vmem:[%s728 + $0x58] sm:$0xff]
  %v741 = vld [vmem:[%s728 + $0x60] sm:$0xff]
  %v742 = vld [vmem:[%s728 + $0x68] sm:$0xff]
  %v743 = vld [vmem:[%s728 + $0x70] sm:$0xff]
  %v744 = vld [vmem:[%s728 + $0x78] sm:$0xff]
  %745 = vmatprep.subr.mxu0 0.0
  %746 = vmatpush1.msra.mxu0 %v729
  %747 = vmatprep.subr.mxu0 0.0
  %748 = vmatpush1.msra.mxu0 %v730
  %749 = vmatprep.subr.mxu0 0.0
  %750 = vmatpush1.msra.mxu0 %v731
  %751 = vmatprep.subr.mxu0 0.0
  %752 = vmatpush1.msra.mxu0 %v732
  %753 = vmatprep.subr.mxu0 0.0
  %754 = vmatpush1.msra.mxu0 %v733
  %755 = vmatprep.subr.mxu0 0.0
  %756 = vmatpush1.msra.mxu0 %v734
  %757 = vmatprep.subr.mxu0 0.0
  %758 = vmatpush1.msra.mxu0 %v735
  %759 = vmatprep.subr.mxu0 0.0
  %760 = vmatpush1.msra.mxu0 %v736
  %761 = vmatprep.subr.mxu0 0.0
  %762 = vmatpush1.msra.mxu0 %v737
  %763 = vmatprep.subr.mxu0 0.0
  %764 = vmatpush1.msra.mxu0 %v738
  %765 = vmatprep.subr.mxu0 0.0
  %766 = vmatpush1.msra.mxu0 %v739
  %767 = vmatprep.subr.mxu0 0.0
  %768 = vmatpush1.msra.mxu0 %v740
  %769 = vmatprep.subr.mxu0 0.0
  %770 = vmatpush1.msra.mxu0 %v741
  %771 = vmatprep.subr.mxu0 0.0
  %772 = vmatpush1.msra.mxu0 %v742
  %773 = vmatprep.subr.mxu0 0.0
  %774 = vmatpush1.msra.mxu0 %v743
  %775 = vmatprep.subr.mxu0 0.0
  %776 = vmatpush1.msra.mxu0 %v744
  %777 = vmatprep.subr.mxu0 0.0
  %778 = vmatpush1.msra.mxu0 0.0
  %779 = vmatprep.subr.mxu0 0.0
  %780 = vmatpush1.msra.mxu0 0.0
  %781 = vmatprep.subr.mxu0 0.0
  %782 = vmatpush1.msra.mxu0 0.0
  %783 = vmatprep.subr.mxu0 0.0
  %784 = vmatpush1.msra.mxu0 0.0
  %785 = vmatprep.subr.mxu0 0.0
  %786 = vmatpush1.msra.mxu0 0.0
  %787 = vmatprep.subr.mxu0 0.0
  %788 = vmatpush1.msra.mxu0 0.0
  %789 = vmatprep.subr.mxu0 0.0
  %790 = vmatpush1.msra.mxu0 0.0
  %791 = vmatprep.subr.mxu0 0.0
  %792 = vmatpush1.msra.mxu0 0.0
  %793 = vmatprep.subr.mxu0 0.0
  %794 = vmatpush1.msra.mxu0 0.0
  %795 = vmatprep.subr.mxu0 0.0
  %796 = vmatpush1.msra.mxu0 0.0
  %797 = vmatprep.subr.mxu0 0.0
  %798 = vmatpush1.msra.mxu0 0.0
  %799 = vmatprep.subr.mxu0 0.0
  %800 = vmatpush1.msra.mxu0 0.0
  %801 = vmatprep.subr.mxu0 0.0
  %802 = vmatpush1.msra.mxu0 0.0
  %803 = vmatprep.subr.mxu0 0.0
  %804 = vmatpush1.msra.mxu0 0.0
  %805 = vmatprep.subr.mxu0 0.0
  %806 = vmatpush1.msra.mxu0 0.0
  %807 = vmatprep.subr.mxu0 0.0
  %808 = vmatpush1.msra.mxu0 0.0
  %809 = vmatprep.mubr.f32.mxu0 0.0
  %810 = vmatmul.mubr.f32.gmra.mrb[0].mxu0 %v708
  %v811 = vpop.f32.mrb[0].mxu0
  %v812 = vadd.f32 0.0, %v811
  %v813 = vpop.f32.mrb[0].mxu0
  %814 = vmatprep.mubr.f32.mxu0 0.0
  %815 = vmatmul.mubr.f32.gmra.mrb[0].mxu0 %v709
  %v816 = vpop.f32.mrb[0].mxu0
  %v817 = vadd.f32 0.0, %v816
  %v818 = vpop.f32.mrb[0].mxu0
  %819 = vmatprep.mubr.f32.mxu0 0.0
  %820 = vmatmul.mubr.f32.gmra.mrb[0].mxu0 %v710
  %v821 = vpop.f32.mrb[0].mxu0
  %v822 = vadd.f32 0.0, %v821
  %v823 = vpop.f32.mrb[0].mxu0
  %824 = vmatprep.mubr.f32.mxu0 0.0
  %825 = vmatmul.mubr.f32.gmra.mrb[0].mxu0 %v711
  %v826 = vpop.f32.mrb[0].mxu0
  %v827 = vadd.f32 0.0, %v826
  %v828 = vpop.f32.mrb[0].mxu0
  %829 = vmatprep.mubr.f32.mxu0 0.0
  %830 = vmatmul.mubr.f32.gmra.mrb[0].mxu0 %v712
  %v831 = vpop.f32.mrb[0].mxu0
  %v832 = vadd.f32 0.0, %v831
  %v833 = vpop.f32.mrb[0].mxu0
  %834 = vmatprep.mubr.f32.mxu0 0.0
  %835 = vmatmul.mubr.f32.gmra.mrb[0].mxu0 %v713
  %v836 = vpop.f32.mrb[0].mxu0
  %v837 = vadd.f32 0.0, %v836
  %v838 = vpop.f32.mrb[0].mxu0
  %839 = vmatprep.mubr.f32.mxu0 0.0
  %840 = vmatmul.mubr.f32.gmra.mrb[0].mxu0 %v714
  %v841 = vpop.f32.mrb[0].mxu0
  %v842 = vadd.f32 0.0, %v841
  %v843 = vpop.f32.mrb[0].mxu0
  %844 = vmatprep.mubr.f32.mxu0 0.0
  %845 = vmatmul.mubr.f32.gmra.mrb[0].mxu0 %v715
  %v846 = vpop.f32.mrb[0].mxu0
  %v847 = vadd.f32 0.0, %v846
  %v848 = vpop.f32.mrb[0].mxu0
  %849 = vmatprep.mubr.f32.mxu0 0.0
  %850 = vmatmul.mubr.f32.gmra.mrb[0].mxu0 %v718
  %v851 = vpop.f32.mrb[0].mxu0
  %v852 = vadd.f32 0.0, %v851
  %v853 = vpop.f32.mrb[0].mxu0
  %854 = vmatprep.mubr.f32.mxu0 0.0
  %855 = vmatmul.mubr.f32.gmra.mrb[0].mxu0 %v719
  %v856 = vpop.f32.mrb[0].mxu0
  %v857 = vadd.f32 0.0, %v856
  %v858 = vpop.f32.mrb[0].mxu0
  %859 = vmatprep.mubr.f32.mxu0 0.0
  %860 = vmatmul.mubr.f32.gmra.mrb[0].mxu0 %v720
  %v861 = vpop.f32.mrb[0].mxu0
  %v862 = vadd.f32 0.0, %v861
  %v863 = vpop.f32.mrb[0].mxu0
  %864 = vmatprep.mubr.f32.mxu0 0.0
  %865 = vmatmul.mubr.f32.gmra.mrb[0].mxu0 %v721
  %v866 = vpop.f32.mrb[0].mxu0
  %v867 = vadd.f32 0.0, %v866
  %v868 = vpop.f32.mrb[0].mxu0
  %869 = vmatprep.mubr.f32.mxu0 0.0
  %870 = vmatmul.mubr.f32.gmra.mrb[0].mxu0 %v722
  %v871 = vpop.f32.mrb[0].mxu0
  %v872 = vadd.f32 0.0, %v871
  %v873 = vpop.f32.mrb[0].mxu0
  %874 = vmatprep.mubr.f32.mxu0 0.0
  %875 = vmatmul.mubr.f32.gmra.mrb[0].mxu0 %v723
  %v876 = vpop.f32.mrb[0].mxu0
  %v877 = vadd.f32 0.0, %v876
  %v878 = vpop.f32.mrb[0].mxu0
  %879 = vmatprep.mubr.f32.mxu0 0.0
  %880 = vmatmul.mubr.f32.gmra.mrb[0].mxu0 %v724
  %v881 = vpop.f32.mrb[0].mxu0
  %v882 = vadd.f32 0.0, %v881
  %v883 = vpop.f32.mrb[0].mxu0
  %884 = vmatprep.mubr.f32.mxu0 0.0
  %885 = vmatmul.mubr.f32.gmra.mrb[0].mxu0 %v725
  %v886 = vpop.f32.mrb[0].mxu0
  %v887 = vadd.f32 0.0, %v886
  %v888 = vpop.f32.mrb[0].mxu0
  %889 = vdwg.mxu0
  %v890 = vadd.f32 %v692, %v812
  %v891 = vadd.f32 %v693, %v817
  %v892 = vadd.f32 %v694, %v822
  %v893 = vadd.f32 %v695, %v827
  %v894 = vadd.f32 %v696, %v832
  %v895 = vadd.f32 %v697, %v837
  %v896 = vadd.f32 %v698, %v842
  %v897 = vadd.f32 %v699, %v847
  %v898 = vadd.f32 %v700, %v852
  %v899 = vadd.f32 %v701, %v857
  %v900 = vadd.f32 %v702, %v862
  %v901 = vadd.f32 %v703, %v867
  %v902 = vadd.f32 %v704, %v872
  %v903 = vadd.f32 %v705, %v877
  %v904 = vadd.f32 %v706, %v882
  %v905 = vadd.f32 %v707, %v887
  %s906 = scalar_lea.vmem %s1, 512
  %v907 = vld [vmem:[%s906] sm:$0xff]
  %v908 = vld [vmem:[%s906 + $0x8] sm:$0xff]
  %v909 = vld [vmem:[%s906 + $0x10] sm:$0xff]
  %v910 = vld [vmem:[%s906 + $0x18] sm:$0xff]
  %v911 = vld [vmem:[%s906 + $0x20] sm:$0xff]
  %v912 = vld [vmem:[%s906 + $0x28] sm:$0xff]
  %v913 = vld [vmem:[%s906 + $0x30] sm:$0xff]
  %v914 = vld [vmem:[%s906 + $0x38] sm:$0xff]
  %v915 = vld [vmem:[%s906 + $0x40] sm:$0xff]
  %v916 = vld [vmem:[%s906 + $0x48] sm:$0xff]
  %v917 = vld [vmem:[%s906 + $0x50] sm:$0xff]
  %v918 = vld [vmem:[%s906 + $0x58] sm:$0xff]
  %v919 = vld [vmem:[%s906 + $0x60] sm:$0xff]
  %v920 = vld [vmem:[%s906 + $0x68] sm:$0xff]
  %v921 = vld [vmem:[%s906 + $0x70] sm:$0xff]
  %v922 = vld [vmem:[%s906 + $0x78] sm:$0xff]
  %923 = vmatprep.subr.mxu0 0.0
  %924 = vmatpush1.msra.mxu0 %v907
  %925 = vmatprep.subr.mxu0 0.0
  %926 = vmatpush1.msra.mxu0 %v908
  %927 = vmatprep.subr.mxu0 0.0
  %928 = vmatpush1.msra.mxu0 %v909
  %929 = vmatprep.subr.mxu0 0.0
  %930 = vmatpush1.msra.mxu0 %v910
  %931 = vmatprep.subr.mxu0 0.0
  %932 = vmatpush1.msra.mxu0 %v911
  %933 = vmatprep.subr.mxu0 0.0
  %934 = vmatpush1.msra.mxu0 %v912
  %935 = vmatprep.subr.mxu0 0.0
  %936 = vmatpush1.msra.mxu0 %v913
  %937 = vmatprep.subr.mxu0 0.0
  %938 = vmatpush1.msra.mxu0 %v914
  %939 = vmatprep.subr.mxu0 0.0
  %940 = vmatpush1.msra.mxu0 %v915
  %941 = vmatprep.subr.mxu0 0.0
  %942 = vmatpush1.msra.mxu0 %v916
  %943 = vmatprep.subr.mxu0 0.0
  %944 = vmatpush1.msra.mxu0 %v917
  %945 = vmatprep.subr.mxu0 0.0
  %946 = vmatpush1.msra.mxu0 %v918
  %947 = vmatprep.subr.mxu0 0.0
  %948 = vmatpush1.msra.mxu0 %v919
  %949 = vmatprep.subr.mxu0 0.0
  %950 = vmatpush1.msra.mxu0 %v920
  %951 = vmatprep.subr.mxu0 0.0
  %952 = vmatpush1.msra.mxu0 %v921
  %953 = vmatprep.subr.mxu0 0.0
  %954 = vmatpush1.msra.mxu0 %v922
  %955 = vmatprep.subr.mxu0 0.0
  %956 = vmatpush1.msra.mxu0 0.0
  %957 = vmatprep.subr.mxu0 0.0
  %958 = vmatpush1.msra.mxu0 0.0
  %959 = vmatprep.subr.mxu0 0.0
  %960 = vmatpush1.msra.mxu0 0.0
  %961 = vmatprep.subr.mxu0 0.0
  %962 = vmatpush1.msra.mxu0 0.0
  %963 = vmatprep.subr.mxu0 0.0
  %964 = vmatpush1.msra.mxu0 0.0
  %965 = vmatprep.subr.mxu0 0.0
  %966 = vmatpush1.msra.mxu0 0.0
  %967 = vmatprep.subr.mxu0 0.0
  %968 = vmatpush1.msra.mxu0 0.0
  %969 = vmatprep.subr.mxu0 0.0
  %970 = vmatpush1.msra.mxu0 0.0
  %971 = vmatprep.subr.mxu0 0.0
  %972 = vmatpush1.msra.mxu0 0.0
  %973 = vmatprep.subr.mxu0 0.0
  %974 = vmatpush1.msra.mxu0 0.0
  %975 = vmatprep.subr.mxu0 0.0
  %976 = vmatpush1.msra.mxu0 0.0
  %977 = vmatprep.subr.mxu0 0.0
  %978 = vmatpush1.msra.mxu0 0.0
  %979 = vmatprep.subr.mxu0 0.0
  %980 = vmatpush1.msra.mxu0 0.0
  %981 = vmatprep.subr.mxu0 0.0
  %982 = vmatpush1.msra.mxu0 0.0
  %983 = vmatprep.subr.mxu0 0.0
  %984 = vmatpush1.msra.mxu0 0.0
  %985 = vmatprep.subr.mxu0 0.0
  %986 = vmatpush1.msra.mxu0 0.0
  %987 = vmatprep.mubr.f32.mxu0 0.0
  %988 = vmatmul.mubr.f32.gmra.mrb[0].mxu0 %v709
  %v989 = vpop.f32.mrb[0].mxu0
  %v990 = vadd.f32 0.0, %v989
  %v991 = vpop.f32.mrb[0].mxu0
  %992 = vmatprep.mubr.f32.mxu0 0.0
  %993 = vmatmul.mubr.f32.gmra.mrb[0].mxu0 %v710
  %v994 = vpop.f32.mrb[0].mxu0
  %v995 = vadd.f32 0.0, %v994
  %v996 = vpop.f32.mrb[0].mxu0
  %997 = vmatprep.mubr.f32.mxu0 0.0
  %998 = vmatmul.mubr.f32.gmra.mrb[0].mxu0 %v711
  %v999 = vpop.f32.mrb[0].mxu0
  %v1000 = vadd.f32 0.0, %v999
  %v1001 = vpop.f32.mrb[0].mxu0
  %1002 = vmatprep.mubr.f32.mxu0 0.0
  %1003 = vmatmul.mubr.f32.gmra.mrb[0].mxu0 %v712
  %v1004 = vpop.f32.mrb[0].mxu0
  %v1005 = vadd.f32 0.0, %v1004
  %v1006 = vpop.f32.mrb[0].mxu0
  %1007 = vmatprep.mubr.f32.mxu0 0.0
  %1008 = vmatmul.mubr.f32.gmra.mrb[0].mxu0 %v713
  %v1009 = vpop.f32.mrb[0].mxu0
  %v1010 = vadd.f32 0.0, %v1009
  %v1011 = vpop.f32.mrb[0].mxu0
  %1012 = vmatprep.mubr.f32.mxu0 0.0
  %1013 = vmatmul.mubr.f32.gmra.mrb[0].mxu0 %v714
  %v1014 = vpop.f32.mrb[0].mxu0
  %v1015 = vadd.f32 0.0, %v1014
  %v1016 = vpop.f32.mrb[0].mxu0
  %1017 = vmatprep.mubr.f32.mxu0 0.0
  %1018 = vmatmul.mubr.f32.gmra.mrb[0].mxu0 %v715
  %v1019 = vpop.f32.mrb[0].mxu0
  %v1020 = vadd.f32 0.0, %v1019
  %v1021 = vpop.f32.mrb[0].mxu0
  %1022 = vmatprep.mubr.f32.mxu0 0.0
  %1023 = vmatmul.mubr.f32.gmra.mrb[0].mxu0 %v716
  %v1024 = vpop.f32.mrb[0].mxu0
  %v1025 = vadd.f32 0.0, %v1024
  %v1026 = vpop.f32.mrb[0].mxu0
  %1027 = vmatprep.mubr.f32.mxu0 0.0
  %1028 = vmatmul.mubr.f32.gmra.mrb[0].mxu0 %v719
  %v1029 = vpop.f32.mrb[0].mxu0
  %v1030 = vadd.f32 0.0, %v1029
  %v1031 = vpop.f32.mrb[0].mxu0
  %1032 = vmatprep.mubr.f32.mxu0 0.0
  %1033 = vmatmul.mubr.f32.gmra.mrb[0].mxu0 %v720
  %v1034 = vpop.f32.mrb[0].mxu0
  %v1035 = vadd.f32 0.0, %v1034
  %v1036 = vpop.f32.mrb[0].mxu0
  %1037 = vmatprep.mubr.f32.mxu0 0.0
  %1038 = vmatmul.mubr.f32.gmra.mrb[0].mxu0 %v721
  %v1039 = vpop.f32.mrb[0].mxu0
  %v1040 = vadd.f32 0.0, %v1039
  %v1041 = vpop.f32.mrb[0].mxu0
  %1042 = vmatprep.mubr.f32.mxu0 0.0
  %1043 = vmatmul.mubr.f32.gmra.mrb[0].mxu0 %v722
  %v1044 = vpop.f32.mrb[0].mxu0
  %v1045 = vadd.f32 0.0, %v1044
  %v1046 = vpop.f32.mrb[0].mxu0
  %1047 = vmatprep.mubr.f32.mxu0 0.0
  %1048 = vmatmul.mubr.f32.gmra.mrb[0].mxu0 %v723
  %v1049 = vpop.f32.mrb[0].mxu0
  %v1050 = vadd.f32 0.0, %v1049
  %v1051 = vpop.f32.mrb[0].mxu0
  %1052 = vmatprep.mubr.f32.mxu0 0.0
  %1053 = vmatmul.mubr.f32.gmra.mrb[0].mxu0 %v724
  %v1054 = vpop.f32.mrb[0].mxu0
  %v1055 = vadd.f32 0.0, %v1054
  %v1056 = vpop.f32.mrb[0].mxu0
  %1057 = vmatprep.mubr.f32.mxu0 0.0
  %1058 = vmatmul.mubr.f32.gmra.mrb[0].mxu0 %v725
  %v1059 = vpop.f32.mrb[0].mxu0
  %v1060 = vadd.f32 0.0, %v1059
  %v1061 = vpop.f32.mrb[0].mxu0
  %1062 = vmatprep.mubr.f32.mxu0 0.0
  %1063 = vmatmul.mubr.f32.gmra.mrb[0].mxu0 %v726
  %v1064 = vpop.f32.mrb[0].mxu0
  %v1065 = vadd.f32 0.0, %v1064
  %v1066 = vpop.f32.mrb[0].mxu0
  %1067 = vdwg.mxu0
  %v1068 = vadd.f32 %v890, %v990
  %v1069 = vadd.f32 %v891, %v995
  %v1070 = vadd.f32 %v892, %v1000
  %v1071 = vadd.f32 %v893, %v1005
  %v1072 = vadd.f32 %v894, %v1010
  %v1073 = vadd.f32 %v895, %v1015
  %v1074 = vadd.f32 %v896, %v1020
  %v1075 = vadd.f32 %v897, %v1025
  %v1076 = vadd.f32 %v898, %v1030
  %v1077 = vadd.f32 %v899, %v1035
  %v1078 = vadd.f32 %v900, %v1040
  %v1079 = vadd.f32 %v901, %v1045
  %v1080 = vadd.f32 %v902, %v1050
  %v1081 = vadd.f32 %v903, %v1055
  %v1082 = vadd.f32 %v904, %v1060
  %v1083 = vadd.f32 %v905, %v1065
  %s1084 = scalar_lea.vmem %s1, 896
  %v1085 = vld [vmem:[%s1084] sm:$0xff]
  %v1086 = vld [vmem:[%s1084 + $0x8] sm:$0xff]
  %v1087 = vld [vmem:[%s1084 + $0x10] sm:$0xff]
  %v1088 = vld [vmem:[%s1084 + $0x18] sm:$0xff]
  %v1089 = vld [vmem:[%s1084 + $0x20] sm:$0xff]
  %v1090 = vld [vmem:[%s1084 + $0x28] sm:$0xff]
  %v1091 = vld [vmem:[%s1084 + $0x30] sm:$0xff]
  %v1092 = vld [vmem:[%s1084 + $0x38] sm:$0xff]
  %v1093 = vld [vmem:[%s1084 + $0x40] sm:$0xff]
  %v1094 = vld [vmem:[%s1084 + $0x48] sm:$0xff]
  %v1095 = vld [vmem:[%s1084 + $0x50] sm:$0xff]
  %v1096 = vld [vmem:[%s1084 + $0x58] sm:$0xff]
  %v1097 = vld [vmem:[%s1084 + $0x60] sm:$0xff]
  %v1098 = vld [vmem:[%s1084 + $0x68] sm:$0xff]
  %v1099 = vld [vmem:[%s1084 + $0x70] sm:$0xff]
  %v1100 = vld [vmem:[%s1084 + $0x78] sm:$0xff]
  %1101 = vmatprep.subr.mxu0 0.0
  %1102 = vmatpush1.msra.mxu0 %v1085
  %1103 = vmatprep.subr.mxu0 0.0
  %1104 = vmatpush1.msra.mxu0 %v1086
  %1105 = vmatprep.subr.mxu0 0.0
  %1106 = vmatpush1.msra.mxu0 %v1087
  %1107 = vmatprep.subr.mxu0 0.0
  %1108 = vmatpush1.msra.mxu0 %v1088
  %1109 = vmatprep.subr.mxu0 0.0
  %1110 = vmatpush1.msra.mxu0 %v1089
  %1111 = vmatprep.subr.mxu0 0.0
  %1112 = vmatpush1.msra.mxu0 %v1090
  %1113 = vmatprep.subr.mxu0 0.0
  %1114 = vmatpush1.msra.mxu0 %v1091
  %1115 = vmatprep.subr.mxu0 0.0
  %1116 = vmatpush1.msra.mxu0 %v1092
  %1117 = vmatprep.subr.mxu0 0.0
  %1118 = vmatpush1.msra.mxu0 %v1093
  %1119 = vmatprep.subr.mxu0 0.0
  %1120 = vmatpush1.msra.mxu0 %v1094
  %1121 = vmatprep.subr.mxu0 0.0
  %1122 = vmatpush1.msra.mxu0 %v1095
  %1123 = vmatprep.subr.mxu0 0.0
  %1124 = vmatpush1.msra.mxu0 %v1096
  %1125 = vmatprep.subr.mxu0 0.0
  %1126 = vmatpush1.msra.mxu0 %v1097
  %1127 = vmatprep.subr.mxu0 0.0
  %1128 = vmatpush1.msra.mxu0 %v1098
  %1129 = vmatprep.subr.mxu0 0.0
  %1130 = vmatpush1.msra.mxu0 %v1099
  %1131 = vmatprep.subr.mxu0 0.0
  %1132 = vmatpush1.msra.mxu0 %v1100
  %1133 = vmatprep.subr.mxu0 0.0
  %1134 = vmatpush1.msra.mxu0 0.0
  %1135 = vmatprep.subr.mxu0 0.0
  %1136 = vmatpush1.msra.mxu0 0.0
  %1137 = vmatprep.subr.mxu0 0.0
  %1138 = vmatpush1.msra.mxu0 0.0
  %1139 = vmatprep.subr.mxu0 0.0
  %1140 = vmatpush1.msra.mxu0 0.0
  %1141 = vmatprep.subr.mxu0 0.0
  %1142 = vmatpush1.msra.mxu0 0.0
  %1143 = vmatprep.subr.mxu0 0.0
  %1144 = vmatpush1.msra.mxu0 0.0
  %1145 = vmatprep.subr.mxu0 0.0
  %1146 = vmatpush1.msra.mxu0 0.0
  %1147 = vmatprep.subr.mxu0 0.0
  %1148 = vmatpush1.msra.mxu0 0.0
  %1149 = vmatprep.subr.mxu0 0.0
  %1150 = vmatpush1.msra.mxu0 0.0
  %1151 = vmatprep.subr.mxu0 0.0
  %1152 = vmatpush1.msra.mxu0 0.0
  %1153 = vmatprep.subr.mxu0 0.0
  %1154 = vmatpush1.msra.mxu0 0.0
  %1155 = vmatprep.subr.mxu0 0.0
  %1156 = vmatpush1.msra.mxu0 0.0
  %1157 = vmatprep.subr.mxu0 0.0
  %1158 = vmatpush1.msra.mxu0 0.0
  %1159 = vmatprep.subr.mxu0 0.0
  %1160 = vmatpush1.msra.mxu0 0.0
  %1161 = vmatprep.subr.mxu0 0.0
  %1162 = vmatpush1.msra.mxu0 0.0
  %1163 = vmatprep.subr.mxu0 0.0
  %1164 = vmatpush1.msra.mxu0 0.0
  %1165 = vmatprep.mubr.f32.mxu0 0.0
  %1166 = vmatmul.mubr.f32.gmra.mrb[0].mxu0 %v710
  %v1167 = vpop.f32.mrb[0].mxu0
  %v1168 = vadd.f32 0.0, %v1167
  %v1169 = vpop.f32.mrb[0].mxu0
  %1170 = vmatprep.mubr.f32.mxu0 0.0
  %1171 = vmatmul.mubr.f32.gmra.mrb[0].mxu0 %v711
  %v1172 = vpop.f32.mrb[0].mxu0
  %v1173 = vadd.f32 0.0, %v1172
  %v1174 = vpop.f32.mrb[0].mxu0
  %1175 = vmatprep.mubr.f32.mxu0 0.0
  %1176 = vmatmul.mubr.f32.gmra.mrb[0].mxu0 %v712
  %v1177 = vpop.f32.mrb[0].mxu0
  %v1178 = vadd.f32 0.0, %v1177
  %v1179 = vpop.f32.mrb[0].mxu0
  %1180 = vmatprep.mubr.f32.mxu0 0.0
  %1181 = vmatmul.mubr.f32.gmra.mrb[0].mxu0 %v713
  %v1182 = vpop.f32.mrb[0].mxu0
  %v1183 = vadd.f32 0.0, %v1182
  %v1184 = vpop.f32.mrb[0].mxu0
  %1185 = vmatprep.mubr.f32.mxu0 0.0
  %1186 = vmatmul.mubr.f32.gmra.mrb[0].mxu0 %v714
  %v1187 = vpop.f32.mrb[0].mxu0
  %v1188 = vadd.f32 0.0, %v1187
  %v1189 = vpop.f32.mrb[0].mxu0
  %1190 = vmatprep.mubr.f32.mxu0 0.0
  %1191 = vmatmul.mubr.f32.gmra.mrb[0].mxu0 %v715
  %v1192 = vpop.f32.mrb[0].mxu0
  %v1193 = vadd.f32 0.0, %v1192
  %v1194 = vpop.f32.mrb[0].mxu0
  %1195 = vmatprep.mubr.f32.mxu0 0.0
  %1196 = vmatmul.mubr.f32.gmra.mrb[0].mxu0 %v716
  %v1197 = vpop.f32.mrb[0].mxu0
  %v1198 = vadd.f32 0.0, %v1197
  %v1199 = vpop.f32.mrb[0].mxu0
  %1200 = vmatprep.mubr.f32.mxu0 0.0
  %1201 = vmatmul.mubr.f32.gmra.mrb[0].mxu0 %v717
  %v1202 = vpop.f32.mrb[0].mxu0
  %v1203 = vadd.f32 0.0, %v1202
  %v1204 = vpop.f32.mrb[0].mxu0
  %1205 = vmatprep.mubr.f32.mxu0 0.0
  %1206 = vmatmul.mubr.f32.gmra.mrb[0].mxu0 %v720
  %v1207 = vpop.f32.mrb[0].mxu0
  %v1208 = vadd.f32 0.0, %v1207
  %v1209 = vpop.f32.mrb[0].mxu0
  %1210 = vmatprep.mubr.f32.mxu0 0.0
  %1211 = vmatmul.mubr.f32.gmra.mrb[0].mxu0 %v721
  %v1212 = vpop.f32.mrb[0].mxu0
  %v1213 = vadd.f32 0.0, %v1212
  %v1214 = vpop.f32.mrb[0].mxu0
  %1215 = vmatprep.mubr.f32.mxu0 0.0
  %1216 = vmatmul.mubr.f32.gmra.mrb[0].mxu0 %v722
  %v1217 = vpop.f32.mrb[0].mxu0
  %v1218 = vadd.f32 0.0, %v1217
  %v1219 = vpop.f32.mrb[0].mxu0
  %1220 = vmatprep.mubr.f32.mxu0 0.0
  %1221 = vmatmul.mubr.f32.gmra.mrb[0].mxu0 %v723
  %v1222 = vpop.f32.mrb[0].mxu0
  %v1223 = vadd.f32 0.0, %v1222
  %v1224 = vpop.f32.mrb[0].mxu0
  %1225 = vmatprep.mubr.f32.mxu0 0.0
  %1226 = vmatmul.mubr.f32.gmra.mrb[0].mxu0 %v724
  %v1227 = vpop.f32.mrb[0].mxu0
  %v1228 = vadd.f32 0.0, %v1227
  %v1229 = vpop.f32.mrb[0].mxu0
  %1230 = vmatprep.mubr.f32.mxu0 0.0
  %1231 = vmatmul.mubr.f32.gmra.mrb[0].mxu0 %v725
  %v1232 = vpop.f32.mrb[0].mxu0
  %v1233 = vadd.f32 0.0, %v1232
  %v1234 = vpop.f32.mrb[0].mxu0
  %1235 = vmatprep.mubr.f32.mxu0 0.0
  %1236 = vmatmul.mubr.f32.gmra.mrb[0].mxu0 %v726
  %v1237 = vpop.f32.mrb[0].mxu0
  %v1238 = vadd.f32 0.0, %v1237
  %v1239 = vpop.f32.mrb[0].mxu0
  %1240 = vmatprep.mubr.f32.mxu0 0.0
  %1241 = vmatmul.mubr.f32.gmra.mrb[0].mxu0 %v727
  %v1242 = vpop.f32.mrb[0].mxu0
  %v1243 = vadd.f32 0.0, %v1242
  %v1244 = vpop.f32.mrb[0].mxu0
  %1245 = vdwg.mxu0
  %v1246 = vadd.f32 %v1068, %v1168
  %v1247 = vadd.f32 %v1069, %v1173
  %v1248 = vadd.f32 %v1070, %v1178
  %v1249 = vadd.f32 %v1071, %v1183
  %v1250 = vadd.f32 %v1072, %v1188
  %v1251 = vadd.f32 %v1073, %v1193
  %v1252 = vadd.f32 %v1074, %v1198
  %v1253 = vadd.f32 %v1075, %v1203
  %v1254 = vadd.f32 %v1076, %v1208
  %v1255 = vadd.f32 %v1077, %v1213
  %v1256 = vadd.f32 %v1078, %v1218
  %v1257 = vadd.f32 %v1079, %v1223
  %v1258 = vadd.f32 %v1080, %v1228
  %v1259 = vadd.f32 %v1081, %v1233
  %v1260 = vadd.f32 %v1082, %v1238
  %v1261 = vadd.f32 %v1083, %v1243
  %v1262 = vld [vmem:[#allocation2 + $0x2] sm:$0xff]
  %v1263 = vld [vmem:[#allocation2 + $0x12] sm:$0xff]
  %v1264 = vld [vmem:[#allocation2 + $0x22] sm:$0xff]
  %v1265 = vld [vmem:[#allocation2 + $0x32] sm:$0xff]
  %v1266 = vld [vmem:[#allocation2 + $0x42] sm:$0xff]
  %v1267 = vld [vmem:[#allocation2 + $0x52] sm:$0xff]
  %v1268 = vld [vmem:[#allocation2 + $0x62] sm:$0xff]
  %v1269 = vld [vmem:[#allocation2 + $0x72] sm:$0xff]
  %v1270 = vld [vmem:[#allocation2 + $0x82] sm:$0xff]
  %v1271 = vld [vmem:[#allocation2 + $0x92] sm:$0xff]
  %v1272 = vld [vmem:[#allocation2 + $0xa2] sm:$0xff]
  %v1273 = vld [vmem:[#allocation2 + $0xb2] sm:$0xff]
  %v1274 = vld [vmem:[#allocation2 + $0xc2] sm:$0xff]
  %v1275 = vld [vmem:[#allocation2 + $0xd2] sm:$0xff]
  %v1276 = vld [vmem:[#allocation2 + $0xe2] sm:$0xff]
  %v1277 = vld [vmem:[#allocation2 + $0xf2] sm:$0xff]
  %v1278 = vld [vmem:[#allocation2 + $0x102] sm:$0xff]
  %v1279 = vld [vmem:[#allocation2 + $0x112] sm:$0xff]
  %v1280 = vld [vmem:[#allocation2 + $0x122] sm:$0xff]
  %v1281 = vld [vmem:[#allocation2 + $0x132] sm:$0xff]
  %s1282 = scalar_lea.vmem %s1, 256
  %v1283 = vld [vmem:[%s1282] sm:$0xff]
  %v1284 = vld [vmem:[%s1282 + $0x8] sm:$0xff]
  %v1285 = vld [vmem:[%s1282 + $0x10] sm:$0xff]
  %v1286 = vld [vmem:[%s1282 + $0x18] sm:$0xff]
  %v1287 = vld [vmem:[%s1282 + $0x20] sm:$0xff]
  %v1288 = vld [vmem:[%s1282 + $0x28] sm:$0xff]
  %v1289 = vld [vmem:[%s1282 + $0x30] sm:$0xff]
  %v1290 = vld [vmem:[%s1282 + $0x38] sm:$0xff]
  %v1291 = vld [vmem:[%s1282 + $0x40] sm:$0xff]
  %v1292 = vld [vmem:[%s1282 + $0x48] sm:$0xff]
  %v1293 = vld [vmem:[%s1282 + $0x50] sm:$0xff]
  %v1294 = vld [vmem:[%s1282 + $0x58] sm:$0xff]
  %v1295 = vld [vmem:[%s1282 + $0x60] sm:$0xff]
  %v1296 = vld [vmem:[%s1282 + $0x68] sm:$0xff]
  %v1297 = vld [vmem:[%s1282 + $0x70] sm:$0xff]
  %v1298 = vld [vmem:[%s1282 + $0x78] sm:$0xff]
  %1299 = vmatprep.subr.mxu0 0.0
  %1300 = vmatpush1.msra.mxu0 %v1283
  %1301 = vmatprep.subr.mxu0 0.0
  %1302 = vmatpush1.msra.mxu0 %v1284
  %1303 = vmatprep.subr.mxu0 0.0
  %1304 = vmatpush1.msra.mxu0 %v1285
  %1305 = vmatprep.subr.mxu0 0.0
  %1306 = vmatpush1.msra.mxu0 %v1286
  %1307 = vmatprep.subr.mxu0 0.0
  %1308 = vmatpush1.msra.mxu0 %v1287
  %1309 = vmatprep.subr.mxu0 0.0
  %1310 = vmatpush1.msra.mxu0 %v1288
  %1311 = vmatprep.subr.mxu0 0.0
  %1312 = vmatpush1.msra.mxu0 %v1289
  %1313 = vmatprep.subr.mxu0 0.0
  %1314 = vmatpush1.msra.mxu0 %v1290
  %1315 = vmatprep.subr.mxu0 0.0
  %1316 = vmatpush1.msra.mxu0 %v1291
  %1317 = vmatprep.subr.mxu0 0.0
  %1318 = vmatpush1.msra.mxu0 %v1292
  %1319 = vmatprep.subr.mxu0 0.0
  %1320 = vmatpush1.msra.mxu0 %v1293
  %1321 = vmatprep.subr.mxu0 0.0
  %1322 = vmatpush1.msra.mxu0 %v1294
  %1323 = vmatprep.subr.mxu0 0.0
  %1324 = vmatpush1.msra.mxu0 %v1295
  %1325 = vmatprep.subr.mxu0 0.0
  %1326 = vmatpush1.msra.mxu0 %v1296
  %1327 = vmatprep.subr.mxu0 0.0
  %1328 = vmatpush1.msra.mxu0 %v1297
  %1329 = vmatprep.subr.mxu0 0.0
  %1330 = vmatpush1.msra.mxu0 %v1298
  %1331 = vmatprep.subr.mxu0 0.0
  %1332 = vmatpush1.msra.mxu0 0.0
  %1333 = vmatprep.subr.mxu0 0.0
  %1334 = vmatpush1.msra.mxu0 0.0
  %1335 = vmatprep.subr.mxu0 0.0
  %1336 = vmatpush1.msra.mxu0 0.0
  %1337 = vmatprep.subr.mxu0 0.0
  %1338 = vmatpush1.msra.mxu0 0.0
  %1339 = vmatprep.subr.mxu0 0.0
  %1340 = vmatpush1.msra.mxu0 0.0
  %1341 = vmatprep.subr.mxu0 0.0
  %1342 = vmatpush1.msra.mxu0 0.0
  %1343 = vmatprep.subr.mxu0 0.0
  %1344 = vmatpush1.msra.mxu0 0.0
  %1345 = vmatprep.subr.mxu0 0.0
  %1346 = vmatpush1.msra.mxu0 0.0
  %1347 = vmatprep.subr.mxu0 0.0
  %1348 = vmatpush1.msra.mxu0 0.0
  %1349 = vmatprep.subr.mxu0 0.0
  %1350 = vmatpush1.msra.mxu0 0.0
  %1351 = vmatprep.subr.mxu0 0.0
  %1352 = vmatpush1.msra.mxu0 0.0
  %1353 = vmatprep.subr.mxu0 0.0
  %1354 = vmatpush1.msra.mxu0 0.0
  %1355 = vmatprep.subr.mxu0 0.0
  %1356 = vmatpush1.msra.mxu0 0.0
  %1357 = vmatprep.subr.mxu0 0.0
  %1358 = vmatpush1.msra.mxu0 0.0
  %1359 = vmatprep.subr.mxu0 0.0
  %1360 = vmatpush1.msra.mxu0 0.0
  %1361 = vmatprep.subr.mxu0 0.0
  %1362 = vmatpush1.msra.mxu0 0.0
  %1363 = vmatprep.mubr.f32.mxu0 0.0
  %1364 = vmatmul.mubr.f32.gmra.mrb[0].mxu0 %v1262
  %v1365 = vpop.f32.mrb[0].mxu0
  %v1366 = vadd.f32 0.0, %v1365
  %v1367 = vpop.f32.mrb[0].mxu0
  %1368 = vmatprep.mubr.f32.mxu0 0.0
  %1369 = vmatmul.mubr.f32.gmra.mrb[0].mxu0 %v1263
  %v1370 = vpop.f32.mrb[0].mxu0
  %v1371 = vadd.f32 0.0, %v1370
  %v1372 = vpop.f32.mrb[0].mxu0
  %1373 = vmatprep.mubr.f32.mxu0 0.0
  %1374 = vmatmul.mubr.f32.gmra.mrb[0].mxu0 %v1264
  %v1375 = vpop.f32.mrb[0].mxu0
  %v1376 = vadd.f32 0.0, %v1375
  %v1377 = vpop.f32.mrb[0].mxu0
  %1378 = vmatprep.mubr.f32.mxu0 0.0
  %1379 = vmatmul.mubr.f32.gmra.mrb[0].mxu0 %v1265
  %v1380 = vpop.f32.mrb[0].mxu0
  %v1381 = vadd.f32 0.0, %v1380
  %v1382 = vpop.f32.mrb[0].mxu0
  %1383 = vmatprep.mubr.f32.mxu0 0.0
  %1384 = vmatmul.mubr.f32.gmra.mrb[0].mxu0 %v1266
  %v1385 = vpop.f32.mrb[0].mxu0
  %v1386 = vadd.f32 0.0, %v1385
  %v1387 = vpop.f32.mrb[0].mxu0
  %1388 = vmatprep.mubr.f32.mxu0 0.0
  %1389 = vmatmul.mubr.f32.gmra.mrb[0].mxu0 %v1267
  %v1390 = vpop.f32.mrb[0].mxu0
  %v1391 = vadd.f32 0.0, %v1390
  %v1392 = vpop.f32.mrb[0].mxu0
  %1393 = vmatprep.mubr.f32.mxu0 0.0
  %1394 = vmatmul.mubr.f32.gmra.mrb[0].mxu0 %v1268
  %v1395 = vpop.f32.mrb[0].mxu0
  %v1396 = vadd.f32 0.0, %v1395
  %v1397 = vpop.f32.mrb[0].mxu0
  %1398 = vmatprep.mubr.f32.mxu0 0.0
  %1399 = vmatmul.mubr.f32.gmra.mrb[0].mxu0 %v1269
  %v1400 = vpop.f32.mrb[0].mxu0
  %v1401 = vadd.f32 0.0, %v1400
  %v1402 = vpop.f32.mrb[0].mxu0
  %1403 = vmatprep.mubr.f32.mxu0 0.0
  %1404 = vmatmul.mubr.f32.gmra.mrb[0].mxu0 %v1272
  %v1405 = vpop.f32.mrb[0].mxu0
  %v1406 = vadd.f32 0.0, %v1405
  %v1407 = vpop.f32.mrb[0].mxu0
  %1408 = vmatprep.mubr.f32.mxu0 0.0
  %1409 = vmatmul.mubr.f32.gmra.mrb[0].mxu0 %v1273
  %v1410 = vpop.f32.mrb[0].mxu0
  %v1411 = vadd.f32 0.0, %v1410
  %v1412 = vpop.f32.mrb[0].mxu0
  %1413 = vmatprep.mubr.f32.mxu0 0.0
  %1414 = vmatmul.mubr.f32.gmra.mrb[0].mxu0 %v1274
  %v1415 = vpop.f32.mrb[0].mxu0
  %v1416 = vadd.f32 0.0, %v1415
  %v1417 = vpop.f32.mrb[0].mxu0
  %1418 = vmatprep.mubr.f32.mxu0 0.0
  %1419 = vmatmul.mubr.f32.gmra.mrb[0].mxu0 %v1275
  %v1420 = vpop.f32.mrb[0].mxu0
  %v1421 = vadd.f32 0.0, %v1420
  %v1422 = vpop.f32.mrb[0].mxu0
  %1423 = vmatprep.mubr.f32.mxu0 0.0
  %1424 = vmatmul.mubr.f32.gmra.mrb[0].mxu0 %v1276
  %v1425 = vpop.f32.mrb[0].mxu0
  %v1426 = vadd.f32 0.0, %v1425
  %v1427 = vpop.f32.mrb[0].mxu0
  %1428 = vmatprep.mubr.f32.mxu0 0.0
  %1429 = vmatmul.mubr.f32.gmra.mrb[0].mxu0 %v1277
  %v1430 = vpop.f32.mrb[0].mxu0
  %v1431 = vadd.f32 0.0, %v1430
  %v1432 = vpop.f32.mrb[0].mxu0
  %1433 = vmatprep.mubr.f32.mxu0 0.0
  %1434 = vmatmul.mubr.f32.gmra.mrb[0].mxu0 %v1278
  %v1435 = vpop.f32.mrb[0].mxu0
  %v1436 = vadd.f32 0.0, %v1435
  %v1437 = vpop.f32.mrb[0].mxu0
  %1438 = vmatprep.mubr.f32.mxu0 0.0
  %1439 = vmatmul.mubr.f32.gmra.mrb[0].mxu0 %v1279
  %v1440 = vpop.f32.mrb[0].mxu0
  %v1441 = vadd.f32 0.0, %v1440
  %v1442 = vpop.f32.mrb[0].mxu0
  %1443 = vdwg.mxu0
  %v1444 = vadd.f32 %v1246, %v1366
  %v1445 = vadd.f32 %v1247, %v1371
  %v1446 = vadd.f32 %v1248, %v1376
  %v1447 = vadd.f32 %v1249, %v1381
  %v1448 = vadd.f32 %v1250, %v1386
  %v1449 = vadd.f32 %v1251, %v1391
  %v1450 = vadd.f32 %v1252, %v1396
  %v1451 = vadd.f32 %v1253, %v1401
  %v1452 = vadd.f32 %v1254, %v1406
  %v1453 = vadd.f32 %v1255, %v1411
  %v1454 = vadd.f32 %v1256, %v1416
  %v1455 = vadd.f32 %v1257, %v1421
  %v1456 = vadd.f32 %v1258, %v1426
  %v1457 = vadd.f32 %v1259, %v1431
  %v1458 = vadd.f32 %v1260, %v1436
  %v1459 = vadd.f32 %v1261, %v1441
  %s1460 = scalar_lea.vmem %s1, 640
  %v1461 = vld [vmem:[%s1460] sm:$0xff]
  %v1462 = vld [vmem:[%s1460 + $0x8] sm:$0xff]
  %v1463 = vld [vmem:[%s1460 + $0x10] sm:$0xff]
  %v1464 = vld [vmem:[%s1460 + $0x18] sm:$0xff]
  %v1465 = vld [vmem:[%s1460 + $0x20] sm:$0xff]
  %v1466 = vld [vmem:[%s1460 + $0x28] sm:$0xff]
  %v1467 = vld [vmem:[%s1460 + $0x30] sm:$0xff]
  %v1468 = vld [vmem:[%s1460 + $0x38] sm:$0xff]
  %v1469 = vld [vmem:[%s1460 + $0x40] sm:$0xff]
  %v1470 = vld [vmem:[%s1460 + $0x48] sm:$0xff]
  %v1471 = vld [vmem:[%s1460 + $0x50] sm:$0xff]
  %v1472 = vld [vmem:[%s1460 + $0x58] sm:$0xff]
  %v1473 = vld [vmem:[%s1460 + $0x60] sm:$0xff]
  %v1474 = vld [vmem:[%s1460 + $0x68] sm:$0xff]
  %v1475 = vld [vmem:[%s1460 + $0x70] sm:$0xff]
  %v1476 = vld [vmem:[%s1460 + $0x78] sm:$0xff]
  %1477 = vmatprep.subr.mxu0 0.0
  %1478 = vmatpush1.msra.mxu0 %v1461
  %1479 = vmatprep.subr.mxu0 0.0
  %1480 = vmatpush1.msra.mxu0 %v1462
  %1481 = vmatprep.subr.mxu0 0.0
  %1482 = vmatpush1.msra.mxu0 %v1463
  %1483 = vmatprep.subr.mxu0 0.0
  %1484 = vmatpush1.msra.mxu0 %v1464
  %1485 = vmatprep.subr.mxu0 0.0
  %1486 = vmatpush1.msra.mxu0 %v1465
  %1487 = vmatprep.subr.mxu0 0.0
  %1488 = vmatpush1.msra.mxu0 %v1466
  %1489 = vmatprep.subr.mxu0 0.0
  %1490 = vmatpush1.msra.mxu0 %v1467
  %1491 = vmatprep.subr.mxu0 0.0
  %1492 = vmatpush1.msra.mxu0 %v1468
  %1493 = vmatprep.subr.mxu0 0.0
  %1494 = vmatpush1.msra.mxu0 %v1469
  %1495 = vmatprep.subr.mxu0 0.0
  %1496 = vmatpush1.msra.mxu0 %v1470
  %1497 = vmatprep.subr.mxu0 0.0
  %1498 = vmatpush1.msra.mxu0 %v1471
  %1499 = vmatprep.subr.mxu0 0.0
  %1500 = vmatpush1.msra.mxu0 %v1472
  %1501 = vmatprep.subr.mxu0 0.0
  %1502 = vmatpush1.msra.mxu0 %v1473
  %1503 = vmatprep.subr.mxu0 0.0
  %1504 = vmatpush1.msra.mxu0 %v1474
  %1505 = vmatprep.subr.mxu0 0.0
  %1506 = vmatpush1.msra.mxu0 %v1475
  %1507 = vmatprep.subr.mxu0 0.0
  %1508 = vmatpush1.msra.mxu0 %v1476
  %1509 = vmatprep.subr.mxu0 0.0
  %1510 = vmatpush1.msra.mxu0 0.0
  %1511 = vmatprep.subr.mxu0 0.0
  %1512 = vmatpush1.msra.mxu0 0.0
  %1513 = vmatprep.subr.mxu0 0.0
  %1514 = vmatpush1.msra.mxu0 0.0
  %1515 = vmatprep.subr.mxu0 0.0
  %1516 = vmatpush1.msra.mxu0 0.0
  %1517 = vmatprep.subr.mxu0 0.0
  %1518 = vmatpush1.msra.mxu0 0.0
  %1519 = vmatprep.subr.mxu0 0.0
  %1520 = vmatpush1.msra.mxu0 0.0
  %1521 = vmatprep.subr.mxu0 0.0
  %1522 = vmatpush1.msra.mxu0 0.0
  %1523 = vmatprep.subr.mxu0 0.0
  %1524 = vmatpush1.msra.mxu0 0.0
  %1525 = vmatprep.subr.mxu0 0.0
  %1526 = vmatpush1.msra.mxu0 0.0
  %1527 = vmatprep.subr.mxu0 0.0
  %1528 = vmatpush1.msra.mxu0 0.0
  %1529 = vmatprep.subr.mxu0 0.0
  %1530 = vmatpush1.msra.mxu0 0.0
  %1531 = vmatprep.subr.mxu0 0.0
  %1532 = vmatpush1.msra.mxu0 0.0
  %1533 = vmatprep.subr.mxu0 0.0
  %1534 = vmatpush1.msra.mxu0 0.0
  %1535 = vmatprep.subr.mxu0 0.0
  %1536 = vmatpush1.msra.mxu0 0.0
  %1537 = vmatprep.subr.mxu0 0.0
  %1538 = vmatpush1.msra.mxu0 0.0
  %1539 = vmatprep.subr.mxu0 0.0
  %1540 = vmatpush1.msra.mxu0 0.0
  %1541 = vmatprep.mubr.f32.mxu0 0.0
  %1542 = vmatmul.mubr.f32.gmra.mrb[0].mxu0 %v1263
  %v1543 = vpop.f32.mrb[0].mxu0
  %v1544 = vadd.f32 0.0, %v1543
  %v1545 = vpop.f32.mrb[0].mxu0
  %1546 = vmatprep.mubr.f32.mxu0 0.0
  %1547 = vmatmul.mubr.f32.gmra.mrb[0].mxu0 %v1264
  %v1548 = vpop.f32.mrb[0].mxu0
  %v1549 = vadd.f32 0.0, %v1548
  %v1550 = vpop.f32.mrb[0].mxu0
  %1551 = vmatprep.mubr.f32.mxu0 0.0
  %1552 = vmatmul.mubr.f32.gmra.mrb[0].mxu0 %v1265
  %v1553 = vpop.f32.mrb[0].mxu0
  %v1554 = vadd.f32 0.0, %v1553
  %v1555 = vpop.f32.mrb[0].mxu0
  %1556 = vmatprep.mubr.f32.mxu0 0.0
  %1557 = vmatmul.mubr.f32.gmra.mrb[0].mxu0 %v1266
  %v1558 = vpop.f32.mrb[0].mxu0
  %v1559 = vadd.f32 0.0, %v1558
  %v1560 = vpop.f32.mrb[0].mxu0
  %1561 = vmatprep.mubr.f32.mxu0 0.0
  %1562 = vmatmul.mubr.f32.gmra.mrb[0].mxu0 %v1267
  %v1563 = vpop.f32.mrb[0].mxu0
  %v1564 = vadd.f32 0.0, %v1563
  %v1565 = vpop.f32.mrb[0].mxu0
  %1566 = vmatprep.mubr.f32.mxu0 0.0
  %1567 = vmatmul.mubr.f32.gmra.mrb[0].mxu0 %v1268
  %v1568 = vpop.f32.mrb[0].mxu0
  %v1569 = vadd.f32 0.0, %v1568
  %v1570 = vpop.f32.mrb[0].mxu0
  %1571 = vmatprep.mubr.f32.mxu0 0.0
  %1572 = vmatmul.mubr.f32.gmra.mrb[0].mxu0 %v1269
  %v1573 = vpop.f32.mrb[0].mxu0
  %v1574 = vadd.f32 0.0, %v1573
  %v1575 = vpop.f32.mrb[0].mxu0
  %1576 = vmatprep.mubr.f32.mxu0 0.0
  %1577 = vmatmul.mubr.f32.gmra.mrb[0].mxu0 %v1270
  %v1578 = vpop.f32.mrb[0].mxu0
  %v1579 = vadd.f32 0.0, %v1578
  %v1580 = vpop.f32.mrb[0].mxu0
  %1581 = vmatprep.mubr.f32.mxu0 0.0
  %1582 = vmatmul.mubr.f32.gmra.mrb[0].mxu0 %v1273
  %v1583 = vpop.f32.mrb[0].mxu0
  %v1584 = vadd.f32 0.0, %v1583
  %v1585 = vpop.f32.mrb[0].mxu0
  %1586 = vmatprep.mubr.f32.mxu0 0.0
  %1587 = vmatmul.mubr.f32.gmra.mrb[0].mxu0 %v1274
  %v1588 = vpop.f32.mrb[0].mxu0
  %v1589 = vadd.f32 0.0, %v1588
  %v1590 = vpop.f32.mrb[0].mxu0
  %1591 = vmatprep.mubr.f32.mxu0 0.0
  %1592 = vmatmul.mubr.f32.gmra.mrb[0].mxu0 %v1275
  %v1593 = vpop.f32.mrb[0].mxu0
  %v1594 = vadd.f32 0.0, %v1593
  %v1595 = vpop.f32.mrb[0].mxu0
  %1596 = vmatprep.mubr.f32.mxu0 0.0
  %1597 = vmatmul.mubr.f32.gmra.mrb[0].mxu0 %v1276
  %v1598 = vpop.f32.mrb[0].mxu0
  %v1599 = vadd.f32 0.0, %v1598
  %v1600 = vpop.f32.mrb[0].mxu0
  %1601 = vmatprep.mubr.f32.mxu0 0.0
  %1602 = vmatmul.mubr.f32.gmra.mrb[0].mxu0 %v1277
  %v1603 = vpop.f32.mrb[0].mxu0
  %v1604 = vadd.f32 0.0, %v1603
  %v1605 = vpop.f32.mrb[0].mxu0
  %1606 = vmatprep.mubr.f32.mxu0 0.0
  %1607 = vmatmul.mubr.f32.gmra.mrb[0].mxu0 %v1278
  %v1608 = vpop.f32.mrb[0].mxu0
  %v1609 = vadd.f32 0.0, %v1608
  %v1610 = vpop.f32.mrb[0].mxu0
  %1611 = vmatprep.mubr.f32.mxu0 0.0
  %1612 = vmatmul.mubr.f32.gmra.mrb[0].mxu0 %v1279
  %v1613 = vpop.f32.mrb[0].mxu0
  %v1614 = vadd.f32 0.0, %v1613
  %v1615 = vpop.f32.mrb[0].mxu0
  %1616 = vmatprep.mubr.f32.mxu0 0.0
  %1617 = vmatmul.mubr.f32.gmra.mrb[0].mxu0 %v1280
  %v1618 = vpop.f32.mrb[0].mxu0
  %v1619 = vadd.f32 0.0, %v1618
  %v1620 = vpop.f32.mrb[0].mxu0
  %1621 = vdwg.mxu0
  %v1622 = vadd.f32 %v1444, %v1544
  %v1623 = vadd.f32 %v1445, %v1549
  %v1624 = vadd.f32 %v1446, %v1554
  %v1625 = vadd.f32 %v1447, %v1559
  %v1626 = vadd.f32 %v1448, %v1564
  %v1627 = vadd.f32 %v1449, %v1569
  %v1628 = vadd.f32 %v1450, %v1574
  %v1629 = vadd.f32 %v1451, %v1579
  %v1630 = vadd.f32 %v1452, %v1584
  %v1631 = vadd.f32 %v1453, %v1589
  %v1632 = vadd.f32 %v1454, %v1594
  %v1633 = vadd.f32 %v1455, %v1599
  %v1634 = vadd.f32 %v1456, %v1604
  %v1635 = vadd.f32 %v1457, %v1609
  %v1636 = vadd.f32 %v1458, %v1614
  %v1637 = vadd.f32 %v1459, %v1619
  %s1638 = scalar_lea.vmem %s1, 1024
  %v1639 = vld [vmem:[%s1638] sm:$0xff]
  %v1640 = vld [vmem:[%s1638 + $0x8] sm:$0xff]
  %v1641 = vld [vmem:[%s1638 + $0x10] sm:$0xff]
  %v1642 = vld [vmem:[%s1638 + $0x18] sm:$0xff]
  %v1643 = vld [vmem:[%s1638 + $0x20] sm:$0xff]
  %v1644 = vld [vmem:[%s1638 + $0x28] sm:$0xff]
  %v1645 = vld [vmem:[%s1638 + $0x30] sm:$0xff]
  %v1646 = vld [vmem:[%s1638 + $0x38] sm:$0xff]
  %v1647 = vld [vmem:[%s1638 + $0x40] sm:$0xff]
  %v1648 = vld [vmem:[%s1638 + $0x48] sm:$0xff]
  %v1649 = vld [vmem:[%s1638 + $0x50] sm:$0xff]
  %v1650 = vld [vmem:[%s1638 + $0x58] sm:$0xff]
  %v1651 = vld [vmem:[%s1638 + $0x60] sm:$0xff]
  %v1652 = vld [vmem:[%s1638 + $0x68] sm:$0xff]
  %v1653 = vld [vmem:[%s1638 + $0x70] sm:$0xff]
  %v1654 = vld [vmem:[%s1638 + $0x78] sm:$0xff]
  %1655 = vmatprep.subr.mxu0 0.0
  %1656 = vmatpush1.msra.mxu0 %v1639
  %1657 = vmatprep.subr.mxu0 0.0
  %1658 = vmatpush1.msra.mxu0 %v1640
  %1659 = vmatprep.subr.mxu0 0.0
  %1660 = vmatpush1.msra.mxu0 %v1641
  %1661 = vmatprep.subr.mxu0 0.0
  %1662 = vmatpush1.msra.mxu0 %v1642
  %1663 = vmatprep.subr.mxu0 0.0
  %1664 = vmatpush1.msra.mxu0 %v1643
  %1665 = vmatprep.subr.mxu0 0.0
  %1666 = vmatpush1.msra.mxu0 %v1644
  %1667 = vmatprep.subr.mxu0 0.0
  %1668 = vmatpush1.msra.mxu0 %v1645
  %1669 = vmatprep.subr.mxu0 0.0
  %1670 = vmatpush1.msra.mxu0 %v1646
  %1671 = vmatprep.subr.mxu0 0.0
  %1672 = vmatpush1.msra.mxu0 %v1647
  %1673 = vmatprep.subr.mxu0 0.0
  %1674 = vmatpush1.msra.mxu0 %v1648
  %1675 = vmatprep.subr.mxu0 0.0
  %1676 = vmatpush1.msra.mxu0 %v1649
  %1677 = vmatprep.subr.mxu0 0.0
  %1678 = vmatpush1.msra.mxu0 %v1650
  %1679 = vmatprep.subr.mxu0 0.0
  %1680 = vmatpush1.msra.mxu0 %v1651
  %1681 = vmatprep.subr.mxu0 0.0
  %1682 = vmatpush1.msra.mxu0 %v1652
  %1683 = vmatprep.subr.mxu0 0.0
  %1684 = vmatpush1.msra.mxu0 %v1653
  %1685 = vmatprep.subr.mxu0 0.0
  %1686 = vmatpush1.msra.mxu0 %v1654
  %1687 = vmatprep.subr.mxu0 0.0
  %1688 = vmatpush1.msra.mxu0 0.0
  %1689 = vmatprep.subr.mxu0 0.0
  %1690 = vmatpush1.msra.mxu0 0.0
  %1691 = vmatprep.subr.mxu0 0.0
  %1692 = vmatpush1.msra.mxu0 0.0
  %1693 = vmatprep.subr.mxu0 0.0
  %1694 = vmatpush1.msra.mxu0 0.0
  %1695 = vmatprep.subr.mxu0 0.0
  %1696 = vmatpush1.msra.mxu0 0.0
  %1697 = vmatprep.subr.mxu0 0.0
  %1698 = vmatpush1.msra.mxu0 0.0
  %1699 = vmatprep.subr.mxu0 0.0
  %1700 = vmatpush1.msra.mxu0 0.0
  %1701 = vmatprep.subr.mxu0 0.0
  %1702 = vmatpush1.msra.mxu0 0.0
  %1703 = vmatprep.subr.mxu0 0.0
  %1704 = vmatpush1.msra.mxu0 0.0
  %1705 = vmatprep.subr.mxu0 0.0
  %1706 = vmatpush1.msra.mxu0 0.0
  %1707 = vmatprep.subr.mxu0 0.0
  %1708 = vmatpush1.msra.mxu0 0.0
  %1709 = vmatprep.subr.mxu0 0.0
  %1710 = vmatpush1.msra.mxu0 0.0
  %1711 = vmatprep.subr.mxu0 0.0
  %1712 = vmatpush1.msra.mxu0 0.0
  %1713 = vmatprep.subr.mxu0 0.0
  %1714 = vmatpush1.msra.mxu0 0.0
  %1715 = vmatprep.subr.mxu0 0.0
  %1716 = vmatpush1.msra.mxu0 0.0
  %1717 = vmatprep.subr.mxu0 0.0
  %1718 = vmatpush1.msra.mxu0 0.0
  %1719 = vmatprep.mubr.f32.mxu0 0.0
  %1720 = vmatmul.mubr.f32.gmra.mrb[0].mxu0 %v1264
  %v1721 = vpop.f32.mrb[0].mxu0
  %v1722 = vadd.f32 0.0, %v1721
  %v1723 = vpop.f32.mrb[0].mxu0
  %1724 = vmatprep.mubr.f32.mxu0 0.0
  %1725 = vmatmul.mubr.f32.gmra.mrb[0].mxu0 %v1265
  %v1726 = vpop.f32.mrb[0].mxu0
  %v1727 = vadd.f32 0.0, %v1726
  %v1728 = vpop.f32.mrb[0].mxu0
  %1729 = vmatprep.mubr.f32.mxu0 0.0
  %1730 = vmatmul.mubr.f32.gmra.mrb[0].mxu0 %v1266
  %v1731 = vpop.f32.mrb[0].mxu0
  %v1732 = vadd.f32 0.0, %v1731
  %v1733 = vpop.f32.mrb[0].mxu0
  %1734 = vmatprep.mubr.f32.mxu0 0.0
  %1735 = vmatmul.mubr.f32.gmra.mrb[0].mxu0 %v1267
  %v1736 = vpop.f32.mrb[0].mxu0
  %v1737 = vadd.f32 0.0, %v1736
  %v1738 = vpop.f32.mrb[0].mxu0
  %1739 = vmatprep.mubr.f32.mxu0 0.0
  %1740 = vmatmul.mubr.f32.gmra.mrb[0].mxu0 %v1268
  %v1741 = vpop.f32.mrb[0].mxu0
  %v1742 = vadd.f32 0.0, %v1741
  %v1743 = vpop.f32.mrb[0].mxu0
  %1744 = vmatprep.mubr.f32.mxu0 0.0
  %1745 = vmatmul.mubr.f32.gmra.mrb[0].mxu0 %v1269
  %v1746 = vpop.f32.mrb[0].mxu0
  %v1747 = vadd.f32 0.0, %v1746
  %v1748 = vpop.f32.mrb[0].mxu0
  %1749 = vmatprep.mubr.f32.mxu0 0.0
  %1750 = vmatmul.mubr.f32.gmra.mrb[0].mxu0 %v1270
  %v1751 = vpop.f32.mrb[0].mxu0
  %v1752 = vadd.f32 0.0, %v1751
  %v1753 = vpop.f32.mrb[0].mxu0
  %1754 = vmatprep.mubr.f32.mxu0 0.0
  %1755 = vmatmul.mubr.f32.gmra.mrb[0].mxu0 %v1271
  %v1756 = vpop.f32.mrb[0].mxu0
  %v1757 = vadd.f32 0.0, %v1756
  %v1758 = vpop.f32.mrb[0].mxu0
  %1759 = vmatprep.mubr.f32.mxu0 0.0
  %1760 = vmatmul.mubr.f32.gmra.mrb[0].mxu0 %v1274
  %v1761 = vpop.f32.mrb[0].mxu0
  %v1762 = vadd.f32 0.0, %v1761
  %v1763 = vpop.f32.mrb[0].mxu0
  %1764 = vmatprep.mubr.f32.mxu0 0.0
  %1765 = vmatmul.mubr.f32.gmra.mrb[0].mxu0 %v1275
  %v1766 = vpop.f32.mrb[0].mxu0
  %v1767 = vadd.f32 0.0, %v1766
  %v1768 = vpop.f32.mrb[0].mxu0
  %1769 = vmatprep.mubr.f32.mxu0 0.0
  %1770 = vmatmul.mubr.f32.gmra.mrb[0].mxu0 %v1276
  %v1771 = vpop.f32.mrb[0].mxu0
  %v1772 = vadd.f32 0.0, %v1771
  %v1773 = vpop.f32.mrb[0].mxu0
  %1774 = vmatprep.mubr.f32.mxu0 0.0
  %1775 = vmatmul.mubr.f32.gmra.mrb[0].mxu0 %v1277
  %v1776 = vpop.f32.mrb[0].mxu0
  %v1777 = vadd.f32 0.0, %v1776
  %v1778 = vpop.f32.mrb[0].mxu0
  %1779 = vmatprep.mubr.f32.mxu0 0.0
  %1780 = vmatmul.mubr.f32.gmra.mrb[0].mxu0 %v1278
  %v1781 = vpop.f32.mrb[0].mxu0
  %v1782 = vadd.f32 0.0, %v1781
  %v1783 = vpop.f32.mrb[0].mxu0
  %1784 = vmatprep.mubr.f32.mxu0 0.0
  %1785 = vmatmul.mubr.f32.gmra.mrb[0].mxu0 %v1279
  %v1786 = vpop.f32.mrb[0].mxu0
  %v1787 = vadd.f32 0.0, %v1786
  %v1788 = vpop.f32.mrb[0].mxu0
  %1789 = vmatprep.mubr.f32.mxu0 0.0
  %1790 = vmatmul.mubr.f32.gmra.mrb[0].mxu0 %v1280
  %v1791 = vpop.f32.mrb[0].mxu0
  %v1792 = vadd.f32 0.0, %v1791
  %v1793 = vpop.f32.mrb[0].mxu0
  %1794 = vmatprep.mubr.f32.mxu0 0.0
  %1795 = vmatmul.mubr.f32.gmra.mrb[0].mxu0 %v1281
  %v1796 = vpop.f32.mrb[0].mxu0
  %v1797 = vadd.f32 0.0, %v1796
  %v1798 = vpop.f32.mrb[0].mxu0
  %1799 = vdwg.mxu0
  %v1800 = vadd.f32 %v1622, %v1722
  %v1801 = vadd.f32 %v1623, %v1727
  %v1802 = vadd.f32 %v1624, %v1732
  %v1803 = vadd.f32 %v1625, %v1737
  %v1804 = vadd.f32 %v1626, %v1742
  %v1805 = vadd.f32 %v1627, %v1747
  %v1806 = vadd.f32 %v1628, %v1752
  %v1807 = vadd.f32 %v1629, %v1757
  %v1808 = vadd.f32 %v1630, %v1762
  %v1809 = vadd.f32 %v1631, %v1767
  %v1810 = vadd.f32 %v1632, %v1772
  %v1811 = vadd.f32 %v1633, %v1777
  %v1812 = vadd.f32 %v1634, %v1782
  %v1813 = vadd.f32 %v1635, %v1787
  %v1814 = vadd.f32 %v1636, %v1792
  %v1815 = vadd.f32 %v1637, %v1797
  %1816 = vst [vmem:[%s4] sm:$0xff] %v1800
  %1817 = vst [vmem:[%s4 + $0x8] sm:$0xff] %v1801
  %1818 = vst [vmem:[%s4 + $0x10] sm:$0xff] %v1802
  %1819 = vst [vmem:[%s4 + $0x18] sm:$0xff] %v1803
  %1820 = vst [vmem:[%s4 + $0x20] sm:$0xff] %v1804
  %1821 = vst [vmem:[%s4 + $0x28] sm:$0xff] %v1805
  %1822 = vst [vmem:[%s4 + $0x30] sm:$0xff] %v1806
  %1823 = vst [vmem:[%s4 + $0x38] sm:$0xff] %v1807
  %1824 = vst [vmem:[%s4 + $0x40] sm:$0xff] %v1808
  %1825 = vst [vmem:[%s4 + $0x48] sm:$0xff] %v1809
  %1826 = vst [vmem:[%s4 + $0x50] sm:$0xff] %v1810
  %1827 = vst [vmem:[%s4 + $0x58] sm:$0xff] %v1811
  %1828 = vst [vmem:[%s4 + $0x60] sm:$0xff] %v1812
  %1829 = vst [vmem:[%s4 + $0x68] sm:$0xff] %v1813
  %1830 = vst [vmem:[%s4 + $0x70] sm:$0xff] %v1814
  %1831 = vst [vmem:[%s4 + $0x78] sm:$0xff] %v1815
  %v1832 = vadd.f32 %v1800, %v1801
  %v1833 = vadd.f32 %v1832, %v1802
  %v1834 = vadd.f32 %v1833, %v1803
  %v1835 = vadd.f32 %v1834, %v1804
  %v1836 = vadd.f32 %v1835, %v1805
  %v1837 = vadd.f32 %v1836, %v1806
  %v1838 = vadd.f32 %v1837, %v1807
  %v1839 = vadd.f32 %v1838, %v1808
  %v1840 = vadd.f32 %v1839, %v1809
  %v1841 = vadd.f32 %v1840, %v1810
  %v1842 = vadd.f32 %v1841, %v1811
  %v1843 = vadd.f32 %v1842, %v1812
  %v1844 = vadd.f32 %v1843, %v1813
  %v1845 = vadd.f32 %v1844, %v1814
  %v1846 = vadd.f32 %v1845, %v1815
  %1847 = vst [vmem:[%s5] sm:$0xff] %v1846
  %v1848 = vmul.f32 %v1800, %v1800
  %v1849 = vmul.f32 %v1801, %v1801
  %v1850 = vmul.f32 %v1802, %v1802
  %v1851 = vmul.f32 %v1803, %v1803
  %v1852 = vmul.f32 %v1804, %v1804
  %v1853 = vmul.f32 %v1805, %v1805
  %v1854 = vmul.f32 %v1806, %v1806
  %v1855 = vmul.f32 %v1807, %v1807
  %v1856 = vmul.f32 %v1808, %v1808
  %v1857 = vmul.f32 %v1809, %v1809
  %v1858 = vmul.f32 %v1810, %v1810
  %v1859 = vmul.f32 %v1811, %v1811
  %v1860 = vmul.f32 %v1812, %v1812
  %v1861 = vmul.f32 %v1813, %v1813
  %v1862 = vmul.f32 %v1814, %v1814
  %v1863 = vmul.f32 %v1815, %v1815
  %v1864 = vadd.f32 %v1848, %v1849
  %v1865 = vadd.f32 %v1864, %v1850
  %v1866 = vadd.f32 %v1865, %v1851
  %v1867 = vadd.f32 %v1866, %v1852
  %v1868 = vadd.f32 %v1867, %v1853
  %v1869 = vadd.f32 %v1868, %v1854
  %v1870 = vadd.f32 %v1869, %v1855
  %v1871 = vadd.f32 %v1870, %v1856
  %v1872 = vadd.f32 %v1871, %v1857
  %v1873 = vadd.f32 %v1872, %v1858
  %v1874 = vadd.f32 %v1873, %v1859
  %v1875 = vadd.f32 %v1874, %v1860
  %v1876 = vadd.f32 %v1875, %v1861
  %v1877 = vadd.f32 %v1876, %v1862
  %v1878 = vadd.f32 %v1877, %v1863
  %1879 = vst [vmem:[%s6] sm:$0xff] %v1878
  // Predicated region
  $region18: #{res_down_block.4} parent=0 // pred_check
    _
  $region19: #{res_down_block.4} parent=0 // pred_check_branch
    %1881 = sbr.rel (0) target = $region21
  $region20: #{res_down_block.4} parent=0 // pred_region
    _
  $region21: #{res_down_block.4} parent=0 // pred_fallthru
    _
  // Predicated region
  $region22: #{res_down_block.4} parent=0 // pred_check
    _
  $region23: #{res_down_block.4} parent=0 // pred_check_branch
    %1883 = sbr.rel (0) target = $region25
  $region24: #{res_down_block.4} parent=0 // pred_region
    _
  $region25: #{res_down_block.4} parent=0 // pred_fallthru
    _
  // Predicated region
  $region26: #{res_down_block.4} parent=0 // pred_check
    _
  $region27: #{res_down_block.4} parent=0 // pred_check_branch
    %1885 = sbr.rel (0) target = $region29
  $region28: #{res_down_block.4} parent=0 // pred_region
    _
  $region29: #{res_down_block.4} parent=0 // pred_fallthru
    _
  // Predicated region
  $region30: #{res_down_block.4} parent=0 // pred_check
    _
  $region31: #{res_down_block.4} parent=0 // pred_check_branch
    %1887 = sbr.rel (0) target = $region33
  $region32: #{res_down_block.4} parent=0 // pred_region
    _
  $region33: #{res_down_block.4} parent=0 // pred_fallthru
    _
  // Predicated region
  $region34: #{res_down_block.4} parent=0 // pred_check
    _
  $region35: #{res_down_block.4} parent=0 // pred_check_branch
    %1889 = sbr.rel (0) target = $region37
  $region36: #{res_down_block.4} parent=0 // pred_region
    _
  $region37: #{res_down_block.4} parent=0 // pred_fallthru
    _
  // Predicated region
  $region38: #{res_down_block.4} parent=0 // pred_check
    _
  $region39: #{res_down_block.4} parent=0 // pred_check_branch
    %1891 = sbr.rel (0) target = $region41
  $region40: #{res_down_block.4} parent=0 // pred_region
    _
  $region41: #{res_down_block.4} parent=0 // pred_fallthru
    _

</llo_original>
